<compile_context>
chip_gen: v7x
topology: tpu7x:2x2x1
jax: 0.10.0
libtpu: 0.0.40
codegen_flags: <defaults>
</compile_context>

<pallas_src>
import math

import jax
import jax.numpy as jnp
from jax import lax
from jax.experimental import pallas as pl
from jax.experimental.pallas import tpu as pltpu


def _round_up(v, m):
    return -(-v // m) * m


# ---------------------------------------------------------------------------
# Kernel bodies.  Block layout (R = low-res rows per block, W = low-res width):
#   x_ref  : (R*W, Cin)           rows are (n, i, j) low-res pixels
#   br_ref : (R, 2, W, 2*Cout)    [r, ky, j, kx*Cout + cb]   (plain NHWC reshape)
#   o_ref  : (R, 4, W, 4*Cout)    [r, dy, j, dx*Cout + co],  dy=2ky+ky2, dx=2kx+kx2
# All phase handling happens through lane-packed (block-diagonal) weights, so
# the kernel needs no cross-lane relayout and every store is a full contiguous
# (W, 4*Cout) plane.
# ---------------------------------------------------------------------------
def _up_block_kernel_folded(x_ref, br_ref, ax_ref, bw_ref, bias_ref, o_ref):
    # ax_ref  : (4, Cin,    4*Cout)  A[ky,kx] folded through the 2nd up-conv taps
    # bw_ref  : (2, 2*Cout, 4*Cout)  blockdiag(W1b) folded through the taps (per ky2)
    # bias_ref: (2, 1,      4*Cout)  folded bias per ky2 (f32)
    r_blk, _, w, c4 = o_ref.shape
    x = x_ref[...]
    for ky in range(2):
        b = br_ref[:, ky].reshape(x.shape[0], -1)           # (R*W, 2*Cout)
        for ky2 in range(2):
            dy = 2 * ky + ky2
            o = jnp.dot(x, ax_ref[dy], preferred_element_type=jnp.float32)
            o = o + jnp.dot(b, bw_ref[ky2], preferred_element_type=jnp.float32)
            o = o + bias_ref[ky2]
            o_ref[:, dy] = o.reshape(r_blk, w, c4).astype(o_ref.dtype)


def _up_block_kernel_3dot(x_ref, br_ref, acat_ref, w1b_ref, bh_ref, w2_ref,
                          b2_ref, o_ref):
    # acat_ref: (2, Cin, 2*Cout)     A[ky, kx] with kx packed in lanes
    # w1b_ref : (2*Cout, 2*Cout)     blockdiag(W1b, W1b)
    # bh_ref  : (1, 2*Cout)          folded 1x1-conv bias, tiled per kx (f32)
    # w2_ref  : (2, 2*Cout, 4*Cout)  blockdiag 2nd up-conv taps, per ky2
    # b2_ref  : (1, 4*Cout)          b_up2 tiled per dx (f32)
    r_blk, _, w, c4 = o_ref.shape
    x = x_ref[...]
    wdt = w2_ref.dtype
    for ky in range(2):
        b = br_ref[:, ky].reshape(x.shape[0], -1)           # (R*W, 2*Cout)
        h = jnp.dot(x, acat_ref[ky], preferred_element_type=jnp.float32)
        h = h + jnp.dot(b, w1b_ref[...], preferred_element_type=jnp.float32)
        h = (h + bh_ref[...]).astype(wdt)                   # (R*W, 2*Cout)
        for ky2 in range(2):
            dy = 2 * ky + ky2
            o = jnp.dot(h, w2_ref[ky2], preferred_element_type=jnp.float32)
            o = o + b2_ref[...]
            o_ref[:, dy] = o.reshape(r_blk, w, c4).astype(o_ref.dtype)


# ---------------------------------------------------------------------------
# Generation-aware sizing helpers.
# ---------------------------------------------------------------------------
def _tpu_vmem_capacity():
    try:
        return int(pltpu.get_tpu_info().vmem_capacity_bytes)
    except Exception:
        return 128 * 1024 * 1024


def _choose_block_rows(n_rows, w, cin, cout, act_it, out_it, fold, budget, two_tc):
    """Largest low-res-row block that fits the VMEM budget."""
    cin_l = _round_up(cin, 128)
    c2_l = _round_up(2 * cout, 128)
    c4_l = _round_up(4 * cout, 128)
    w_s = _round_up(w, 8)
    # Per low-res row: double-buffered x / bridge / output blocks plus f32
    # intermediates, all in lane-padded VMEM bytes.
    per_row = (2 * act_it * (w * cin_l + 2 * w_s * c2_l)
               + 2 * out_it * 4 * w_s * c4_l
               + 4 * w * (cin_l + c2_l + 2 * c4_l))
    if fold:
        wrows = 4 * _round_up(cin, 8) * c4_l + 2 * _round_up(2 * cout, 8) * c4_l
    else:
        wrows = (2 * _round_up(cin, 8) * c2_l + _round_up(2 * cout, 8) * c2_l
                 + 2 * _round_up(2 * cout, 8) * c4_l)
    weight_bytes = 2 * act_it * wrows + 4 * 8 * (c2_l + 2 * c4_l)
    avail = max(budget - weight_bytes, per_row)
    r = max(1, int(avail // per_row))
    r = min(r, n_rows, max(1, 4096 // max(w, 1)))
    if two_tc and n_rows >= 2:
        # Keep >= 2 row blocks so both v7x TensorCores get work; skipped on
        # single-TC parts (no benefit, only extra grid-step overhead).
        r = min(r, -(-n_rows // 2))
    return max(1, r), weight_bytes, per_row


# ---------------------------------------------------------------------------
# Wrapper.
# ---------------------------------------------------------------------------
def unet_up_block(x, bridge, params, *, compute_dtype=jnp.float32,
                  block_rows=None, fold_w2=None, data_format="nchw",
                  vmem_budget_bytes=None):
    """Fused Pallas forward of UNetUpBlock (up_mode='upconv').

    data_format='nchw' matches the PyTorch module exactly.  data_format='nhwc'
    takes/returns channels-last tensors and skips all boundary transposes
    (recommended when chaining decoder blocks).  The bf16 compute_dtype path
    halves activation HBM traffic and is worthwhile on every generation
    (including v5e: the kernel is memory-bound and accumulation stays f32).
    """
    W_up, b_up, W_c, b_c, W_up2, b_up2 = params
    if data_format == "nchw":
        N, Cin, H, W = x.shape
    else:
        N, H, W, Cin = x.shape
    Cout = int(b_up.shape[0])
    out_dtype = x.dtype
    cdt = jnp.dtype(compute_dtype)
    hi = lax.Precision.HIGHEST
    if fold_w2 is None:
        fold_w2 = Cout <= 64     # lane/MXU padding makes the fold free at small widths

    # ---- fold the linear algebra once (tiny; done in f32 HIGHEST) ----------
    Wc = W_c.reshape(Cout, 2 * Cout).astype(jnp.float32)
    W1a = Wc[:, :Cout].T                                   # acts on upsampled-x chans
    W1b = Wc[:, Cout:].T                                   # acts on bridge chans
    A = jnp.einsum('ickl,cm->klim', W_up.astype(jnp.float32), W1a,
                   precision=hi)                           # (ky, kx, Cin, Cout)
    Acat = jnp.transpose(A, (0, 2, 1, 3)).reshape(2, Cin, 2 * Cout)
    bh = jnp.dot(b_up.astype(jnp.float32), W1a, precision=hi) + b_c.astype(jnp.float32)
    bh_cat = jnp.tile(bh, 2).reshape(1, 2 * Cout)
    eye2 = jnp.eye(2, dtype=jnp.float32)
    W1b_bd = jnp.kron(eye2, W1b)                           # (2C, 2C) block-diag
    # 2nd up-conv taps as (ky2, m, kx2*Cout + o), then block-diag over kx.
    W2pair = jnp.transpose(W_up2.astype(jnp.float32), (2, 0, 3, 1)
                           ).reshape(2, Cout, 2 * Cout)
    W2bd = jnp.stack([jnp.kron(eye2, W2pair[k2]) for k2 in range(2)])  # (2,2C,4C)
    b2_cat = jnp.tile(b_up2.astype(jnp.float32), 4).reshape(1, 4 * Cout)

    # ---- activations channels-last; spatial row per block row --------------
    if data_format == "nchw":
        x_nhwc = jnp.transpose(x, (0, 2, 3, 1))
        br_nhwc = jnp.transpose(bridge, (0, 2, 3, 1))
    else:
        x_nhwc, br_nhwc = x, bridge
    x_rows = x_nhwc.reshape(N * H * W, Cin).astype(cdt)
    br_rows = br_nhwc.reshape(N * H, 2, W, 2 * Cout).astype(cdt)

    # ---- generation-aware block sizing --------------------------------------
    vmem_cap = _tpu_vmem_capacity()
    two_tc = vmem_cap <= 64 * 1024 * 1024        # v7x-like: 64 MiB / TC, 2 TCs
    if vmem_budget_bytes is None:
        vmem_budget_bytes = (36 if two_tc else 80) * 1024 * 1024
    n_rows = N * H
    out_it = jnp.dtype(out_dtype).itemsize
    r_auto, weight_bytes, per_row = _choose_block_rows(
        n_rows, W, Cin, Cout, cdt.itemsize, out_it, fold_w2,
        vmem_budget_bytes, two_tc)
    r_blk = int(block_rows) if block_rows else r_auto
    r_blk = max(1, min(r_blk, n_rows))
    # Keep the x block's leading dim a multiple of 8 (or the full extent).
    g = max(1, 8 // math.gcd(W, 8))
    if r_blk < n_rows:
        r_blk = min(n_rows, max(g, (r_blk // g) * g))
    grid = (pl.cdiv(n_rows, r_blk),)
    vmem_limit = int(min((48 if two_tc else 100) * 1024 * 1024,
                         max(24 * 1024 * 1024,
                             weight_bytes + r_blk * per_row + (4 << 20))))

    act_specs = [
        pl.BlockSpec((r_blk * W, Cin), lambda i: (i, 0)),
        pl.BlockSpec((r_blk, 2, W, 2 * Cout), lambda i: (i, 0, 0, 0)),
    ]
    out_spec = pl.BlockSpec((r_blk, 4, W, 4 * Cout), lambda i: (i, 0, 0, 0))

    if fold_w2:
        AX = jnp.stack([jnp.dot(Acat[dy // 2], W2bd[dy % 2], precision=hi)
                        for dy in range(4)])                        # (4, Cin, 4C)
        BW = jnp.stack([jnp.dot(W1b_bd, W2bd[k2], precision=hi)
                        for k2 in range(2)])                        # (2, 2C, 4C)
        bias2 = jnp.stack([jnp.dot(bh_cat, W2bd[k2], precision=hi) + b2_cat
                           for k2 in range(2)])                     # (2, 1, 4C)
        kernel = _up_block_kernel_folded
        w_args = (AX.astype(cdt), BW.astype(cdt), bias2.astype(jnp.float32))
        w_specs = [
            pl.BlockSpec((4, Cin, 4 * Cout), lambda i: (0, 0, 0)),
            pl.BlockSpec((2, 2 * Cout, 4 * Cout), lambda i: (0, 0, 0)),
            pl.BlockSpec((2, 1, 4 * Cout), lambda i: (0, 0, 0)),
        ]
    else:
        kernel = _up_block_kernel_3dot
        w_args = (Acat.astype(cdt), W1b_bd.astype(cdt),
                  bh_cat.astype(jnp.float32), W2bd.astype(cdt),
                  b2_cat.astype(jnp.float32))
        w_specs = [
            pl.BlockSpec((2, Cin, 2 * Cout), lambda i: (0, 0, 0)),
            pl.BlockSpec((2 * Cout, 2 * Cout), lambda i: (0, 0)),
            pl.BlockSpec((1, 2 * Cout), lambda i: (0, 0)),
            pl.BlockSpec((2, 2 * Cout, 4 * Cout), lambda i: (0, 0, 0)),
            pl.BlockSpec((1, 4 * Cout), lambda i: (0, 0)),
        ]

    out_rows = pl.pallas_call(
        kernel,
        out_shape=jax.ShapeDtypeStruct((n_rows, 4, W, 4 * Cout), out_dtype),
        grid_spec=pltpu.PrefetchScalarGridSpec(
            num_scalar_prefetch=0,
            grid=grid,
            in_specs=act_specs + w_specs,
            out_specs=out_spec,
        ),
        compiler_params=pltpu.CompilerParams(
            dimension_semantics=("parallel",),
            vmem_limit_bytes=vmem_limit,
        ),
    )(x_rows, br_rows, *w_args)

    # out_rows[n*H+i, dy, j, dx*Cout+co] == out[n, 4i+dy, 4j+dx, co]:
    # NHWC is a free reshape; NCHW needs one standard channels-first transpose.
    out_nhwc = out_rows.reshape(N, 4 * H, 4 * W, Cout)
    if data_format == "nhwc":
        return out_nhwc
    return jnp.transpose(out_nhwc, (0, 3, 1, 2))


# ---------------------------------------------------------------------------
# Pure-JAX reference (mirrors PyTorch ConvTranspose2d / Conv2d semantics)
# ---------------------------------------------------------------------------
def _ref_forward(x_nchw, bridge_nchw, params):
    W_up, b_up, W_c, b_c, W_up2, b_up2 = params
    Cout = b_up.shape[0]

    def tconv2x2(x, w, b):  # x: NCHW, w: (Ci, Co, 2, 2)
        n, _, h, ww = x.shape
        y = jnp.einsum('nchw,cokl->nohkwl', x, w)
        y = y.reshape(n, w.shape[1], 2 * h, 2 * ww)
        return y + b[None, :, None, None]

    xu = tconv2x2(x_nchw, W_up, b_up)
    cat = jnp.concatenate([xu, bridge_nchw], axis=1)
    z = jnp.einsum('nchw,oc->nohw', cat, W_c.reshape(Cout, 2 * Cout))
    z = z + b_c[None, :, None, None]
    return tconv2x2(z, W_up2, b_up2)


if __name__ == "__main__":
    key = jax.random.PRNGKey(0)
    N, Cin, Cout, H, W = 2, 8, 4, 16, 16
    ks = jax.random.split(key, 8)

    x = jax.random.normal(ks[0], (N, Cin, H, W), jnp.float32)
    bridge = jax.random.normal(ks[1], (N, Cout, 2 * H, 2 * W), jnp.float32)

    # PyTorch layouts: ConvTranspose2d.weight = (in, out, kH, kW); Conv2d.weight = (out, in, 1, 1)
    W_up = 0.1 * jax.random.normal(ks[2], (Cin, Cout, 2, 2), jnp.float32)
    b_up = 0.1 * jax.random.normal(ks[3], (Cout,), jnp.float32)
    W_c = 0.1 * jax.random.normal(ks[4], (Cout, 2 * Cout, 1, 1), jnp.float32)
    b_c = 0.1 * jax.random.normal(ks[5], (Cout,), jnp.float32)
    W_up2 = 0.1 * jax.random.normal(ks[6], (Cout, Cout, 2, 2), jnp.float32)
    b_up2 = 0.1 * jax.random.normal(ks[7], (Cout,), jnp.float32)
    params = (W_up, b_up, W_c, b_c, W_up2, b_up2)

    ref = _ref_forward(x, bridge, params)

    # f32, NCHW (exact semantics of the PyTorch module), folded-W2 path.
    fwd = jax.jit(lambda a, b: unet_up_block(a, b, params))
    out = jax.block_until_ready(fwd(x, bridge))
    assert out.shape == (N, Cout, 4 * H, 4 * W), out.shape
    err = float(jnp.max(jnp.abs(out - ref)))
    assert err < 1e-3, "f32 folded mismatch, max abs err = %f" % err

    # 3-dot (unfolded) path with a multi-block grid.
    fwd3 = jax.jit(lambda a, b: unet_up_block(a, b, params, fold_w2=False,
                                              block_rows=8))
    out3 = jax.block_until_ready(fwd3(x, bridge))
    err3 = float(jnp.max(jnp.abs(out3 - ref)))
    assert err3 < 1e-3, "f32 3-dot mismatch, max abs err = %f" % err3

    # NHWC end-to-end path (no boundary transposes at all).
    fwd_nhwc = jax.jit(lambda a, b: unet_up_block(a, b, params, data_format="nhwc"))
    out_nhwc = jax.block_until_ready(
        fwd_nhwc(jnp.transpose(x, (0, 2, 3, 1)), jnp.transpose(bridge, (0, 2, 3, 1))))
    errh = float(jnp.max(jnp.abs(jnp.transpose(out_nhwc, (0, 3, 1, 2)) - ref)))
    assert errh < 1e-3, "nhwc mismatch, max abs err = %f" % errh

    # bf16-I/O variant (halves activation HBM traffic; accumulation stays f32).
    fwd_bf16 = jax.jit(lambda a, b: unet_up_block(a, b, params,
                                                  compute_dtype=jnp.bfloat16))
    out_bf16 = jax.block_until_ready(fwd_bf16(x, bridge))
    errb = float(jnp.max(jnp.abs(out_bf16 - ref)))
    assert errb < 6e-2, "bf16 mismatch, max abs err = %f" % errb

    print("KERNEL_OK")
</pallas_src>

<mosaic_0001>
module attributes {stable_mosaic.version = 11 : i64} {
  func.func @_up_block_kernel_folded(%arg0: i32, %arg1: memref<512x8xf32, #tpu.memory_space<vmem>>, %arg2: memref<32x2x16x8xf32, #tpu.memory_space<vmem>>, %arg3: memref<4x8x16xf32, #tpu.memory_space<vmem>>, %arg4: memref<2x8x16xf32, #tpu.memory_space<vmem>>, %arg5: memref<2x1x16xf32, #tpu.memory_space<vmem>>, %arg6: memref<32x4x16x16xf32, #tpu.memory_space<vmem>>) attributes {dimension_semantics = [#tpu.dimension_semantics<parallel>], iteration_bounds = array<i64: 1>, scalar_prefetch = 0 : i64, scratch_operands = 0 : i64, tpu.core_type = #tpu.core_type<tc>, window_params = [{transform_indices = @transform_0, window_bounds = array<i64: 512, 8>}, {transform_indices = @transform_1, window_bounds = array<i64: 32, 2, 16, 8>}, {pipeline_mode = #tpu.pipeline_mode<synchronous>, transform_indices = @transform_2, window_bounds = array<i64: 4, 8, 16>}, {pipeline_mode = #tpu.pipeline_mode<synchronous>, transform_indices = @transform_3, window_bounds = array<i64: 2, 8, 16>}, {pipeline_mode = #tpu.pipeline_mode<synchronous>, transform_indices = @transform_4, window_bounds = array<i64: 2, 1, 16>}, {transform_indices = @transform_5, window_bounds = array<i64: 32, 4, 16, 16>}]} {
    %c0 = arith.constant 0 : index
    %c0_0 = arith.constant 0 : index
    %0 = vector.load %arg1[%c0, %c0_0] : memref<512x8xf32, #tpu.memory_space<vmem>>, vector<512x8xf32>
    %c0_1 = arith.constant 0 : index
    %c0_2 = arith.constant 0 : index
    %c0_3 = arith.constant 0 : index
    %c0_4 = arith.constant 0 : index
    %1 = vector.load %arg2[%c0_1, %c0_2, %c0_3, %c0_4] : memref<32x2x16x8xf32, #tpu.memory_space<vmem>>, vector<32x1x16x8xf32>
    %2 = vector.shape_cast %1 : vector<32x1x16x8xf32> to vector<32x16x8xf32>
    %3 = vector.shape_cast %2 : vector<32x16x8xf32> to vector<512x8xf32>
    %c0_5 = arith.constant 0 : index
    %c0_6 = arith.constant 0 : index
    %c0_7 = arith.constant 0 : index
    %4 = vector.load %arg3[%c0_5, %c0_6, %c0_7] : memref<4x8x16xf32, #tpu.memory_space<vmem>>, vector<1x8x16xf32>
    %5 = vector.shape_cast %4 : vector<1x8x16xf32> to vector<8x16xf32>
    %cst = arith.constant dense<0.000000e+00> : vector<512x16xf32>
    %6 = tpu.matmul %0, %5, %cst {dimension_numbers = #tpu.dot_dimension_numbers<[1], [0], [0], [1], [0, 0, 1, 1], [], []>} : vector<512x8xf32>, vector<8x16xf32>, vector<512x16xf32> -> vector<512x16xf32>
    %c0_8 = arith.constant 0 : index
    %c0_9 = arith.constant 0 : index
    %c0_10 = arith.constant 0 : index
    %7 = vector.load %arg4[%c0_8, %c0_9, %c0_10] : memref<2x8x16xf32, #tpu.memory_space<vmem>>, vector<1x8x16xf32>
    %8 = vector.shape_cast %7 : vector<1x8x16xf32> to vector<8x16xf32>
    %cst_11 = arith.constant dense<0.000000e+00> : vector<512x16xf32>
    %9 = tpu.matmul %3, %8, %cst_11 {dimension_numbers = #tpu.dot_dimension_numbers<[1], [0], [0], [1], [0, 0, 1, 1], [], []>} : vector<512x8xf32>, vector<8x16xf32>, vector<512x16xf32> -> vector<512x16xf32>
    %10 = arith.addf %6, %9 : vector<512x16xf32>
    %c0_12 = arith.constant 0 : index
    %c0_13 = arith.constant 0 : index
    %c0_14 = arith.constant 0 : index
    %11 = vector.load %arg5[%c0_12, %c0_13, %c0_14] : memref<2x1x16xf32, #tpu.memory_space<vmem>>, vector<1x1x16xf32>
    %12 = vector.shape_cast %11 : vector<1x1x16xf32> to vector<1x16xf32>
    %13 = vector.broadcast %12 : vector<1x16xf32> to vector<512x16xf32>
    %14 = arith.addf %10, %13 : vector<512x16xf32>
    %15 = vector.shape_cast %14 : vector<512x16xf32> to vector<32x16x16xf32>
    %c0_15 = arith.constant 0 : index
    %c0_16 = arith.constant 0 : index
    %c0_17 = arith.constant 0 : index
    %c0_18 = arith.constant 0 : index
    %16 = vector.load %arg6[%c0_15, %c0_16, %c0_17, %c0_18] : memref<32x4x16x16xf32, #tpu.memory_space<vmem>>, vector<32x1x16x16xf32>
    %17 = vector.shape_cast %16 : vector<32x1x16x16xf32> to vector<32x16x16xf32>
    %18 = vector.shape_cast %15 : vector<32x16x16xf32> to vector<32x1x16x16xf32>
    tpu.vector_store %arg6[%c0_15, %c0_16, %c0_17, %c0_18], %18 {strides = array<i32>} : memref<32x4x16x16xf32, #tpu.memory_space<vmem>>, vector<32x1x16x16xf32>,
    %c1 = arith.constant 1 : index
    %c0_19 = arith.constant 0 : index
    %c0_20 = arith.constant 0 : index
    %19 = vector.load %arg3[%c1, %c0_19, %c0_20] : memref<4x8x16xf32, #tpu.memory_space<vmem>>, vector<1x8x16xf32>
    %20 = vector.shape_cast %19 : vector<1x8x16xf32> to vector<8x16xf32>
    %cst_21 = arith.constant dense<0.000000e+00> : vector<512x16xf32>
    %21 = tpu.matmul %0, %20, %cst_21 {dimension_numbers = #tpu.dot_dimension_numbers<[1], [0], [0], [1], [0, 0, 1, 1], [], []>} : vector<512x8xf32>, vector<8x16xf32>, vector<512x16xf32> -> vector<512x16xf32>
    %c1_22 = arith.constant 1 : index
    %c0_23 = arith.constant 0 : index
    %c0_24 = arith.constant 0 : index
    %22 = vector.load %arg4[%c1_22, %c0_23, %c0_24] : memref<2x8x16xf32, #tpu.memory_space<vmem>>, vector<1x8x16xf32>
    %23 = vector.shape_cast %22 : vector<1x8x16xf32> to vector<8x16xf32>
    %cst_25 = arith.constant dense<0.000000e+00> : vector<512x16xf32>
    %24 = tpu.matmul %3, %23, %cst_25 {dimension_numbers = #tpu.dot_dimension_numbers<[1], [0], [0], [1], [0, 0, 1, 1], [], []>} : vector<512x8xf32>, vector<8x16xf32>, vector<512x16xf32> -> vector<512x16xf32>
    %25 = arith.addf %21, %24 : vector<512x16xf32>
    %c1_26 = arith.constant 1 : index
    %c0_27 = arith.constant 0 : index
    %c0_28 = arith.constant 0 : index
    %26 = vector.load %arg5[%c1_26, %c0_27, %c0_28] : memref<2x1x16xf32, #tpu.memory_space<vmem>>, vector<1x1x16xf32>
    %27 = vector.shape_cast %26 : vector<1x1x16xf32> to vector<1x16xf32>
    %28 = vector.broadcast %27 : vector<1x16xf32> to vector<512x16xf32>
    %29 = arith.addf %25, %28 : vector<512x16xf32>
    %30 = vector.shape_cast %29 : vector<512x16xf32> to vector<32x16x16xf32>
    %c0_29 = arith.constant 0 : index
    %c1_30 = arith.constant 1 : index
    %c0_31 = arith.constant 0 : index
    %c0_32 = arith.constant 0 : index
    %31 = vector.load %arg6[%c0_29, %c1_30, %c0_31, %c0_32] : memref<32x4x16x16xf32, #tpu.memory_space<vmem>>, vector<32x1x16x16xf32>
    %32 = vector.shape_cast %31 : vector<32x1x16x16xf32> to vector<32x16x16xf32>
    %33 = vector.shape_cast %30 : vector<32x16x16xf32> to vector<32x1x16x16xf32>
    tpu.vector_store %arg6[%c0_29, %c1_30, %c0_31, %c0_32], %33 {strides = array<i32>} : memref<32x4x16x16xf32, #tpu.memory_space<vmem>>, vector<32x1x16x16xf32>,
    %c0_33 = arith.constant 0 : index
    %c1_34 = arith.constant 1 : index
    %c0_35 = arith.constant 0 : index
    %c0_36 = arith.constant 0 : index
    %34 = vector.load %arg2[%c0_33, %c1_34, %c0_35, %c0_36] : memref<32x2x16x8xf32, #tpu.memory_space<vmem>>, vector<32x1x16x8xf32>
    %35 = vector.shape_cast %34 : vector<32x1x16x8xf32> to vector<32x16x8xf32>
    %36 = vector.shape_cast %35 : vector<32x16x8xf32> to vector<512x8xf32>
    %c2 = arith.constant 2 : index
    %c0_37 = arith.constant 0 : index
    %c0_38 = arith.constant 0 : index
    %37 = vector.load %arg3[%c2, %c0_37, %c0_38] : memref<4x8x16xf32, #tpu.memory_space<vmem>>, vector<1x8x16xf32>
    %38 = vector.shape_cast %37 : vector<1x8x16xf32> to vector<8x16xf32>
    %cst_39 = arith.constant dense<0.000000e+00> : vector<512x16xf32>
    %39 = tpu.matmul %0, %38, %cst_39 {dimension_numbers = #tpu.dot_dimension_numbers<[1], [0], [0], [1], [0, 0, 1, 1], [], []>} : vector<512x8xf32>, vector<8x16xf32>, vector<512x16xf32> -> vector<512x16xf32>
    %c0_40 = arith.constant 0 : index
    %c0_41 = arith.constant 0 : index
    %c0_42 = arith.constant 0 : index
    %40 = vector.load %arg4[%c0_40, %c0_41, %c0_42] : memref<2x8x16xf32, #tpu.memory_space<vmem>>, vector<1x8x16xf32>
    %41 = vector.shape_cast %40 : vector<1x8x16xf32> to vector<8x16xf32>
    %cst_43 = arith.constant dense<0.000000e+00> : vector<512x16xf32>
    %42 = tpu.matmul %36, %41, %cst_43 {dimension_numbers = #tpu.dot_dimension_numbers<[1], [0], [0], [1], [0, 0, 1, 1], [], []>} : vector<512x8xf32>, vector<8x16xf32>, vector<512x16xf32> -> vector<512x16xf32>
    %43 = arith.addf %39, %42 : vector<512x16xf32>
    %c0_44 = arith.constant 0 : index
    %c0_45 = arith.constant 0 : index
    %c0_46 = arith.constant 0 : index
    %44 = vector.load %arg5[%c0_44, %c0_45, %c0_46] : memref<2x1x16xf32, #tpu.memory_space<vmem>>, vector<1x1x16xf32>
    %45 = vector.shape_cast %44 : vector<1x1x16xf32> to vector<1x16xf32>
    %46 = vector.broadcast %45 : vector<1x16xf32> to vector<512x16xf32>
    %47 = arith.addf %43, %46 : vector<512x16xf32>
    %48 = vector.shape_cast %47 : vector<512x16xf32> to vector<32x16x16xf32>
    %c0_47 = arith.constant 0 : index
    %c2_48 = arith.constant 2 : index
    %c0_49 = arith.constant 0 : index
    %c0_50 = arith.constant 0 : index
    %49 = vector.load %arg6[%c0_47, %c2_48, %c0_49, %c0_50] : memref<32x4x16x16xf32, #tpu.memory_space<vmem>>, vector<32x1x16x16xf32>
    %50 = vector.shape_cast %49 : vector<32x1x16x16xf32> to vector<32x16x16xf32>
    %51 = vector.shape_cast %48 : vector<32x16x16xf32> to vector<32x1x16x16xf32>
    tpu.vector_store %arg6[%c0_47, %c2_48, %c0_49, %c0_50], %51 {strides = array<i32>} : memref<32x4x16x16xf32, #tpu.memory_space<vmem>>, vector<32x1x16x16xf32>,
    %c3 = arith.constant 3 : index
    %c0_51 = arith.constant 0 : index
    %c0_52 = arith.constant 0 : index
    %52 = vector.load %arg3[%c3, %c0_51, %c0_52] : memref<4x8x16xf32, #tpu.memory_space<vmem>>, vector<1x8x16xf32>
    %53 = vector.shape_cast %52 : vector<1x8x16xf32> to vector<8x16xf32>
    %cst_53 = arith.constant dense<0.000000e+00> : vector<512x16xf32>
    %54 = tpu.matmul %0, %53, %cst_53 {dimension_numbers = #tpu.dot_dimension_numbers<[1], [0], [0], [1], [0, 0, 1, 1], [], []>} : vector<512x8xf32>, vector<8x16xf32>, vector<512x16xf32> -> vector<512x16xf32>
    %c1_54 = arith.constant 1 : index
    %c0_55 = arith.constant 0 : index
    %c0_56 = arith.constant 0 : index
    %55 = vector.load %arg4[%c1_54, %c0_55, %c0_56] : memref<2x8x16xf32, #tpu.memory_space<vmem>>, vector<1x8x16xf32>
    %56 = vector.shape_cast %55 : vector<1x8x16xf32> to vector<8x16xf32>
    %cst_57 = arith.constant dense<0.000000e+00> : vector<512x16xf32>
    %57 = tpu.matmul %36, %56, %cst_57 {dimension_numbers = #tpu.dot_dimension_numbers<[1], [0], [0], [1], [0, 0, 1, 1], [], []>} : vector<512x8xf32>, vector<8x16xf32>, vector<512x16xf32> -> vector<512x16xf32>
    %58 = arith.addf %54, %57 : vector<512x16xf32>
    %c1_58 = arith.constant 1 : index
    %c0_59 = arith.constant 0 : index
    %c0_60 = arith.constant 0 : index
    %59 = vector.load %arg5[%c1_58, %c0_59, %c0_60] : memref<2x1x16xf32, #tpu.memory_space<vmem>>, vector<1x1x16xf32>
    %60 = vector.shape_cast %59 : vector<1x1x16xf32> to vector<1x16xf32>
    %61 = vector.broadcast %60 : vector<1x16xf32> to vector<512x16xf32>
    %62 = arith.addf %58, %61 : vector<512x16xf32>
    %63 = vector.shape_cast %62 : vector<512x16xf32> to vector<32x16x16xf32>
    %c0_61 = arith.constant 0 : index
    %c3_62 = arith.constant 3 : index
    %c0_63 = arith.constant 0 : index
    %c0_64 = arith.constant 0 : index
    %64 = vector.load %arg6[%c0_61, %c3_62, %c0_63, %c0_64] : memref<32x4x16x16xf32, #tpu.memory_space<vmem>>, vector<32x1x16x16xf32>
    %65 = vector.shape_cast %64 : vector<32x1x16x16xf32> to vector<32x16x16xf32>
    %66 = vector.shape_cast %63 : vector<32x16x16xf32> to vector<32x1x16x16xf32>
    tpu.vector_store %arg6[%c0_61, %c3_62, %c0_63, %c0_64], %66 {strides = array<i32>} : memref<32x4x16x16xf32, #tpu.memory_space<vmem>>, vector<32x1x16x16xf32>,
    return
  }
  func.func @transform_0(%arg0: i32) -> (i32, i32) {
    %c0_i32 = arith.constant 0 : i32
    %c0_i32_0 = arith.constant 0 : i32
    return %arg0, %c0_i32 : i32, i32
  }
  func.func @transform_1(%arg0: i32) -> (i32, i32, i32, i32) {
    %c0_i32 = arith.constant 0 : i32
    %c0_i32_0 = arith.constant 0 : i32
    %c0_i32_1 = arith.constant 0 : i32
    %c0_i32_2 = arith.constant 0 : i32
    return %arg0, %c0_i32, %c0_i32_0, %c0_i32_1 : i32, i32, i32, i32
  }
  func.func @transform_2(%arg0: i32) -> (i32, i32, i32) {
    %c0_i32 = arith.constant 0 : i32
    %c0_i32_0 = arith.constant 0 : i32
    %c0_i32_1 = arith.constant 0 : i32
    %c0_i32_2 = arith.constant 0 : i32
    return %c0_i32, %c0_i32_0, %c0_i32_1 : i32, i32, i32
  }
  func.func @transform_3(%arg0: i32) -> (i32, i32, i32) {
    %c0_i32 = arith.constant 0 : i32
    %c0_i32_0 = arith.constant 0 : i32
    %c0_i32_1 = arith.constant 0 : i32
    %c0_i32_2 = arith.constant 0 : i32
    return %c0_i32, %c0_i32_0, %c0_i32_1 : i32, i32, i32
  }
  func.func @transform_4(%arg0: i32) -> (i32, i32, i32) {
    %c0_i32 = arith.constant 0 : i32
    %c0_i32_0 = arith.constant 0 : i32
    %c0_i32_1 = arith.constant 0 : i32
    %c0_i32_2 = arith.constant 0 : i32
    return %c0_i32, %c0_i32_0, %c0_i32_1 : i32, i32, i32
  }
  func.func @transform_5(%arg0: i32) -> (i32, i32, i32, i32) {
    %c0_i32 = arith.constant 0 : i32
    %c0_i32_0 = arith.constant 0 : i32
    %c0_i32_1 = arith.constant 0 : i32
    %c0_i32_2 = arith.constant 0 : i32
    return %arg0, %c0_i32, %c0_i32_0, %c0_i32_1 : i32, i32, i32, i32
  }
}

</mosaic_0001>

<llo_original>
// kernel: tile.12
$region0: #{tile.12}
  #allocation2 [shape = 's32[1]{0}', space=sflag, size = 0x4, scoped, tag = 'scoped memory for tile.12']
  %s0 = inlined_call_operand.hbm [shape: f32[4], index: 0, kind: input, shape index: {}]
  %s1 = inlined_call_operand.vmem [shape: f32[2,4], index: 1, kind: output, shape index: {}]
  $region1: #{tile.12} parent=0
    #allocation0 [shape = 'u8[512]{0}', space=vmem, size = 0x400, scoped, tag = 'operand span for operand 0']
    #allocation1 [shape = 's32[1]{0}', space=sflag, size = 0x4, scoped, tag = 'scoped memory for tile.12']
    %2 = vsyncpa [#allocation1], 0
    // Predicated region
    $region2: #{tile.12} parent=1 // pred_check
      _
    $region3: #{tile.12} parent=1 // pred_check_branch
      %4 = sbr.rel (0) target = $region5
    $region4: #{tile.12} parent=1 // pred_region
      %s6 = ssub.s32 16, 16
      %7 = vsyncadd [#allocation1], %s6
      %s9 = sshll.u32 [#allocation0], 4
      %s10 = int_to_ptr.vmem [resolvable:$true] %s9
      %12 = dma.hbm_to_vmem [thread:$0]  %s0, 16, %s10, [#allocation1]
    $region5: #{tile.12} parent=1 // pred_fallthru
      _
    // Predicated region
    $region6: #{tile.12} parent=1 // pred_check
      _
    $region7: #{tile.12} parent=1 // pred_check_branch
      %14 = sbr.rel (0) target = $region9
    $region8: #{tile.12} parent=1 // pred_region
      %15 = dma.done [#allocation1], 16
    $region9: #{tile.12} parent=1 // pred_fallthru
      _
    %v16 = vld [vmem:[#allocation0] ss:$0 sm:$0xff]
    %17 = vst [vmem:[%s1] sm:$0x3] %v16
    %18 = vsyncpa [#allocation1], 1

// kernel: tile.16
$region0: #{tile.16}
  #allocation2 [shape = 's32[1]{0}', space=sflag, size = 0x4, scoped, tag = 'scoped memory for tile.16']
  %s0 = inlined_call_operand.hbm [shape: f32[4], index: 0, kind: input, shape index: {}]
  %s1 = inlined_call_operand.vmem [shape: f32[4,4], index: 1, kind: output, shape index: {}]
  $region1: #{tile.16} parent=0
    #allocation0 [shape = 'u8[512]{0}', space=vmem, size = 0x400, scoped, tag = 'operand span for operand 0']
    #allocation1 [shape = 's32[1]{0}', space=sflag, size = 0x4, scoped, tag = 'scoped memory for tile.16']
    %2 = vsyncpa [#allocation1], 0
    // Predicated region
    $region2: #{tile.16} parent=1 // pred_check
      _
    $region3: #{tile.16} parent=1 // pred_check_branch
      %4 = sbr.rel (0) target = $region5
    $region4: #{tile.16} parent=1 // pred_region
      %s6 = ssub.s32 16, 16
      %7 = vsyncadd [#allocation1], %s6
      %s9 = sshll.u32 [#allocation0], 4
      %s10 = int_to_ptr.vmem [resolvable:$true] %s9
      %12 = dma.hbm_to_vmem [thread:$0]  %s0, 16, %s10, [#allocation1]
    $region5: #{tile.16} parent=1 // pred_fallthru
      _
    // Predicated region
    $region6: #{tile.16} parent=1 // pred_check
      _
    $region7: #{tile.16} parent=1 // pred_check_branch
      %14 = sbr.rel (0) target = $region9
    $region8: #{tile.16} parent=1 // pred_region
      %15 = dma.done [#allocation1], 16
    $region9: #{tile.16} parent=1 // pred_fallthru
      _
    %v16 = vld [vmem:[#allocation0] ss:$0 sm:$0xff]
    %17 = vst [vmem:[%s1] sm:$0xf] %v16
    %18 = vsyncpa [#allocation1], 1

// kernel: _lambda_.1
$region0: #{_lambda_.1}
  #allocation0 [shape = 'u32[]', space=smem, size = 0x4, offset = 0x4, fixed_abs, tag = 'smem constant byte address 0x4 - core index']
  #allocation1 [shape = 'u32[144,128]{1,0:T(1,128)}', space=vmem, size = 0x12000, scoped, tag = 'internal scratch']
  %s0 = inlined_call_operand.vmem [shape: f32[512,8], index: 0, kind: input, shape index: {}]
  %s1 = inlined_call_operand.vmem [shape: f32[32,2,16,8], index: 1, kind: input, shape index: {}]
  %s2 = inlined_call_operand.vmem [shape: f32[4,8,16], index: 2, kind: input, shape index: {}]
  %s3 = inlined_call_operand.vmem [shape: f32[2,8,16], index: 3, kind: input, shape index: {}]
  %s4 = inlined_call_operand.vmem [shape: f32[2,1,16], index: 4, kind: input, shape index: {}]
  %s5 = inlined_call_operand.vmem [shape: f32[32,4,16,16], index: 5, kind: output, shape index: {}]
  %s6 = sld [smem:[#allocation0]]
  $region30: #{_lambda_.1} parent=0
    _
  %s8 = ssub.s32 1, %s6
  %s9 = scalar_select 0, %s8, %s6
  // Predicated region
  $region2: #{_lambda_.1} parent=0 // pred_check
    _
  $region3: #{_lambda_.1} parent=0 // pred_check_branch
    %11 = sbr.rel (0) target = $region5
  $region4: #{_lambda_.1} parent=0 // pred_region
    _
  $region5: #{_lambda_.1} parent=0 // pred_fallthru
    _
  // Predicated region
  $region6: #{_lambda_.1} parent=0 // pred_check
    _
  $region7: #{_lambda_.1} parent=0 // pred_check_branch
    %13 = sbr.rel (0) target = $region9
  $region8: #{_lambda_.1} parent=0 // pred_region
    _
  $region9: #{_lambda_.1} parent=0 // pred_fallthru
    _
  // Predicated region
  $region10: #{_lambda_.1} parent=0 // pred_check
    _
  $region11: #{_lambda_.1} parent=0 // pred_check_branch
    %15 = sbr.rel (0) target = $region13
  $region12: #{_lambda_.1} parent=0 // pred_region
    _
  $region13: #{_lambda_.1} parent=0 // pred_fallthru
    _
  // Predicated region
  $region14: #{_lambda_.1} parent=0 // pred_check
    _
  $region15: #{_lambda_.1} parent=0 // pred_check_branch
    %17 = sbr.rel (0) target = $region17
  $region16: #{_lambda_.1} parent=0 // pred_region
    _
  $region17: #{_lambda_.1} parent=0 // pred_fallthru
    _
  // Predicated region
  $region18: #{_lambda_.1} parent=0 // pred_check
    _
  $region19: #{_lambda_.1} parent=0 // pred_check_branch
    %19 = sbr.rel (0) target = $region21
  $region20: #{_lambda_.1} parent=0 // pred_region
    _
  $region21: #{_lambda_.1} parent=0 // pred_fallthru
    _
  %v20 = vld [vmem:[%s0] sm:$0xff]
  %v21 = vld [vmem:[%s0 + $0x8] sm:$0xff]
  %v22 = vld [vmem:[%s0 + $0x10] sm:$0xff]
  %v23 = vld [vmem:[%s0 + $0x18] sm:$0xff]
  %v24 = vld [vmem:[%s0 + $0x20] sm:$0xff]
  %v25 = vld [vmem:[%s0 + $0x28] sm:$0xff]
  %v26 = vld [vmem:[%s0 + $0x30] sm:$0xff]
  %v27 = vld [vmem:[%s0 + $0x38] sm:$0xff]
  %v28 = vld [vmem:[%s0 + $0x40] sm:$0xff]
  %v29 = vld [vmem:[%s0 + $0x48] sm:$0xff]
  %v30 = vld [vmem:[%s0 + $0x50] sm:$0xff]
  %v31 = vld [vmem:[%s0 + $0x58] sm:$0xff]
  %v32 = vld [vmem:[%s0 + $0x60] sm:$0xff]
  %v33 = vld [vmem:[%s0 + $0x68] sm:$0xff]
  %v34 = vld [vmem:[%s0 + $0x70] sm:$0xff]
  %v35 = vld [vmem:[%s0 + $0x78] sm:$0xff]
  %v36 = vld [vmem:[%s0 + $0x80] sm:$0xff]
  %v37 = vld [vmem:[%s0 + $0x88] sm:$0xff]
  %v38 = vld [vmem:[%s0 + $0x90] sm:$0xff]
  %v39 = vld [vmem:[%s0 + $0x98] sm:$0xff]
  %v40 = vld [vmem:[%s0 + $0xa0] sm:$0xff]
  %v41 = vld [vmem:[%s0 + $0xa8] sm:$0xff]
  %v42 = vld [vmem:[%s0 + $0xb0] sm:$0xff]
  %v43 = vld [vmem:[%s0 + $0xb8] sm:$0xff]
  %v44 = vld [vmem:[%s0 + $0xc0] sm:$0xff]
  %v45 = vld [vmem:[%s0 + $0xc8] sm:$0xff]
  %v46 = vld [vmem:[%s0 + $0xd0] sm:$0xff]
  %v47 = vld [vmem:[%s0 + $0xd8] sm:$0xff]
  %v48 = vld [vmem:[%s0 + $0xe0] sm:$0xff]
  %v49 = vld [vmem:[%s0 + $0xe8] sm:$0xff]
  %v50 = vld [vmem:[%s0 + $0xf0] sm:$0xff]
  %v51 = vld [vmem:[%s0 + $0xf8] sm:$0xff]
  %v52 = vld [vmem:[%s0 + $0x100] sm:$0xff]
  %v53 = vld [vmem:[%s0 + $0x108] sm:$0xff]
  %v54 = vld [vmem:[%s0 + $0x110] sm:$0xff]
  %v55 = vld [vmem:[%s0 + $0x118] sm:$0xff]
  %v56 = vld [vmem:[%s0 + $0x120] sm:$0xff]
  %v57 = vld [vmem:[%s0 + $0x128] sm:$0xff]
  %v58 = vld [vmem:[%s0 + $0x130] sm:$0xff]
  %v59 = vld [vmem:[%s0 + $0x138] sm:$0xff]
  %v60 = vld [vmem:[%s0 + $0x140] sm:$0xff]
  %v61 = vld [vmem:[%s0 + $0x148] sm:$0xff]
  %v62 = vld [vmem:[%s0 + $0x150] sm:$0xff]
  %v63 = vld [vmem:[%s0 + $0x158] sm:$0xff]
  %v64 = vld [vmem:[%s0 + $0x160] sm:$0xff]
  %v65 = vld [vmem:[%s0 + $0x168] sm:$0xff]
  %v66 = vld [vmem:[%s0 + $0x170] sm:$0xff]
  %v67 = vld [vmem:[%s0 + $0x178] sm:$0xff]
  %v68 = vld [vmem:[%s0 + $0x180] sm:$0xff]
  %v69 = vld [vmem:[%s0 + $0x188] sm:$0xff]
  %v70 = vld [vmem:[%s0 + $0x190] sm:$0xff]
  %v71 = vld [vmem:[%s0 + $0x198] sm:$0xff]
  %v72 = vld [vmem:[%s0 + $0x1a0] sm:$0xff]
  %v73 = vld [vmem:[%s0 + $0x1a8] sm:$0xff]
  %v74 = vld [vmem:[%s0 + $0x1b0] sm:$0xff]
  %v75 = vld [vmem:[%s0 + $0x1b8] sm:$0xff]
  %v76 = vld [vmem:[%s0 + $0x1c0] sm:$0xff]
  %v77 = vld [vmem:[%s0 + $0x1c8] sm:$0xff]
  %v78 = vld [vmem:[%s0 + $0x1d0] sm:$0xff]
  %v79 = vld [vmem:[%s0 + $0x1d8] sm:$0xff]
  %v80 = vld [vmem:[%s0 + $0x1e0] sm:$0xff]
  %v81 = vld [vmem:[%s0 + $0x1e8] sm:$0xff]
  %v82 = vld [vmem:[%s0 + $0x1f0] sm:$0xff]
  %v83 = vld [vmem:[%s0 + $0x1f8] sm:$0xff]
  %v84 = vld [vmem:[%s1] sm:$0xff]
  %v85 = vld [vmem:[%s1 + $0x8] sm:$0xff]
  %v86 = vld [vmem:[%s1 + $0x20] sm:$0xff]
  %v87 = vld [vmem:[%s1 + $0x28] sm:$0xff]
  %v88 = vld [vmem:[%s1 + $0x40] sm:$0xff]
  %v89 = vld [vmem:[%s1 + $0x48] sm:$0xff]
  %v90 = vld [vmem:[%s1 + $0x60] sm:$0xff]
  %v91 = vld [vmem:[%s1 + $0x68] sm:$0xff]
  %v92 = vld [vmem:[%s1 + $0x80] sm:$0xff]
  %v93 = vld [vmem:[%s1 + $0x88] sm:$0xff]
  %v94 = vld [vmem:[%s1 + $0xa0] sm:$0xff]
  %v95 = vld [vmem:[%s1 + $0xa8] sm:$0xff]
  %v96 = vld [vmem:[%s1 + $0xc0] sm:$0xff]
  %v97 = vld [vmem:[%s1 + $0xc8] sm:$0xff]
  %v98 = vld [vmem:[%s1 + $0xe0] sm:$0xff]
  %v99 = vld [vmem:[%s1 + $0xe8] sm:$0xff]
  %v100 = vld [vmem:[%s1 + $0x100] sm:$0xff]
  %v101 = vld [vmem:[%s1 + $0x108] sm:$0xff]
  %v102 = vld [vmem:[%s1 + $0x120] sm:$0xff]
  %v103 = vld [vmem:[%s1 + $0x128] sm:$0xff]
  %v104 = vld [vmem:[%s1 + $0x140] sm:$0xff]
  %v105 = vld [vmem:[%s1 + $0x148] sm:$0xff]
  %v106 = vld [vmem:[%s1 + $0x160] sm:$0xff]
  %v107 = vld [vmem:[%s1 + $0x168] sm:$0xff]
  %v108 = vld [vmem:[%s1 + $0x180] sm:$0xff]
  %v109 = vld [vmem:[%s1 + $0x188] sm:$0xff]
  %v110 = vld [vmem:[%s1 + $0x1a0] sm:$0xff]
  %v111 = vld [vmem:[%s1 + $0x1a8] sm:$0xff]
  %v112 = vld [vmem:[%s1 + $0x1c0] sm:$0xff]
  %v113 = vld [vmem:[%s1 + $0x1c8] sm:$0xff]
  %v114 = vld [vmem:[%s1 + $0x1e0] sm:$0xff]
  %v115 = vld [vmem:[%s1 + $0x1e8] sm:$0xff]
  %v116 = vld [vmem:[%s1 + $0x200] sm:$0xff]
  %v117 = vld [vmem:[%s1 + $0x208] sm:$0xff]
  %v118 = vld [vmem:[%s1 + $0x220] sm:$0xff]
  %v119 = vld [vmem:[%s1 + $0x228] sm:$0xff]
  %v120 = vld [vmem:[%s1 + $0x240] sm:$0xff]
  %v121 = vld [vmem:[%s1 + $0x248] sm:$0xff]
  %v122 = vld [vmem:[%s1 + $0x260] sm:$0xff]
  %v123 = vld [vmem:[%s1 + $0x268] sm:$0xff]
  %v124 = vld [vmem:[%s1 + $0x280] sm:$0xff]
  %v125 = vld [vmem:[%s1 + $0x288] sm:$0xff]
  %v126 = vld [vmem:[%s1 + $0x2a0] sm:$0xff]
  %v127 = vld [vmem:[%s1 + $0x2a8] sm:$0xff]
  %v128 = vld [vmem:[%s1 + $0x2c0] sm:$0xff]
  %v129 = vld [vmem:[%s1 + $0x2c8] sm:$0xff]
  %v130 = vld [vmem:[%s1 + $0x2e0] sm:$0xff]
  %v131 = vld [vmem:[%s1 + $0x2e8] sm:$0xff]
  %v132 = vld [vmem:[%s1 + $0x300] sm:$0xff]
  %v133 = vld [vmem:[%s1 + $0x308] sm:$0xff]
  %v134 = vld [vmem:[%s1 + $0x320] sm:$0xff]
  %v135 = vld [vmem:[%s1 + $0x328] sm:$0xff]
  %v136 = vld [vmem:[%s1 + $0x340] sm:$0xff]
  %v137 = vld [vmem:[%s1 + $0x348] sm:$0xff]
  %v138 = vld [vmem:[%s1 + $0x360] sm:$0xff]
  %v139 = vld [vmem:[%s1 + $0x368] sm:$0xff]
  %v140 = vld [vmem:[%s1 + $0x380] sm:$0xff]
  %v141 = vld [vmem:[%s1 + $0x388] sm:$0xff]
  %v142 = vld [vmem:[%s1 + $0x3a0] sm:$0xff]
  %v143 = vld [vmem:[%s1 + $0x3a8] sm:$0xff]
  %v144 = vld [vmem:[%s1 + $0x3c0] sm:$0xff]
  %v145 = vld [vmem:[%s1 + $0x3c8] sm:$0xff]
  %v146 = vld [vmem:[%s1 + $0x3e0] sm:$0xff]
  %v147 = vld [vmem:[%s1 + $0x3e8] sm:$0xff]
  %v148 = vld [vmem:[%s2] sm:$0xff]
  %v149 = vld [vmem:[%s3] sm:$0xff]
  %vm150 = vcmask 64512
  %v152 = vsel %vm150, %v84, 0
  %v155 = vsel %vm150, %v85, 0
  %v158 = vsel %vm150, %v86, 0
  %v161 = vsel %vm150, %v87, 0
  %v164 = vsel %vm150, %v88, 0
  %v167 = vsel %vm150, %v89, 0
  %v170 = vsel %vm150, %v90, 0
  %v173 = vsel %vm150, %v91, 0
  %v176 = vsel %vm150, %v92, 0
  %v179 = vsel %vm150, %v93, 0
  %v182 = vsel %vm150, %v94, 0
  %v185 = vsel %vm150, %v95, 0
  %v188 = vsel %vm150, %v96, 0
  %v191 = vsel %vm150, %v97, 0
  %v194 = vsel %vm150, %v98, 0
  %v197 = vsel %vm150, %v99, 0
  %v200 = vsel %vm150, %v100, 0
  %v203 = vsel %vm150, %v101, 0
  %v206 = vsel %vm150, %v102, 0
  %v209 = vsel %vm150, %v103, 0
  %v212 = vsel %vm150, %v104, 0
  %v215 = vsel %vm150, %v105, 0
  %v218 = vsel %vm150, %v106, 0
  %v221 = vsel %vm150, %v107, 0
  %v224 = vsel %vm150, %v108, 0
  %v227 = vsel %vm150, %v109, 0
  %v230 = vsel %vm150, %v110, 0
  %v233 = vsel %vm150, %v111, 0
  %v236 = vsel %vm150, %v112, 0
  %v239 = vsel %vm150, %v113, 0
  %v242 = vsel %vm150, %v114, 0
  %v245 = vsel %vm150, %v115, 0
  %v248 = vsel %vm150, %v116, 0
  %v251 = vsel %vm150, %v117, 0
  %v254 = vsel %vm150, %v118, 0
  %v257 = vsel %vm150, %v119, 0
  %v260 = vsel %vm150, %v120, 0
  %v263 = vsel %vm150, %v121, 0
  %v266 = vsel %vm150, %v122, 0
  %v269 = vsel %vm150, %v123, 0
  %v272 = vsel %vm150, %v124, 0
  %v275 = vsel %vm150, %v125, 0
  %v278 = vsel %vm150, %v126, 0
  %v281 = vsel %vm150, %v127, 0
  %v284 = vsel %vm150, %v128, 0
  %v287 = vsel %vm150, %v129, 0
  %v290 = vsel %vm150, %v130, 0
  %v293 = vsel %vm150, %v131, 0
  %v296 = vsel %vm150, %v132, 0
  %v299 = vsel %vm150, %v133, 0
  %v302 = vsel %vm150, %v134, 0
  %v305 = vsel %vm150, %v135, 0
  %v308 = vsel %vm150, %v136, 0
  %v311 = vsel %vm150, %v137, 0
  %v314 = vsel %vm150, %v138, 0
  %v317 = vsel %vm150, %v139, 0
  %v320 = vsel %vm150, %v140, 0
  %v323 = vsel %vm150, %v141, 0
  %v326 = vsel %vm150, %v142, 0
  %v329 = vsel %vm150, %v143, 0
  %v332 = vsel %vm150, %v144, 0
  %v335 = vsel %vm150, %v145, 0
  %v338 = vsel %vm150, %v146, 0
  %v341 = vsel %vm150, %v147, 0
  %343 = vmatprep.subr.mxu0 0.0
  %344 = vmatpush1.msra.mxu0 %v149
  %345 = vmatprep.subr.mxu0 0.0
  %346 = vmatpush1.msra.mxu0 0.0
  %347 = vmatprep.subr.mxu0 0.0
  %348 = vmatpush1.msra.mxu0 0.0
  %349 = vmatprep.subr.mxu0 0.0
  %350 = vmatpush1.msra.mxu0 0.0
  %351 = vmatprep.subr.mxu0 0.0
  %352 = vmatpush1.msra.mxu0 0.0
  %353 = vmatprep.subr.mxu0 0.0
  %354 = vmatpush1.msra.mxu0 0.0
  %355 = vmatprep.subr.mxu0 0.0
  %356 = vmatpush1.msra.mxu0 0.0
  %357 = vmatprep.subr.mxu0 0.0
  %358 = vmatpush1.msra.mxu0 0.0
  %359 = vmatprep.subr.mxu0 0.0
  %360 = vmatpush1.msra.mxu0 0.0
  %361 = vmatprep.subr.mxu0 0.0
  %362 = vmatpush1.msra.mxu0 0.0
  %363 = vmatprep.subr.mxu0 0.0
  %364 = vmatpush1.msra.mxu0 0.0
  %365 = vmatprep.subr.mxu0 0.0
  %366 = vmatpush1.msra.mxu0 0.0
  %367 = vmatprep.subr.mxu0 0.0
  %368 = vmatpush1.msra.mxu0 0.0
  %369 = vmatprep.subr.mxu0 0.0
  %370 = vmatpush1.msra.mxu0 0.0
  %371 = vmatprep.subr.mxu0 0.0
  %372 = vmatpush1.msra.mxu0 0.0
  %373 = vmatprep.subr.mxu0 0.0
  %374 = vmatpush1.msra.mxu0 0.0
  %375 = vmatprep.subr.mxu0 0.0
  %376 = vmatpush1.msra.mxu0 0.0
  %377 = vmatprep.subr.mxu0 0.0
  %378 = vmatpush1.msra.mxu0 0.0
  %379 = vmatprep.subr.mxu0 0.0
  %380 = vmatpush1.msra.mxu0 0.0
  %381 = vmatprep.subr.mxu0 0.0
  %382 = vmatpush1.msra.mxu0 0.0
  %383 = vmatprep.subr.mxu0 0.0
  %384 = vmatpush1.msra.mxu0 0.0
  %385 = vmatprep.subr.mxu0 0.0
  %386 = vmatpush1.msra.mxu0 0.0
  %387 = vmatprep.subr.mxu0 0.0
  %388 = vmatpush1.msra.mxu0 0.0
  %389 = vmatprep.subr.mxu0 0.0
  %390 = vmatpush1.msra.mxu0 0.0
  %391 = vmatprep.subr.mxu0 0.0
  %392 = vmatpush1.msra.mxu0 0.0
  %393 = vmatprep.subr.mxu0 0.0
  %394 = vmatpush1.msra.mxu0 0.0
  %395 = vmatprep.subr.mxu0 0.0
  %396 = vmatpush1.msra.mxu0 0.0
  %397 = vmatprep.subr.mxu0 0.0
  %398 = vmatpush1.msra.mxu0 0.0
  %399 = vmatprep.subr.mxu0 0.0
  %400 = vmatpush1.msra.mxu0 0.0
  %401 = vmatprep.subr.mxu0 0.0
  %402 = vmatpush1.msra.mxu0 0.0
  %403 = vmatprep.subr.mxu0 0.0
  %404 = vmatpush1.msra.mxu0 0.0
  %405 = vmatprep.subr.mxu0 0.0
  %406 = vmatpush1.msra.mxu0 0.0
  %407 = vmatprep.mubr.f32.mxu0 0.0
  %408 = vmatmul.mubr.f32.gmra.mrb[0].mxu0 %v152
  %v409 = vpop.f32.mrb[0].mxu0
  %v410 = vadd.f32 0.0, %v409
  %v411 = vpop.f32.mrb[0].mxu0
  %412 = vmatprep.mubr.f32.mxu0 0.0
  %413 = vmatmul.mubr.f32.gmra.mrb[0].mxu0 %v155
  %v414 = vpop.f32.mrb[0].mxu0
  %v415 = vadd.f32 0.0, %v414
  %v416 = vpop.f32.mrb[0].mxu0
  %417 = vmatprep.mubr.f32.mxu0 0.0
  %418 = vmatmul.mubr.f32.gmra.mrb[0].mxu0 %v158
  %v419 = vpop.f32.mrb[0].mxu0
  %v420 = vadd.f32 0.0, %v419
  %v421 = vpop.f32.mrb[0].mxu0
  %422 = vmatprep.mubr.f32.mxu0 0.0
  %423 = vmatmul.mubr.f32.gmra.mrb[0].mxu0 %v161
  %v424 = vpop.f32.mrb[0].mxu0
  %v425 = vadd.f32 0.0, %v424
  %v426 = vpop.f32.mrb[0].mxu0
  %427 = vmatprep.mubr.f32.mxu0 0.0
  %428 = vmatmul.mubr.f32.gmra.mrb[0].mxu0 %v164
  %v429 = vpop.f32.mrb[0].mxu0
  %v430 = vadd.f32 0.0, %v429
  %v431 = vpop.f32.mrb[0].mxu0
  %432 = vmatprep.mubr.f32.mxu0 0.0
  %433 = vmatmul.mubr.f32.gmra.mrb[0].mxu0 %v167
  %v434 = vpop.f32.mrb[0].mxu0
  %v435 = vadd.f32 0.0, %v434
  %v436 = vpop.f32.mrb[0].mxu0
  %437 = vmatprep.mubr.f32.mxu0 0.0
  %438 = vmatmul.mubr.f32.gmra.mrb[0].mxu0 %v170
  %v439 = vpop.f32.mrb[0].mxu0
  %v440 = vadd.f32 0.0, %v439
  %v441 = vpop.f32.mrb[0].mxu0
  %442 = vmatprep.mubr.f32.mxu0 0.0
  %443 = vmatmul.mubr.f32.gmra.mrb[0].mxu0 %v173
  %v444 = vpop.f32.mrb[0].mxu0
  %v445 = vadd.f32 0.0, %v444
  %v446 = vpop.f32.mrb[0].mxu0
  %447 = vmatprep.mubr.f32.mxu0 0.0
  %448 = vmatmul.mubr.f32.gmra.mrb[0].mxu0 %v176
  %v449 = vpop.f32.mrb[0].mxu0
  %v450 = vadd.f32 0.0, %v449
  %v451 = vpop.f32.mrb[0].mxu0
  %452 = vmatprep.mubr.f32.mxu0 0.0
  %453 = vmatmul.mubr.f32.gmra.mrb[0].mxu0 %v179
  %v454 = vpop.f32.mrb[0].mxu0
  %v455 = vadd.f32 0.0, %v454
  %v456 = vpop.f32.mrb[0].mxu0
  %457 = vmatprep.mubr.f32.mxu0 0.0
  %458 = vmatmul.mubr.f32.gmra.mrb[0].mxu0 %v182
  %v459 = vpop.f32.mrb[0].mxu0
  %v460 = vadd.f32 0.0, %v459
  %v461 = vpop.f32.mrb[0].mxu0
  %462 = vmatprep.mubr.f32.mxu0 0.0
  %463 = vmatmul.mubr.f32.gmra.mrb[0].mxu0 %v185
  %v464 = vpop.f32.mrb[0].mxu0
  %v465 = vadd.f32 0.0, %v464
  %v466 = vpop.f32.mrb[0].mxu0
  %467 = vmatprep.mubr.f32.mxu0 0.0
  %468 = vmatmul.mubr.f32.gmra.mrb[0].mxu0 %v188
  %v469 = vpop.f32.mrb[0].mxu0
  %v470 = vadd.f32 0.0, %v469
  %v471 = vpop.f32.mrb[0].mxu0
  %472 = vmatprep.mubr.f32.mxu0 0.0
  %473 = vmatmul.mubr.f32.gmra.mrb[0].mxu0 %v191
  %v474 = vpop.f32.mrb[0].mxu0
  %v475 = vadd.f32 0.0, %v474
  %v476 = vpop.f32.mrb[0].mxu0
  %477 = vmatprep.mubr.f32.mxu0 0.0
  %478 = vmatmul.mubr.f32.gmra.mrb[0].mxu0 %v194
  %v479 = vpop.f32.mrb[0].mxu0
  %v480 = vadd.f32 0.0, %v479
  %v481 = vpop.f32.mrb[0].mxu0
  %482 = vmatprep.mubr.f32.mxu0 0.0
  %483 = vmatmul.mubr.f32.gmra.mrb[0].mxu0 %v197
  %v484 = vpop.f32.mrb[0].mxu0
  %v485 = vadd.f32 0.0, %v484
  %v486 = vpop.f32.mrb[0].mxu0
  %487 = vmatprep.mubr.f32.mxu0 0.0
  %488 = vmatmul.mubr.f32.gmra.mrb[0].mxu0 %v200
  %v489 = vpop.f32.mrb[0].mxu0
  %v490 = vadd.f32 0.0, %v489
  %v491 = vpop.f32.mrb[0].mxu0
  %492 = vmatprep.mubr.f32.mxu0 0.0
  %493 = vmatmul.mubr.f32.gmra.mrb[0].mxu0 %v203
  %v494 = vpop.f32.mrb[0].mxu0
  %v495 = vadd.f32 0.0, %v494
  %v496 = vpop.f32.mrb[0].mxu0
  %497 = vmatprep.mubr.f32.mxu0 0.0
  %498 = vmatmul.mubr.f32.gmra.mrb[0].mxu0 %v206
  %v499 = vpop.f32.mrb[0].mxu0
  %v500 = vadd.f32 0.0, %v499
  %v501 = vpop.f32.mrb[0].mxu0
  %502 = vmatprep.mubr.f32.mxu0 0.0
  %503 = vmatmul.mubr.f32.gmra.mrb[0].mxu0 %v209
  %v504 = vpop.f32.mrb[0].mxu0
  %v505 = vadd.f32 0.0, %v504
  %v506 = vpop.f32.mrb[0].mxu0
  %507 = vmatprep.mubr.f32.mxu0 0.0
  %508 = vmatmul.mubr.f32.gmra.mrb[0].mxu0 %v212
  %v509 = vpop.f32.mrb[0].mxu0
  %v510 = vadd.f32 0.0, %v509
  %v511 = vpop.f32.mrb[0].mxu0
  %512 = vmatprep.mubr.f32.mxu0 0.0
  %513 = vmatmul.mubr.f32.gmra.mrb[0].mxu0 %v215
  %v514 = vpop.f32.mrb[0].mxu0
  %v515 = vadd.f32 0.0, %v514
  %v516 = vpop.f32.mrb[0].mxu0
  %517 = vmatprep.mubr.f32.mxu0 0.0
  %518 = vmatmul.mubr.f32.gmra.mrb[0].mxu0 %v218
  %v519 = vpop.f32.mrb[0].mxu0
  %v520 = vadd.f32 0.0, %v519
  %v521 = vpop.f32.mrb[0].mxu0
  %522 = vmatprep.mubr.f32.mxu0 0.0
  %523 = vmatmul.mubr.f32.gmra.mrb[0].mxu0 %v221
  %v524 = vpop.f32.mrb[0].mxu0
  %v525 = vadd.f32 0.0, %v524
  %v526 = vpop.f32.mrb[0].mxu0
  %527 = vmatprep.mubr.f32.mxu0 0.0
  %528 = vmatmul.mubr.f32.gmra.mrb[0].mxu0 %v224
  %v529 = vpop.f32.mrb[0].mxu0
  %v530 = vadd.f32 0.0, %v529
  %v531 = vpop.f32.mrb[0].mxu0
  %532 = vmatprep.mubr.f32.mxu0 0.0
  %533 = vmatmul.mubr.f32.gmra.mrb[0].mxu0 %v227
  %v534 = vpop.f32.mrb[0].mxu0
  %v535 = vadd.f32 0.0, %v534
  %v536 = vpop.f32.mrb[0].mxu0
  %537 = vmatprep.mubr.f32.mxu0 0.0
  %538 = vmatmul.mubr.f32.gmra.mrb[0].mxu0 %v230
  %v539 = vpop.f32.mrb[0].mxu0
  %v540 = vadd.f32 0.0, %v539
  %v541 = vpop.f32.mrb[0].mxu0
  %542 = vmatprep.mubr.f32.mxu0 0.0
  %543 = vmatmul.mubr.f32.gmra.mrb[0].mxu0 %v233
  %v544 = vpop.f32.mrb[0].mxu0
  %v545 = vadd.f32 0.0, %v544
  %v546 = vpop.f32.mrb[0].mxu0
  %547 = vmatprep.mubr.f32.mxu0 0.0
  %548 = vmatmul.mubr.f32.gmra.mrb[0].mxu0 %v236
  %v549 = vpop.f32.mrb[0].mxu0
  %v550 = vadd.f32 0.0, %v549
  %v551 = vpop.f32.mrb[0].mxu0
  %552 = vmatprep.mubr.f32.mxu0 0.0
  %553 = vmatmul.mubr.f32.gmra.mrb[0].mxu0 %v239
  %v554 = vpop.f32.mrb[0].mxu0
  %v555 = vadd.f32 0.0, %v554
  %v556 = vpop.f32.mrb[0].mxu0
  %557 = vmatprep.mubr.f32.mxu0 0.0
  %558 = vmatmul.mubr.f32.gmra.mrb[0].mxu0 %v242
  %v559 = vpop.f32.mrb[0].mxu0
  %v560 = vadd.f32 0.0, %v559
  %v561 = vpop.f32.mrb[0].mxu0
  %562 = vmatprep.mubr.f32.mxu0 0.0
  %563 = vmatmul.mubr.f32.gmra.mrb[0].mxu0 %v245
  %v564 = vpop.f32.mrb[0].mxu0
  %v565 = vadd.f32 0.0, %v564
  %v566 = vpop.f32.mrb[0].mxu0
  %567 = vmatprep.mubr.f32.mxu0 0.0
  %568 = vmatmul.mubr.f32.gmra.mrb[0].mxu0 %v248
  %v569 = vpop.f32.mrb[0].mxu0
  %v570 = vadd.f32 0.0, %v569
  %v571 = vpop.f32.mrb[0].mxu0
  %572 = vmatprep.mubr.f32.mxu0 0.0
  %573 = vmatmul.mubr.f32.gmra.mrb[0].mxu0 %v251
  %v574 = vpop.f32.mrb[0].mxu0
  %v575 = vadd.f32 0.0, %v574
  %v576 = vpop.f32.mrb[0].mxu0
  %577 = vmatprep.mubr.f32.mxu0 0.0
  %578 = vmatmul.mubr.f32.gmra.mrb[0].mxu0 %v254
  %v579 = vpop.f32.mrb[0].mxu0
  %v580 = vadd.f32 0.0, %v579
  %v581 = vpop.f32.mrb[0].mxu0
  %582 = vmatprep.mubr.f32.mxu0 0.0
  %583 = vmatmul.mubr.f32.gmra.mrb[0].mxu0 %v257
  %v584 = vpop.f32.mrb[0].mxu0
  %v585 = vadd.f32 0.0, %v584
  %v586 = vpop.f32.mrb[0].mxu0
  %587 = vmatprep.mubr.f32.mxu0 0.0
  %588 = vmatmul.mubr.f32.gmra.mrb[0].mxu0 %v260
  %v589 = vpop.f32.mrb[0].mxu0
  %v590 = vadd.f32 0.0, %v589
  %v591 = vpop.f32.mrb[0].mxu0
  %592 = vmatprep.mubr.f32.mxu0 0.0
  %593 = vmatmul.mubr.f32.gmra.mrb[0].mxu0 %v263
  %v594 = vpop.f32.mrb[0].mxu0
  %v595 = vadd.f32 0.0, %v594
  %v596 = vpop.f32.mrb[0].mxu0
  %597 = vmatprep.mubr.f32.mxu0 0.0
  %598 = vmatmul.mubr.f32.gmra.mrb[0].mxu0 %v266
  %v599 = vpop.f32.mrb[0].mxu0
  %v600 = vadd.f32 0.0, %v599
  %v601 = vpop.f32.mrb[0].mxu0
  %602 = vmatprep.mubr.f32.mxu0 0.0
  %603 = vmatmul.mubr.f32.gmra.mrb[0].mxu0 %v269
  %v604 = vpop.f32.mrb[0].mxu0
  %v605 = vadd.f32 0.0, %v604
  %v606 = vpop.f32.mrb[0].mxu0
  %607 = vmatprep.mubr.f32.mxu0 0.0
  %608 = vmatmul.mubr.f32.gmra.mrb[0].mxu0 %v272
  %v609 = vpop.f32.mrb[0].mxu0
  %v610 = vadd.f32 0.0, %v609
  %v611 = vpop.f32.mrb[0].mxu0
  %612 = vmatprep.mubr.f32.mxu0 0.0
  %613 = vmatmul.mubr.f32.gmra.mrb[0].mxu0 %v275
  %v614 = vpop.f32.mrb[0].mxu0
  %v615 = vadd.f32 0.0, %v614
  %v616 = vpop.f32.mrb[0].mxu0
  %617 = vmatprep.mubr.f32.mxu0 0.0
  %618 = vmatmul.mubr.f32.gmra.mrb[0].mxu0 %v278
  %v619 = vpop.f32.mrb[0].mxu0
  %v620 = vadd.f32 0.0, %v619
  %v621 = vpop.f32.mrb[0].mxu0
  %622 = vmatprep.mubr.f32.mxu0 0.0
  %623 = vmatmul.mubr.f32.gmra.mrb[0].mxu0 %v281
  %v624 = vpop.f32.mrb[0].mxu0
  %v625 = vadd.f32 0.0, %v624
  %v626 = vpop.f32.mrb[0].mxu0
  %627 = vmatprep.mubr.f32.mxu0 0.0
  %628 = vmatmul.mubr.f32.gmra.mrb[0].mxu0 %v284
  %v629 = vpop.f32.mrb[0].mxu0
  %v630 = vadd.f32 0.0, %v629
  %v631 = vpop.f32.mrb[0].mxu0
  %632 = vmatprep.mubr.f32.mxu0 0.0
  %633 = vmatmul.mubr.f32.gmra.mrb[0].mxu0 %v287
  %v634 = vpop.f32.mrb[0].mxu0
  %v635 = vadd.f32 0.0, %v634
  %v636 = vpop.f32.mrb[0].mxu0
  %637 = vmatprep.mubr.f32.mxu0 0.0
  %638 = vmatmul.mubr.f32.gmra.mrb[0].mxu0 %v290
  %v639 = vpop.f32.mrb[0].mxu0
  %v640 = vadd.f32 0.0, %v639
  %v641 = vpop.f32.mrb[0].mxu0
  %642 = vmatprep.mubr.f32.mxu0 0.0
  %643 = vmatmul.mubr.f32.gmra.mrb[0].mxu0 %v293
  %v644 = vpop.f32.mrb[0].mxu0
  %v645 = vadd.f32 0.0, %v644
  %v646 = vpop.f32.mrb[0].mxu0
  %647 = vmatprep.mubr.f32.mxu0 0.0
  %648 = vmatmul.mubr.f32.gmra.mrb[0].mxu0 %v296
  %v649 = vpop.f32.mrb[0].mxu0
  %v650 = vadd.f32 0.0, %v649
  %v651 = vpop.f32.mrb[0].mxu0
  %652 = vmatprep.mubr.f32.mxu0 0.0
  %653 = vmatmul.mubr.f32.gmra.mrb[0].mxu0 %v299
  %v654 = vpop.f32.mrb[0].mxu0
  %v655 = vadd.f32 0.0, %v654
  %v656 = vpop.f32.mrb[0].mxu0
  %657 = vmatprep.mubr.f32.mxu0 0.0
  %658 = vmatmul.mubr.f32.gmra.mrb[0].mxu0 %v302
  %v659 = vpop.f32.mrb[0].mxu0
  %v660 = vadd.f32 0.0, %v659
  %v661 = vpop.f32.mrb[0].mxu0
  %662 = vmatprep.mubr.f32.mxu0 0.0
  %663 = vmatmul.mubr.f32.gmra.mrb[0].mxu0 %v305
  %v664 = vpop.f32.mrb[0].mxu0
  %v665 = vadd.f32 0.0, %v664
  %v666 = vpop.f32.mrb[0].mxu0
  %667 = vmatprep.mubr.f32.mxu0 0.0
  %668 = vmatmul.mubr.f32.gmra.mrb[0].mxu0 %v308
  %v669 = vpop.f32.mrb[0].mxu0
  %v670 = vadd.f32 0.0, %v669
  %v671 = vpop.f32.mrb[0].mxu0
  %672 = vmatprep.mubr.f32.mxu0 0.0
  %673 = vmatmul.mubr.f32.gmra.mrb[0].mxu0 %v311
  %v674 = vpop.f32.mrb[0].mxu0
  %v675 = vadd.f32 0.0, %v674
  %v676 = vpop.f32.mrb[0].mxu0
  %677 = vmatprep.mubr.f32.mxu0 0.0
  %678 = vmatmul.mubr.f32.gmra.mrb[0].mxu0 %v314
  %v679 = vpop.f32.mrb[0].mxu0
  %v680 = vadd.f32 0.0, %v679
  %v681 = vpop.f32.mrb[0].mxu0
  %682 = vmatprep.mubr.f32.mxu0 0.0
  %683 = vmatmul.mubr.f32.gmra.mrb[0].mxu0 %v317
  %v684 = vpop.f32.mrb[0].mxu0
  %v685 = vadd.f32 0.0, %v684
  %v686 = vpop.f32.mrb[0].mxu0
  %687 = vmatprep.mubr.f32.mxu0 0.0
  %688 = vmatmul.mubr.f32.gmra.mrb[0].mxu0 %v320
  %v689 = vpop.f32.mrb[0].mxu0
  %v690 = vadd.f32 0.0, %v689
  %v691 = vpop.f32.mrb[0].mxu0
  %692 = vmatprep.mubr.f32.mxu0 0.0
  %693 = vmatmul.mubr.f32.gmra.mrb[0].mxu0 %v323
  %v694 = vpop.f32.mrb[0].mxu0
  %v695 = vadd.f32 0.0, %v694
  %v696 = vpop.f32.mrb[0].mxu0
  %697 = vmatprep.mubr.f32.mxu0 0.0
  %698 = vmatmul.mubr.f32.gmra.mrb[0].mxu0 %v326
  %v699 = vpop.f32.mrb[0].mxu0
  %v700 = vadd.f32 0.0, %v699
  %v701 = vpop.f32.mrb[0].mxu0
  %702 = vmatprep.mubr.f32.mxu0 0.0
  %703 = vmatmul.mubr.f32.gmra.mrb[0].mxu0 %v329
  %v704 = vpop.f32.mrb[0].mxu0
  %v705 = vadd.f32 0.0, %v704
  %v706 = vpop.f32.mrb[0].mxu0
  %707 = vmatprep.mubr.f32.mxu0 0.0
  %708 = vmatmul.mubr.f32.gmra.mrb[0].mxu0 %v332
  %v709 = vpop.f32.mrb[0].mxu0
  %v710 = vadd.f32 0.0, %v709
  %v711 = vpop.f32.mrb[0].mxu0
  %712 = vmatprep.mubr.f32.mxu0 0.0
  %713 = vmatmul.mubr.f32.gmra.mrb[0].mxu0 %v335
  %v714 = vpop.f32.mrb[0].mxu0
  %v715 = vadd.f32 0.0, %v714
  %v716 = vpop.f32.mrb[0].mxu0
  %717 = vmatprep.mubr.f32.mxu0 0.0
  %718 = vmatmul.mubr.f32.gmra.mrb[0].mxu0 %v338
  %v719 = vpop.f32.mrb[0].mxu0
  %v720 = vadd.f32 0.0, %v719
  %v721 = vpop.f32.mrb[0].mxu0
  %722 = vmatprep.mubr.f32.mxu0 0.0
  %723 = vmatmul.mubr.f32.gmra.mrb[0].mxu0 %v341
  %v724 = vpop.f32.mrb[0].mxu0
  %v725 = vadd.f32 0.0, %v724
  %v726 = vpop.f32.mrb[0].mxu0
  %727 = vdwg.mxu0
  %v729 = vsel %vm150, %v20, 0
  %v732 = vsel %vm150, %v21, 0
  %v735 = vsel %vm150, %v22, 0
  %v738 = vsel %vm150, %v23, 0
  %v741 = vsel %vm150, %v24, 0
  %v744 = vsel %vm150, %v25, 0
  %v747 = vsel %vm150, %v26, 0
  %v750 = vsel %vm150, %v27, 0
  %v753 = vsel %vm150, %v28, 0
  %v756 = vsel %vm150, %v29, 0
  %v759 = vsel %vm150, %v30, 0
  %v762 = vsel %vm150, %v31, 0
  %v765 = vsel %vm150, %v32, 0
  %v768 = vsel %vm150, %v33, 0
  %v771 = vsel %vm150, %v34, 0
  %v774 = vsel %vm150, %v35, 0
  %v777 = vsel %vm150, %v36, 0
  %v780 = vsel %vm150, %v37, 0
  %v783 = vsel %vm150, %v38, 0
  %v786 = vsel %vm150, %v39, 0
  %v789 = vsel %vm150, %v40, 0
  %v792 = vsel %vm150, %v41, 0
  %v795 = vsel %vm150, %v42, 0
  %v798 = vsel %vm150, %v43, 0
  %v801 = vsel %vm150, %v44, 0
  %v804 = vsel %vm150, %v45, 0
  %v807 = vsel %vm150, %v46, 0
  %v810 = vsel %vm150, %v47, 0
  %v813 = vsel %vm150, %v48, 0
  %v816 = vsel %vm150, %v49, 0
  %v819 = vsel %vm150, %v50, 0
  %v822 = vsel %vm150, %v51, 0
  %v825 = vsel %vm150, %v52, 0
  %v828 = vsel %vm150, %v53, 0
  %v831 = vsel %vm150, %v54, 0
  %v834 = vsel %vm150, %v55, 0
  %v837 = vsel %vm150, %v56, 0
  %v840 = vsel %vm150, %v57, 0
  %v843 = vsel %vm150, %v58, 0
  %v846 = vsel %vm150, %v59, 0
  %v849 = vsel %vm150, %v60, 0
  %v852 = vsel %vm150, %v61, 0
  %v855 = vsel %vm150, %v62, 0
  %v858 = vsel %vm150, %v63, 0
  %v861 = vsel %vm150, %v64, 0
  %v864 = vsel %vm150, %v65, 0
  %v867 = vsel %vm150, %v66, 0
  %v870 = vsel %vm150, %v67, 0
  %v873 = vsel %vm150, %v68, 0
  %v876 = vsel %vm150, %v69, 0
  %v879 = vsel %vm150, %v70, 0
  %v882 = vsel %vm150, %v71, 0
  %v885 = vsel %vm150, %v72, 0
  %v888 = vsel %vm150, %v73, 0
  %v891 = vsel %vm150, %v74, 0
  %v894 = vsel %vm150, %v75, 0
  %v897 = vsel %vm150, %v76, 0
  %v900 = vsel %vm150, %v77, 0
  %v903 = vsel %vm150, %v78, 0
  %v906 = vsel %vm150, %v79, 0
  %v909 = vsel %vm150, %v80, 0
  %v912 = vsel %vm150, %v81, 0
  %v915 = vsel %vm150, %v82, 0
  %v918 = vsel %vm150, %v83, 0
  %920 = vmatprep.subr.mxu0 0.0
  %921 = vmatpush1.msra.mxu0 %v148
  %922 = vmatprep.subr.mxu0 0.0
  %923 = vmatpush1.msra.mxu0 0.0
  %924 = vmatprep.subr.mxu0 0.0
  %925 = vmatpush1.msra.mxu0 0.0
  %926 = vmatprep.subr.mxu0 0.0
  %927 = vmatpush1.msra.mxu0 0.0
  %928 = vmatprep.subr.mxu0 0.0
  %929 = vmatpush1.msra.mxu0 0.0
  %930 = vmatprep.subr.mxu0 0.0
  %931 = vmatpush1.msra.mxu0 0.0
  %932 = vmatprep.subr.mxu0 0.0
  %933 = vmatpush1.msra.mxu0 0.0
  %934 = vmatprep.subr.mxu0 0.0
  %935 = vmatpush1.msra.mxu0 0.0
  %936 = vmatprep.subr.mxu0 0.0
  %937 = vmatpush1.msra.mxu0 0.0
  %938 = vmatprep.subr.mxu0 0.0
  %939 = vmatpush1.msra.mxu0 0.0
  %940 = vmatprep.subr.mxu0 0.0
  %941 = vmatpush1.msra.mxu0 0.0
  %942 = vmatprep.subr.mxu0 0.0
  %943 = vmatpush1.msra.mxu0 0.0
  %944 = vmatprep.subr.mxu0 0.0
  %945 = vmatpush1.msra.mxu0 0.0
  %946 = vmatprep.subr.mxu0 0.0
  %947 = vmatpush1.msra.mxu0 0.0
  %948 = vmatprep.subr.mxu0 0.0
  %949 = vmatpush1.msra.mxu0 0.0
  %950 = vmatprep.subr.mxu0 0.0
  %951 = vmatpush1.msra.mxu0 0.0
  %952 = vmatprep.subr.mxu0 0.0
  %953 = vmatpush1.msra.mxu0 0.0
  %954 = vmatprep.subr.mxu0 0.0
  %955 = vmatpush1.msra.mxu0 0.0
  %956 = vmatprep.subr.mxu0 0.0
  %957 = vmatpush1.msra.mxu0 0.0
  %958 = vmatprep.subr.mxu0 0.0
  %959 = vmatpush1.msra.mxu0 0.0
  %960 = vmatprep.subr.mxu0 0.0
  %961 = vmatpush1.msra.mxu0 0.0
  %962 = vmatprep.subr.mxu0 0.0
  %963 = vmatpush1.msra.mxu0 0.0
  %964 = vmatprep.subr.mxu0 0.0
  %965 = vmatpush1.msra.mxu0 0.0
  %966 = vmatprep.subr.mxu0 0.0
  %967 = vmatpush1.msra.mxu0 0.0
  %968 = vmatprep.subr.mxu0 0.0
  %969 = vmatpush1.msra.mxu0 0.0
  %970 = vmatprep.subr.mxu0 0.0
  %971 = vmatpush1.msra.mxu0 0.0
  %972 = vmatprep.subr.mxu0 0.0
  %973 = vmatpush1.msra.mxu0 0.0
  %974 = vmatprep.subr.mxu0 0.0
  %975 = vmatpush1.msra.mxu0 0.0
  %976 = vmatprep.subr.mxu0 0.0
  %977 = vmatpush1.msra.mxu0 0.0
  %978 = vmatprep.subr.mxu0 0.0
  %979 = vmatpush1.msra.mxu0 0.0
  %980 = vmatprep.subr.mxu0 0.0
  %981 = vmatpush1.msra.mxu0 0.0
  %982 = vmatprep.subr.mxu0 0.0
  %983 = vmatpush1.msra.mxu0 0.0
  %984 = vmatprep.mubr.f32.mxu0 0.0
  %985 = vmatmul.mubr.f32.gmra.mrb[0].mxu0 %v729
  %v986 = vpop.f32.mrb[0].mxu0
  %v987 = vadd.f32 %v410, %v986
  %v988 = vpop.f32.mrb[0].mxu0
  %989 = vmatprep.mubr.f32.mxu0 0.0
  %990 = vmatmul.mubr.f32.gmra.mrb[0].mxu0 %v732
  %v991 = vpop.f32.mrb[0].mxu0
  %v992 = vadd.f32 %v415, %v991
  %v993 = vpop.f32.mrb[0].mxu0
  %994 = vmatprep.mubr.f32.mxu0 0.0
  %995 = vmatmul.mubr.f32.gmra.mrb[0].mxu0 %v735
  %v996 = vpop.f32.mrb[0].mxu0
  %v997 = vadd.f32 %v420, %v996
  %v998 = vpop.f32.mrb[0].mxu0
  %999 = vmatprep.mubr.f32.mxu0 0.0
  %1000 = vmatmul.mubr.f32.gmra.mrb[0].mxu0 %v738
  %v1001 = vpop.f32.mrb[0].mxu0
  %v1002 = vadd.f32 %v425, %v1001
  %v1003 = vpop.f32.mrb[0].mxu0
  %1004 = vmatprep.mubr.f32.mxu0 0.0
  %1005 = vmatmul.mubr.f32.gmra.mrb[0].mxu0 %v741
  %v1006 = vpop.f32.mrb[0].mxu0
  %v1007 = vadd.f32 %v430, %v1006
  %v1008 = vpop.f32.mrb[0].mxu0
  %1009 = vmatprep.mubr.f32.mxu0 0.0
  %1010 = vmatmul.mubr.f32.gmra.mrb[0].mxu0 %v744
  %v1011 = vpop.f32.mrb[0].mxu0
  %v1012 = vadd.f32 %v435, %v1011
  %v1013 = vpop.f32.mrb[0].mxu0
  %1014 = vmatprep.mubr.f32.mxu0 0.0
  %1015 = vmatmul.mubr.f32.gmra.mrb[0].mxu0 %v747
  %v1016 = vpop.f32.mrb[0].mxu0
  %v1017 = vadd.f32 %v440, %v1016
  %v1018 = vpop.f32.mrb[0].mxu0
  %1019 = vmatprep.mubr.f32.mxu0 0.0
  %1020 = vmatmul.mubr.f32.gmra.mrb[0].mxu0 %v750
  %v1021 = vpop.f32.mrb[0].mxu0
  %v1022 = vadd.f32 %v445, %v1021
  %v1023 = vpop.f32.mrb[0].mxu0
  %1024 = vmatprep.mubr.f32.mxu0 0.0
  %1025 = vmatmul.mubr.f32.gmra.mrb[0].mxu0 %v753
  %v1026 = vpop.f32.mrb[0].mxu0
  %v1027 = vadd.f32 %v450, %v1026
  %v1028 = vpop.f32.mrb[0].mxu0
  %1029 = vmatprep.mubr.f32.mxu0 0.0
  %1030 = vmatmul.mubr.f32.gmra.mrb[0].mxu0 %v756
  %v1031 = vpop.f32.mrb[0].mxu0
  %v1032 = vadd.f32 %v455, %v1031
  %v1033 = vpop.f32.mrb[0].mxu0
  %1034 = vmatprep.mubr.f32.mxu0 0.0
  %1035 = vmatmul.mubr.f32.gmra.mrb[0].mxu0 %v759
  %v1036 = vpop.f32.mrb[0].mxu0
  %v1037 = vadd.f32 %v460, %v1036
  %v1038 = vpop.f32.mrb[0].mxu0
  %1039 = vmatprep.mubr.f32.mxu0 0.0
  %1040 = vmatmul.mubr.f32.gmra.mrb[0].mxu0 %v762
  %v1041 = vpop.f32.mrb[0].mxu0
  %v1042 = vadd.f32 %v465, %v1041
  %v1043 = vpop.f32.mrb[0].mxu0
  %1044 = vmatprep.mubr.f32.mxu0 0.0
  %1045 = vmatmul.mubr.f32.gmra.mrb[0].mxu0 %v765
  %v1046 = vpop.f32.mrb[0].mxu0
  %v1047 = vadd.f32 %v470, %v1046
  %v1048 = vpop.f32.mrb[0].mxu0
  %1049 = vmatprep.mubr.f32.mxu0 0.0
  %1050 = vmatmul.mubr.f32.gmra.mrb[0].mxu0 %v768
  %v1051 = vpop.f32.mrb[0].mxu0
  %v1052 = vadd.f32 %v475, %v1051
  %v1053 = vpop.f32.mrb[0].mxu0
  %1054 = vmatprep.mubr.f32.mxu0 0.0
  %1055 = vmatmul.mubr.f32.gmra.mrb[0].mxu0 %v771
  %v1056 = vpop.f32.mrb[0].mxu0
  %v1057 = vadd.f32 %v480, %v1056
  %v1058 = vpop.f32.mrb[0].mxu0
  %1059 = vmatprep.mubr.f32.mxu0 0.0
  %1060 = vmatmul.mubr.f32.gmra.mrb[0].mxu0 %v774
  %v1061 = vpop.f32.mrb[0].mxu0
  %v1062 = vadd.f32 %v485, %v1061
  %v1063 = vpop.f32.mrb[0].mxu0
  %1064 = vmatprep.mubr.f32.mxu0 0.0
  %1065 = vmatmul.mubr.f32.gmra.mrb[0].mxu0 %v777
  %v1066 = vpop.f32.mrb[0].mxu0
  %v1067 = vadd.f32 %v490, %v1066
  %v1068 = vpop.f32.mrb[0].mxu0
  %1069 = vmatprep.mubr.f32.mxu0 0.0
  %1070 = vmatmul.mubr.f32.gmra.mrb[0].mxu0 %v780
  %v1071 = vpop.f32.mrb[0].mxu0
  %v1072 = vadd.f32 %v495, %v1071
  %v1073 = vpop.f32.mrb[0].mxu0
  %1074 = vmatprep.mubr.f32.mxu0 0.0
  %1075 = vmatmul.mubr.f32.gmra.mrb[0].mxu0 %v783
  %v1076 = vpop.f32.mrb[0].mxu0
  %v1077 = vadd.f32 %v500, %v1076
  %v1078 = vpop.f32.mrb[0].mxu0
  %1079 = vmatprep.mubr.f32.mxu0 0.0
  %1080 = vmatmul.mubr.f32.gmra.mrb[0].mxu0 %v786
  %v1081 = vpop.f32.mrb[0].mxu0
  %v1082 = vadd.f32 %v505, %v1081
  %v1083 = vpop.f32.mrb[0].mxu0
  %1084 = vmatprep.mubr.f32.mxu0 0.0
  %1085 = vmatmul.mubr.f32.gmra.mrb[0].mxu0 %v789
  %v1086 = vpop.f32.mrb[0].mxu0
  %v1087 = vadd.f32 %v510, %v1086
  %v1088 = vpop.f32.mrb[0].mxu0
  %1089 = vmatprep.mubr.f32.mxu0 0.0
  %1090 = vmatmul.mubr.f32.gmra.mrb[0].mxu0 %v792
  %v1091 = vpop.f32.mrb[0].mxu0
  %v1092 = vadd.f32 %v515, %v1091
  %v1093 = vpop.f32.mrb[0].mxu0
  %1094 = vmatprep.mubr.f32.mxu0 0.0
  %1095 = vmatmul.mubr.f32.gmra.mrb[0].mxu0 %v795
  %v1096 = vpop.f32.mrb[0].mxu0
  %v1097 = vadd.f32 %v520, %v1096
  %v1098 = vpop.f32.mrb[0].mxu0
  %1099 = vmatprep.mubr.f32.mxu0 0.0
  %1100 = vmatmul.mubr.f32.gmra.mrb[0].mxu0 %v798
  %v1101 = vpop.f32.mrb[0].mxu0
  %v1102 = vadd.f32 %v525, %v1101
  %v1103 = vpop.f32.mrb[0].mxu0
  %1104 = vmatprep.mubr.f32.mxu0 0.0
  %1105 = vmatmul.mubr.f32.gmra.mrb[0].mxu0 %v801
  %v1106 = vpop.f32.mrb[0].mxu0
  %v1107 = vadd.f32 %v530, %v1106
  %v1108 = vpop.f32.mrb[0].mxu0
  %1109 = vmatprep.mubr.f32.mxu0 0.0
  %1110 = vmatmul.mubr.f32.gmra.mrb[0].mxu0 %v804
  %v1111 = vpop.f32.mrb[0].mxu0
  %v1112 = vadd.f32 %v535, %v1111
  %v1113 = vpop.f32.mrb[0].mxu0
  %1114 = vmatprep.mubr.f32.mxu0 0.0
  %1115 = vmatmul.mubr.f32.gmra.mrb[0].mxu0 %v807
  %v1116 = vpop.f32.mrb[0].mxu0
  %v1117 = vadd.f32 %v540, %v1116
  %v1118 = vpop.f32.mrb[0].mxu0
  %1119 = vmatprep.mubr.f32.mxu0 0.0
  %1120 = vmatmul.mubr.f32.gmra.mrb[0].mxu0 %v810
  %v1121 = vpop.f32.mrb[0].mxu0
  %v1122 = vadd.f32 %v545, %v1121
  %v1123 = vpop.f32.mrb[0].mxu0
  %1124 = vmatprep.mubr.f32.mxu0 0.0
  %1125 = vmatmul.mubr.f32.gmra.mrb[0].mxu0 %v813
  %v1126 = vpop.f32.mrb[0].mxu0
  %v1127 = vadd.f32 %v550, %v1126
  %v1128 = vpop.f32.mrb[0].mxu0
  %1129 = vmatprep.mubr.f32.mxu0 0.0
  %1130 = vmatmul.mubr.f32.gmra.mrb[0].mxu0 %v816
  %v1131 = vpop.f32.mrb[0].mxu0
  %v1132 = vadd.f32 %v555, %v1131
  %v1133 = vpop.f32.mrb[0].mxu0
  %1134 = vmatprep.mubr.f32.mxu0 0.0
  %1135 = vmatmul.mubr.f32.gmra.mrb[0].mxu0 %v819
  %v1136 = vpop.f32.mrb[0].mxu0
  %v1137 = vadd.f32 %v560, %v1136
  %v1138 = vpop.f32.mrb[0].mxu0
  %1139 = vmatprep.mubr.f32.mxu0 0.0
  %1140 = vmatmul.mubr.f32.gmra.mrb[0].mxu0 %v822
  %v1141 = vpop.f32.mrb[0].mxu0
  %v1142 = vadd.f32 %v565, %v1141
  %v1143 = vpop.f32.mrb[0].mxu0
  %1144 = vmatprep.mubr.f32.mxu0 0.0
  %1145 = vmatmul.mubr.f32.gmra.mrb[0].mxu0 %v825
  %v1146 = vpop.f32.mrb[0].mxu0
  %v1147 = vadd.f32 %v570, %v1146
  %v1148 = vpop.f32.mrb[0].mxu0
  %1149 = vmatprep.mubr.f32.mxu0 0.0
  %1150 = vmatmul.mubr.f32.gmra.mrb[0].mxu0 %v828
  %v1151 = vpop.f32.mrb[0].mxu0
  %v1152 = vadd.f32 %v575, %v1151
  %v1153 = vpop.f32.mrb[0].mxu0
  %1154 = vmatprep.mubr.f32.mxu0 0.0
  %1155 = vmatmul.mubr.f32.gmra.mrb[0].mxu0 %v831
  %v1156 = vpop.f32.mrb[0].mxu0
  %v1157 = vadd.f32 %v580, %v1156
  %v1158 = vpop.f32.mrb[0].mxu0
  %1159 = vmatprep.mubr.f32.mxu0 0.0
  %1160 = vmatmul.mubr.f32.gmra.mrb[0].mxu0 %v834
  %v1161 = vpop.f32.mrb[0].mxu0
  %v1162 = vadd.f32 %v585, %v1161
  %v1163 = vpop.f32.mrb[0].mxu0
  %1164 = vmatprep.mubr.f32.mxu0 0.0
  %1165 = vmatmul.mubr.f32.gmra.mrb[0].mxu0 %v837
  %v1166 = vpop.f32.mrb[0].mxu0
  %v1167 = vadd.f32 %v590, %v1166
  %v1168 = vpop.f32.mrb[0].mxu0
  %1169 = vmatprep.mubr.f32.mxu0 0.0
  %1170 = vmatmul.mubr.f32.gmra.mrb[0].mxu0 %v840
  %v1171 = vpop.f32.mrb[0].mxu0
  %v1172 = vadd.f32 %v595, %v1171
  %v1173 = vpop.f32.mrb[0].mxu0
  %1174 = vmatprep.mubr.f32.mxu0 0.0
  %1175 = vmatmul.mubr.f32.gmra.mrb[0].mxu0 %v843
  %v1176 = vpop.f32.mrb[0].mxu0
  %v1177 = vadd.f32 %v600, %v1176
  %v1178 = vpop.f32.mrb[0].mxu0
  %1179 = vmatprep.mubr.f32.mxu0 0.0
  %1180 = vmatmul.mubr.f32.gmra.mrb[0].mxu0 %v846
  %v1181 = vpop.f32.mrb[0].mxu0
  %v1182 = vadd.f32 %v605, %v1181
  %v1183 = vpop.f32.mrb[0].mxu0
  %1184 = vmatprep.mubr.f32.mxu0 0.0
  %1185 = vmatmul.mubr.f32.gmra.mrb[0].mxu0 %v849
  %v1186 = vpop.f32.mrb[0].mxu0
  %v1187 = vadd.f32 %v610, %v1186
  %v1188 = vpop.f32.mrb[0].mxu0
  %1189 = vmatprep.mubr.f32.mxu0 0.0
  %1190 = vmatmul.mubr.f32.gmra.mrb[0].mxu0 %v852
  %v1191 = vpop.f32.mrb[0].mxu0
  %v1192 = vadd.f32 %v615, %v1191
  %v1193 = vpop.f32.mrb[0].mxu0
  %1194 = vmatprep.mubr.f32.mxu0 0.0
  %1195 = vmatmul.mubr.f32.gmra.mrb[0].mxu0 %v855
  %v1196 = vpop.f32.mrb[0].mxu0
  %v1197 = vadd.f32 %v620, %v1196
  %v1198 = vpop.f32.mrb[0].mxu0
  %1199 = vmatprep.mubr.f32.mxu0 0.0
  %1200 = vmatmul.mubr.f32.gmra.mrb[0].mxu0 %v858
  %v1201 = vpop.f32.mrb[0].mxu0
  %v1202 = vadd.f32 %v625, %v1201
  %v1203 = vpop.f32.mrb[0].mxu0
  %1204 = vmatprep.mubr.f32.mxu0 0.0
  %1205 = vmatmul.mubr.f32.gmra.mrb[0].mxu0 %v861
  %v1206 = vpop.f32.mrb[0].mxu0
  %v1207 = vadd.f32 %v630, %v1206
  %v1208 = vpop.f32.mrb[0].mxu0
  %1209 = vmatprep.mubr.f32.mxu0 0.0
  %1210 = vmatmul.mubr.f32.gmra.mrb[0].mxu0 %v864
  %v1211 = vpop.f32.mrb[0].mxu0
  %v1212 = vadd.f32 %v635, %v1211
  %v1213 = vpop.f32.mrb[0].mxu0
  %1214 = vmatprep.mubr.f32.mxu0 0.0
  %1215 = vmatmul.mubr.f32.gmra.mrb[0].mxu0 %v867
  %v1216 = vpop.f32.mrb[0].mxu0
  %v1217 = vadd.f32 %v640, %v1216
  %v1218 = vpop.f32.mrb[0].mxu0
  %1219 = vmatprep.mubr.f32.mxu0 0.0
  %1220 = vmatmul.mubr.f32.gmra.mrb[0].mxu0 %v870
  %v1221 = vpop.f32.mrb[0].mxu0
  %v1222 = vadd.f32 %v645, %v1221
  %v1223 = vpop.f32.mrb[0].mxu0
  %1224 = vmatprep.mubr.f32.mxu0 0.0
  %1225 = vmatmul.mubr.f32.gmra.mrb[0].mxu0 %v873
  %v1226 = vpop.f32.mrb[0].mxu0
  %v1227 = vadd.f32 %v650, %v1226
  %v1228 = vpop.f32.mrb[0].mxu0
  %1229 = vmatprep.mubr.f32.mxu0 0.0
  %1230 = vmatmul.mubr.f32.gmra.mrb[0].mxu0 %v876
  %v1231 = vpop.f32.mrb[0].mxu0
  %v1232 = vadd.f32 %v655, %v1231
  %v1233 = vpop.f32.mrb[0].mxu0
  %1234 = vmatprep.mubr.f32.mxu0 0.0
  %1235 = vmatmul.mubr.f32.gmra.mrb[0].mxu0 %v879
  %v1236 = vpop.f32.mrb[0].mxu0
  %v1237 = vadd.f32 %v660, %v1236
  %v1238 = vpop.f32.mrb[0].mxu0
  %1239 = vmatprep.mubr.f32.mxu0 0.0
  %1240 = vmatmul.mubr.f32.gmra.mrb[0].mxu0 %v882
  %v1241 = vpop.f32.mrb[0].mxu0
  %v1242 = vadd.f32 %v665, %v1241
  %v1243 = vpop.f32.mrb[0].mxu0
  %1244 = vmatprep.mubr.f32.mxu0 0.0
  %1245 = vmatmul.mubr.f32.gmra.mrb[0].mxu0 %v885
  %v1246 = vpop.f32.mrb[0].mxu0
  %v1247 = vadd.f32 %v670, %v1246
  %v1248 = vpop.f32.mrb[0].mxu0
  %1249 = vmatprep.mubr.f32.mxu0 0.0
  %1250 = vmatmul.mubr.f32.gmra.mrb[0].mxu0 %v888
  %v1251 = vpop.f32.mrb[0].mxu0
  %v1252 = vadd.f32 %v675, %v1251
  %v1253 = vpop.f32.mrb[0].mxu0
  %1254 = vmatprep.mubr.f32.mxu0 0.0
  %1255 = vmatmul.mubr.f32.gmra.mrb[0].mxu0 %v891
  %v1256 = vpop.f32.mrb[0].mxu0
  %v1257 = vadd.f32 %v680, %v1256
  %v1258 = vpop.f32.mrb[0].mxu0
  %1259 = vmatprep.mubr.f32.mxu0 0.0
  %1260 = vmatmul.mubr.f32.gmra.mrb[0].mxu0 %v894
  %v1261 = vpop.f32.mrb[0].mxu0
  %v1262 = vadd.f32 %v685, %v1261
  %v1263 = vpop.f32.mrb[0].mxu0
  %1264 = vmatprep.mubr.f32.mxu0 0.0
  %1265 = vmatmul.mubr.f32.gmra.mrb[0].mxu0 %v897
  %v1266 = vpop.f32.mrb[0].mxu0
  %v1267 = vadd.f32 %v690, %v1266
  %v1268 = vpop.f32.mrb[0].mxu0
  %1269 = vmatprep.mubr.f32.mxu0 0.0
  %1270 = vmatmul.mubr.f32.gmra.mrb[0].mxu0 %v900
  %v1271 = vpop.f32.mrb[0].mxu0
  %v1272 = vadd.f32 %v695, %v1271
  %v1273 = vpop.f32.mrb[0].mxu0
  %1274 = vmatprep.mubr.f32.mxu0 0.0
  %1275 = vmatmul.mubr.f32.gmra.mrb[0].mxu0 %v903
  %v1276 = vpop.f32.mrb[0].mxu0
  %v1277 = vadd.f32 %v700, %v1276
  %v1278 = vpop.f32.mrb[0].mxu0
  %1279 = vmatprep.mubr.f32.mxu0 0.0
  %1280 = vmatmul.mubr.f32.gmra.mrb[0].mxu0 %v906
  %v1281 = vpop.f32.mrb[0].mxu0
  %v1282 = vadd.f32 %v705, %v1281
  %v1283 = vpop.f32.mrb[0].mxu0
  %1284 = vmatprep.mubr.f32.mxu0 0.0
  %1285 = vmatmul.mubr.f32.gmra.mrb[0].mxu0 %v909
  %v1286 = vpop.f32.mrb[0].mxu0
  %v1287 = vadd.f32 %v710, %v1286
  %v1288 = vpop.f32.mrb[0].mxu0
  %1289 = vmatprep.mubr.f32.mxu0 0.0
  %1290 = vmatmul.mubr.f32.gmra.mrb[0].mxu0 %v912
  %v1291 = vpop.f32.mrb[0].mxu0
  %v1292 = vadd.f32 %v715, %v1291
  %v1293 = vpop.f32.mrb[0].mxu0
  %1294 = vmatprep.mubr.f32.mxu0 0.0
  %1295 = vmatmul.mubr.f32.gmra.mrb[0].mxu0 %v915
  %v1296 = vpop.f32.mrb[0].mxu0
  %v1297 = vadd.f32 %v720, %v1296
  %v1298 = vpop.f32.mrb[0].mxu0
  %1299 = vmatprep.mubr.f32.mxu0 0.0
  %1300 = vmatmul.mubr.f32.gmra.mrb[0].mxu0 %v918
  %v1301 = vpop.f32.mrb[0].mxu0
  %v1302 = vadd.f32 %v725, %v1301
  %v1303 = vpop.f32.mrb[0].mxu0
  %1304 = vdwg.mxu0
  %v1305 = vld [vmem:[%s4] sm:$0x1]
  %v1307 = vlaneseq
  %v1308 = vshrl.u32 %v1307, 7
  %v1309 = vsub.s32 0, %v1308
  %v1310 = vrot.slane %v1305, %v1309
  %v1312 = vadd.f32 %v987, %v1310
  %v1313 = vadd.f32 %v992, %v1310
  %v1314 = vadd.f32 %v997, %v1310
  %v1315 = vadd.f32 %v1002, %v1310
  %v1316 = vadd.f32 %v1007, %v1310
  %v1317 = vadd.f32 %v1012, %v1310
  %v1318 = vadd.f32 %v1017, %v1310
  %v1319 = vadd.f32 %v1022, %v1310
  %v1320 = vadd.f32 %v1027, %v1310
  %v1321 = vadd.f32 %v1032, %v1310
  %v1322 = vadd.f32 %v1037, %v1310
  %v1323 = vadd.f32 %v1042, %v1310
  %v1324 = vadd.f32 %v1047, %v1310
  %v1325 = vadd.f32 %v1052, %v1310
  %v1326 = vadd.f32 %v1057, %v1310
  %v1327 = vadd.f32 %v1062, %v1310
  %v1328 = vadd.f32 %v1067, %v1310
  %v1329 = vadd.f32 %v1072, %v1310
  %v1330 = vadd.f32 %v1077, %v1310
  %v1331 = vadd.f32 %v1082, %v1310
  %v1332 = vadd.f32 %v1087, %v1310
  %v1333 = vadd.f32 %v1092, %v1310
  %v1334 = vadd.f32 %v1097, %v1310
  %v1335 = vadd.f32 %v1102, %v1310
  %v1336 = vadd.f32 %v1107, %v1310
  %v1337 = vadd.f32 %v1112, %v1310
  %v1338 = vadd.f32 %v1117, %v1310
  %v1339 = vadd.f32 %v1122, %v1310
  %v1340 = vadd.f32 %v1127, %v1310
  %v1341 = vadd.f32 %v1132, %v1310
  %v1342 = vadd.f32 %v1137, %v1310
  %v1343 = vadd.f32 %v1142, %v1310
  %v1344 = vadd.f32 %v1147, %v1310
  %v1345 = vadd.f32 %v1152, %v1310
  %v1346 = vadd.f32 %v1157, %v1310
  %v1347 = vadd.f32 %v1162, %v1310
  %v1348 = vadd.f32 %v1167, %v1310
  %v1349 = vadd.f32 %v1172, %v1310
  %v1350 = vadd.f32 %v1177, %v1310
  %v1351 = vadd.f32 %v1182, %v1310
  %v1352 = vadd.f32 %v1187, %v1310
  %v1353 = vadd.f32 %v1192, %v1310
  %v1354 = vadd.f32 %v1197, %v1310
  %v1355 = vadd.f32 %v1202, %v1310
  %v1356 = vadd.f32 %v1207, %v1310
  %v1357 = vadd.f32 %v1212, %v1310
  %v1358 = vadd.f32 %v1217, %v1310
  %v1359 = vadd.f32 %v1222, %v1310
  %v1360 = vadd.f32 %v1227, %v1310
  %v1361 = vadd.f32 %v1232, %v1310
  %v1362 = vadd.f32 %v1237, %v1310
  %v1363 = vadd.f32 %v1242, %v1310
  %v1364 = vadd.f32 %v1247, %v1310
  %v1365 = vadd.f32 %v1252, %v1310
  %v1366 = vadd.f32 %v1257, %v1310
  %v1367 = vadd.f32 %v1262, %v1310
  %v1368 = vadd.f32 %v1267, %v1310
  %v1369 = vadd.f32 %v1272, %v1310
  %v1370 = vadd.f32 %v1277, %v1310
  %v1371 = vadd.f32 %v1282, %v1310
  %v1372 = vadd.f32 %v1287, %v1310
  %v1373 = vadd.f32 %v1292, %v1310
  %v1374 = vadd.f32 %v1297, %v1310
  %v1375 = vadd.f32 %v1302, %v1310
  %vm1376 = vcmask 130048
  %1377 = vst.msk [vmem:[%s5] sm:$0xff] %vm1376, %v1312
  %1378 = vst.msk [vmem:[%s5 + $0x8] sm:$0xff] %vm1376, %v1313
  %1379 = vst.msk [vmem:[%s5 + $0x40] sm:$0xff] %vm1376, %v1314
  %1380 = vst.msk [vmem:[%s5 + $0x48] sm:$0xff] %vm1376, %v1315
  %1381 = vst.msk [vmem:[%s5 + $0x80] sm:$0xff] %vm1376, %v1316
  %1382 = vst.msk [vmem:[%s5 + $0x88] sm:$0xff] %vm1376, %v1317
  %1383 = vst.msk [vmem:[%s5 + $0xc0] sm:$0xff] %vm1376, %v1318
  %1384 = vst.msk [vmem:[%s5 + $0xc8] sm:$0xff] %vm1376, %v1319
  %1385 = vst.msk [vmem:[%s5 + $0x100] sm:$0xff] %vm1376, %v1320
  %1386 = vst.msk [vmem:[%s5 + $0x108] sm:$0xff] %vm1376, %v1321
  %1387 = vst.msk [vmem:[%s5 + $0x140] sm:$0xff] %vm1376, %v1322
  %1388 = vst.msk [vmem:[%s5 + $0x148] sm:$0xff] %vm1376, %v1323
  %1389 = vst.msk [vmem:[%s5 + $0x180] sm:$0xff] %vm1376, %v1324
  %1390 = vst.msk [vmem:[%s5 + $0x188] sm:$0xff] %vm1376, %v1325
  %1391 = vst.msk [vmem:[%s5 + $0x1c0] sm:$0xff] %vm1376, %v1326
  %1392 = vst.msk [vmem:[%s5 + $0x1c8] sm:$0xff] %vm1376, %v1327
  %1393 = vst.msk [vmem:[%s5 + $0x200] sm:$0xff] %vm1376, %v1328
  %1394 = vst.msk [vmem:[%s5 + $0x208] sm:$0xff] %vm1376, %v1329
  %1395 = vst.msk [vmem:[%s5 + $0x240] sm:$0xff] %vm1376, %v1330
  %1396 = vst.msk [vmem:[%s5 + $0x248] sm:$0xff] %vm1376, %v1331
  %1397 = vst.msk [vmem:[%s5 + $0x280] sm:$0xff] %vm1376, %v1332
  %1398 = vst.msk [vmem:[%s5 + $0x288] sm:$0xff] %vm1376, %v1333
  %1399 = vst.msk [vmem:[%s5 + $0x2c0] sm:$0xff] %vm1376, %v1334
  %1400 = vst.msk [vmem:[%s5 + $0x2c8] sm:$0xff] %vm1376, %v1335
  %1401 = vst.msk [vmem:[%s5 + $0x300] sm:$0xff] %vm1376, %v1336
  %1402 = vst.msk [vmem:[%s5 + $0x308] sm:$0xff] %vm1376, %v1337
  %1403 = vst.msk [vmem:[%s5 + $0x340] sm:$0xff] %vm1376, %v1338
  %1404 = vst.msk [vmem:[%s5 + $0x348] sm:$0xff] %vm1376, %v1339
  %1405 = vst.msk [vmem:[%s5 + $0x380] sm:$0xff] %vm1376, %v1340
  %1406 = vst.msk [vmem:[%s5 + $0x388] sm:$0xff] %vm1376, %v1341
  %1407 = vst.msk [vmem:[%s5 + $0x3c0] sm:$0xff] %vm1376, %v1342
  %1408 = vst.msk [vmem:[%s5 + $0x3c8] sm:$0xff] %vm1376, %v1343
  %1409 = vst.msk [vmem:[%s5 + $0x400] sm:$0xff] %vm1376, %v1344
  %1410 = vst.msk [vmem:[%s5 + $0x408] sm:$0xff] %vm1376, %v1345
  %1411 = vst.msk [vmem:[%s5 + $0x440] sm:$0xff] %vm1376, %v1346
  %1412 = vst.msk [vmem:[%s5 + $0x448] sm:$0xff] %vm1376, %v1347
  %1413 = vst.msk [vmem:[%s5 + $0x480] sm:$0xff] %vm1376, %v1348
  %1414 = vst.msk [vmem:[%s5 + $0x488] sm:$0xff] %vm1376, %v1349
  %1415 = vst.msk [vmem:[%s5 + $0x4c0] sm:$0xff] %vm1376, %v1350
  %1416 = vst.msk [vmem:[%s5 + $0x4c8] sm:$0xff] %vm1376, %v1351
  %1417 = vst.msk [vmem:[%s5 + $0x500] sm:$0xff] %vm1376, %v1352
  %1418 = vst.msk [vmem:[%s5 + $0x508] sm:$0xff] %vm1376, %v1353
  %1419 = vst.msk [vmem:[%s5 + $0x540] sm:$0xff] %vm1376, %v1354
  %1420 = vst.msk [vmem:[%s5 + $0x548] sm:$0xff] %vm1376, %v1355
  %1421 = vst.msk [vmem:[%s5 + $0x580] sm:$0xff] %vm1376, %v1356
  %1422 = vst.msk [vmem:[%s5 + $0x588] sm:$0xff] %vm1376, %v1357
  %1423 = vst.msk [vmem:[%s5 + $0x5c0] sm:$0xff] %vm1376, %v1358
  %1424 = vst.msk [vmem:[%s5 + $0x5c8] sm:$0xff] %vm1376, %v1359
  %1425 = vst.msk [vmem:[%s5 + $0x600] sm:$0xff] %vm1376, %v1360
  %1426 = vst.msk [vmem:[%s5 + $0x608] sm:$0xff] %vm1376, %v1361
  %1427 = vst.msk [vmem:[%s5 + $0x640] sm:$0xff] %vm1376, %v1362
  %1428 = vst.msk [vmem:[%s5 + $0x648] sm:$0xff] %vm1376, %v1363
  %1429 = vst.msk [vmem:[%s5 + $0x680] sm:$0xff] %vm1376, %v1364
  %1430 = vst.msk [vmem:[%s5 + $0x688] sm:$0xff] %vm1376, %v1365
  %1431 = vst.msk [vmem:[%s5 + $0x6c0] sm:$0xff] %vm1376, %v1366
  %1432 = vst.msk [vmem:[%s5 + $0x6c8] sm:$0xff] %vm1376, %v1367
  %1433 = vst.msk [vmem:[%s5 + $0x700] sm:$0xff] %vm1376, %v1368
  %1434 = vst.msk [vmem:[%s5 + $0x708] sm:$0xff] %vm1376, %v1369
  %1435 = vst.msk [vmem:[%s5 + $0x740] sm:$0xff] %vm1376, %v1370
  %1436 = vst.msk [vmem:[%s5 + $0x748] sm:$0xff] %vm1376, %v1371
  %1437 = vst.msk [vmem:[%s5 + $0x780] sm:$0xff] %vm1376, %v1372
  %1438 = vst.msk [vmem:[%s5 + $0x788] sm:$0xff] %vm1376, %v1373
  %1439 = vst.msk [vmem:[%s5 + $0x7c0] sm:$0xff] %vm1376, %v1374
  %1440 = vst.msk [vmem:[%s5 + $0x7c8] sm:$0xff] %vm1376, %v1375
  %s1441 = scalar_lea.vmem %s2, 8
  %v1442 = vld [vmem:[%s1441] sm:$0xff]
  %s1443 = scalar_lea.vmem %s3, 8
  %v1444 = vld [vmem:[%s1443] sm:$0xff]
  %1445 = vmatprep.subr.mxu0 0.0
  %1446 = vmatpush1.msra.mxu0 %v1444
  %1447 = vmatprep.subr.mxu0 0.0
  %1448 = vmatpush1.msra.mxu0 0.0
  %1449 = vmatprep.subr.mxu0 0.0
  %1450 = vmatpush1.msra.mxu0 0.0
  %1451 = vmatprep.subr.mxu0 0.0
  %1452 = vmatpush1.msra.mxu0 0.0
  %1453 = vmatprep.subr.mxu0 0.0
  %1454 = vmatpush1.msra.mxu0 0.0
  %1455 = vmatprep.subr.mxu0 0.0
  %1456 = vmatpush1.msra.mxu0 0.0
  %1457 = vmatprep.subr.mxu0 0.0
  %1458 = vmatpush1.msra.mxu0 0.0
  %1459 = vmatprep.subr.mxu0 0.0
  %1460 = vmatpush1.msra.mxu0 0.0
  %1461 = vmatprep.subr.mxu0 0.0
  %1462 = vmatpush1.msra.mxu0 0.0
  %1463 = vmatprep.subr.mxu0 0.0
  %1464 = vmatpush1.msra.mxu0 0.0
  %1465 = vmatprep.subr.mxu0 0.0
  %1466 = vmatpush1.msra.mxu0 0.0
  %1467 = vmatprep.subr.mxu0 0.0
  %1468 = vmatpush1.msra.mxu0 0.0
  %1469 = vmatprep.subr.mxu0 0.0
  %1470 = vmatpush1.msra.mxu0 0.0
  %1471 = vmatprep.subr.mxu0 0.0
  %1472 = vmatpush1.msra.mxu0 0.0
  %1473 = vmatprep.subr.mxu0 0.0
  %1474 = vmatpush1.msra.mxu0 0.0
  %1475 = vmatprep.subr.mxu0 0.0
  %1476 = vmatpush1.msra.mxu0 0.0
  %1477 = vmatprep.subr.mxu0 0.0
  %1478 = vmatpush1.msra.mxu0 0.0
  %1479 = vmatprep.subr.mxu0 0.0
  %1480 = vmatpush1.msra.mxu0 0.0
  %1481 = vmatprep.subr.mxu0 0.0
  %1482 = vmatpush1.msra.mxu0 0.0
  %1483 = vmatprep.subr.mxu0 0.0
  %1484 = vmatpush1.msra.mxu0 0.0
  %1485 = vmatprep.subr.mxu0 0.0
  %1486 = vmatpush1.msra.mxu0 0.0
  %1487 = vmatprep.subr.mxu0 0.0
  %1488 = vmatpush1.msra.mxu0 0.0
  %1489 = vmatprep.subr.mxu0 0.0
  %1490 = vmatpush1.msra.mxu0 0.0
  %1491 = vmatprep.subr.mxu0 0.0
  %1492 = vmatpush1.msra.mxu0 0.0
  %1493 = vmatprep.subr.mxu0 0.0
  %1494 = vmatpush1.msra.mxu0 0.0
  %1495 = vmatprep.subr.mxu0 0.0
  %1496 = vmatpush1.msra.mxu0 0.0
  %1497 = vmatprep.subr.mxu0 0.0
  %1498 = vmatpush1.msra.mxu0 0.0
  %1499 = vmatprep.subr.mxu0 0.0
  %1500 = vmatpush1.msra.mxu0 0.0
  %1501 = vmatprep.subr.mxu0 0.0
  %1502 = vmatpush1.msra.mxu0 0.0
  %1503 = vmatprep.subr.mxu0 0.0
  %1504 = vmatpush1.msra.mxu0 0.0
  %1505 = vmatprep.subr.mxu0 0.0
  %1506 = vmatpush1.msra.mxu0 0.0
  %1507 = vmatprep.subr.mxu0 0.0
  %1508 = vmatpush1.msra.mxu0 0.0
  %1509 = vmatprep.mubr.f32.mxu0 0.0
  %1510 = vmatmul.mubr.f32.gmra.mrb[0].mxu0 %v152
  %v1511 = vpop.f32.mrb[0].mxu0
  %v1512 = vadd.f32 0.0, %v1511
  %v1513 = vpop.f32.mrb[0].mxu0
  %1514 = vmatprep.mubr.f32.mxu0 0.0
  %1515 = vmatmul.mubr.f32.gmra.mrb[0].mxu0 %v155
  %v1516 = vpop.f32.mrb[0].mxu0
  %v1517 = vadd.f32 0.0, %v1516
  %v1518 = vpop.f32.mrb[0].mxu0
  %1519 = vmatprep.mubr.f32.mxu0 0.0
  %1520 = vmatmul.mubr.f32.gmra.mrb[0].mxu0 %v158
  %v1521 = vpop.f32.mrb[0].mxu0
  %v1522 = vadd.f32 0.0, %v1521
  %v1523 = vpop.f32.mrb[0].mxu0
  %1524 = vmatprep.mubr.f32.mxu0 0.0
  %1525 = vmatmul.mubr.f32.gmra.mrb[0].mxu0 %v161
  %v1526 = vpop.f32.mrb[0].mxu0
  %v1527 = vadd.f32 0.0, %v1526
  %v1528 = vpop.f32.mrb[0].mxu0
  %1529 = vmatprep.mubr.f32.mxu0 0.0
  %1530 = vmatmul.mubr.f32.gmra.mrb[0].mxu0 %v164
  %v1531 = vpop.f32.mrb[0].mxu0
  %v1532 = vadd.f32 0.0, %v1531
  %v1533 = vpop.f32.mrb[0].mxu0
  %1534 = vmatprep.mubr.f32.mxu0 0.0
  %1535 = vmatmul.mubr.f32.gmra.mrb[0].mxu0 %v167
  %v1536 = vpop.f32.mrb[0].mxu0
  %v1537 = vadd.f32 0.0, %v1536
  %v1538 = vpop.f32.mrb[0].mxu0
  %1539 = vmatprep.mubr.f32.mxu0 0.0
  %1540 = vmatmul.mubr.f32.gmra.mrb[0].mxu0 %v170
  %v1541 = vpop.f32.mrb[0].mxu0
  %v1542 = vadd.f32 0.0, %v1541
  %v1543 = vpop.f32.mrb[0].mxu0
  %1544 = vmatprep.mubr.f32.mxu0 0.0
  %1545 = vmatmul.mubr.f32.gmra.mrb[0].mxu0 %v173
  %v1546 = vpop.f32.mrb[0].mxu0
  %v1547 = vadd.f32 0.0, %v1546
  %v1548 = vpop.f32.mrb[0].mxu0
  %1549 = vmatprep.mubr.f32.mxu0 0.0
  %1550 = vmatmul.mubr.f32.gmra.mrb[0].mxu0 %v176
  %v1551 = vpop.f32.mrb[0].mxu0
  %v1552 = vadd.f32 0.0, %v1551
  %v1553 = vpop.f32.mrb[0].mxu0
  %1554 = vmatprep.mubr.f32.mxu0 0.0
  %1555 = vmatmul.mubr.f32.gmra.mrb[0].mxu0 %v179
  %v1556 = vpop.f32.mrb[0].mxu0
  %v1557 = vadd.f32 0.0, %v1556
  %v1558 = vpop.f32.mrb[0].mxu0
  %1559 = vmatprep.mubr.f32.mxu0 0.0
  %1560 = vmatmul.mubr.f32.gmra.mrb[0].mxu0 %v182
  %v1561 = vpop.f32.mrb[0].mxu0
  %v1562 = vadd.f32 0.0, %v1561
  %v1563 = vpop.f32.mrb[0].mxu0
  %1564 = vmatprep.mubr.f32.mxu0 0.0
  %1565 = vmatmul.mubr.f32.gmra.mrb[0].mxu0 %v185
  %v1566 = vpop.f32.mrb[0].mxu0
  %v1567 = vadd.f32 0.0, %v1566
  %v1568 = vpop.f32.mrb[0].mxu0
  %1569 = vmatprep.mubr.f32.mxu0 0.0
  %1570 = vmatmul.mubr.f32.gmra.mrb[0].mxu0 %v188
  %v1571 = vpop.f32.mrb[0].mxu0
  %v1572 = vadd.f32 0.0, %v1571
  %v1573 = vpop.f32.mrb[0].mxu0
  %1574 = vmatprep.mubr.f32.mxu0 0.0
  %1575 = vmatmul.mubr.f32.gmra.mrb[0].mxu0 %v191
  %v1576 = vpop.f32.mrb[0].mxu0
  %v1577 = vadd.f32 0.0, %v1576
  %v1578 = vpop.f32.mrb[0].mxu0
  %1579 = vmatprep.mubr.f32.mxu0 0.0
  %1580 = vmatmul.mubr.f32.gmra.mrb[0].mxu0 %v194
  %v1581 = vpop.f32.mrb[0].mxu0
  %v1582 = vadd.f32 0.0, %v1581
  %v1583 = vpop.f32.mrb[0].mxu0
  %1584 = vmatprep.mubr.f32.mxu0 0.0
  %1585 = vmatmul.mubr.f32.gmra.mrb[0].mxu0 %v197
  %v1586 = vpop.f32.mrb[0].mxu0
  %v1587 = vadd.f32 0.0, %v1586
  %v1588 = vpop.f32.mrb[0].mxu0
  %1589 = vmatprep.mubr.f32.mxu0 0.0
  %1590 = vmatmul.mubr.f32.gmra.mrb[0].mxu0 %v200
  %v1591 = vpop.f32.mrb[0].mxu0
  %v1592 = vadd.f32 0.0, %v1591
  %v1593 = vpop.f32.mrb[0].mxu0
  %1594 = vmatprep.mubr.f32.mxu0 0.0
  %1595 = vmatmul.mubr.f32.gmra.mrb[0].mxu0 %v203
  %v1596 = vpop.f32.mrb[0].mxu0
  %v1597 = vadd.f32 0.0, %v1596
  %v1598 = vpop.f32.mrb[0].mxu0
  %1599 = vmatprep.mubr.f32.mxu0 0.0
  %1600 = vmatmul.mubr.f32.gmra.mrb[0].mxu0 %v206
  %v1601 = vpop.f32.mrb[0].mxu0
  %v1602 = vadd.f32 0.0, %v1601
  %v1603 = vpop.f32.mrb[0].mxu0
  %1604 = vmatprep.mubr.f32.mxu0 0.0
  %1605 = vmatmul.mubr.f32.gmra.mrb[0].mxu0 %v209
  %v1606 = vpop.f32.mrb[0].mxu0
  %v1607 = vadd.f32 0.0, %v1606
  %v1608 = vpop.f32.mrb[0].mxu0
  %1609 = vmatprep.mubr.f32.mxu0 0.0
  %1610 = vmatmul.mubr.f32.gmra.mrb[0].mxu0 %v212
  %v1611 = vpop.f32.mrb[0].mxu0
  %v1612 = vadd.f32 0.0, %v1611
  %v1613 = vpop.f32.mrb[0].mxu0
  %1614 = vmatprep.mubr.f32.mxu0 0.0
  %1615 = vmatmul.mubr.f32.gmra.mrb[0].mxu0 %v215
  %v1616 = vpop.f32.mrb[0].mxu0
  %v1617 = vadd.f32 0.0, %v1616
  %v1618 = vpop.f32.mrb[0].mxu0
  %1619 = vmatprep.mubr.f32.mxu0 0.0
  %1620 = vmatmul.mubr.f32.gmra.mrb[0].mxu0 %v218
  %v1621 = vpop.f32.mrb[0].mxu0
  %v1622 = vadd.f32 0.0, %v1621
  %v1623 = vpop.f32.mrb[0].mxu0
  %1624 = vmatprep.mubr.f32.mxu0 0.0
  %1625 = vmatmul.mubr.f32.gmra.mrb[0].mxu0 %v221
  %v1626 = vpop.f32.mrb[0].mxu0
  %v1627 = vadd.f32 0.0, %v1626
  %v1628 = vpop.f32.mrb[0].mxu0
  %1629 = vmatprep.mubr.f32.mxu0 0.0
  %1630 = vmatmul.mubr.f32.gmra.mrb[0].mxu0 %v224
  %v1631 = vpop.f32.mrb[0].mxu0
  %v1632 = vadd.f32 0.0, %v1631
  %v1633 = vpop.f32.mrb[0].mxu0
  %1634 = vmatprep.mubr.f32.mxu0 0.0
  %1635 = vmatmul.mubr.f32.gmra.mrb[0].mxu0 %v227
  %v1636 = vpop.f32.mrb[0].mxu0
  %v1637 = vadd.f32 0.0, %v1636
  %v1638 = vpop.f32.mrb[0].mxu0
  %1639 = vmatprep.mubr.f32.mxu0 0.0
  %1640 = vmatmul.mubr.f32.gmra.mrb[0].mxu0 %v230
  %v1641 = vpop.f32.mrb[0].mxu0
  %v1642 = vadd.f32 0.0, %v1641
  %v1643 = vpop.f32.mrb[0].mxu0
  %1644 = vmatprep.mubr.f32.mxu0 0.0
  %1645 = vmatmul.mubr.f32.gmra.mrb[0].mxu0 %v233
  %v1646 = vpop.f32.mrb[0].mxu0
  %v1647 = vadd.f32 0.0, %v1646
  %v1648 = vpop.f32.mrb[0].mxu0
  %1649 = vmatprep.mubr.f32.mxu0 0.0
  %1650 = vmatmul.mubr.f32.gmra.mrb[0].mxu0 %v236
  %v1651 = vpop.f32.mrb[0].mxu0
  %v1652 = vadd.f32 0.0, %v1651
  %v1653 = vpop.f32.mrb[0].mxu0
  %1654 = vmatprep.mubr.f32.mxu0 0.0
  %1655 = vmatmul.mubr.f32.gmra.mrb[0].mxu0 %v239
  %v1656 = vpop.f32.mrb[0].mxu0
  %v1657 = vadd.f32 0.0, %v1656
  %v1658 = vpop.f32.mrb[0].mxu0
  %1659 = vmatprep.mubr.f32.mxu0 0.0
  %1660 = vmatmul.mubr.f32.gmra.mrb[0].mxu0 %v242
  %v1661 = vpop.f32.mrb[0].mxu0
  %v1662 = vadd.f32 0.0, %v1661
  %v1663 = vpop.f32.mrb[0].mxu0
  %1664 = vmatprep.mubr.f32.mxu0 0.0
  %1665 = vmatmul.mubr.f32.gmra.mrb[0].mxu0 %v245
  %v1666 = vpop.f32.mrb[0].mxu0
  %v1667 = vadd.f32 0.0, %v1666
  %v1668 = vpop.f32.mrb[0].mxu0
  %1669 = vmatprep.mubr.f32.mxu0 0.0
  %1670 = vmatmul.mubr.f32.gmra.mrb[0].mxu0 %v248
  %v1671 = vpop.f32.mrb[0].mxu0
  %v1672 = vadd.f32 0.0, %v1671
  %v1673 = vpop.f32.mrb[0].mxu0
  %1674 = vmatprep.mubr.f32.mxu0 0.0
  %1675 = vmatmul.mubr.f32.gmra.mrb[0].mxu0 %v251
  %v1676 = vpop.f32.mrb[0].mxu0
  %v1677 = vadd.f32 0.0, %v1676
  %v1678 = vpop.f32.mrb[0].mxu0
  %1679 = vmatprep.mubr.f32.mxu0 0.0
  %1680 = vmatmul.mubr.f32.gmra.mrb[0].mxu0 %v254
  %v1681 = vpop.f32.mrb[0].mxu0
  %v1682 = vadd.f32 0.0, %v1681
  %v1683 = vpop.f32.mrb[0].mxu0
  %1684 = vmatprep.mubr.f32.mxu0 0.0
  %1685 = vmatmul.mubr.f32.gmra.mrb[0].mxu0 %v257
  %v1686 = vpop.f32.mrb[0].mxu0
  %v1687 = vadd.f32 0.0, %v1686
  %v1688 = vpop.f32.mrb[0].mxu0
  %1689 = vmatprep.mubr.f32.mxu0 0.0
  %1690 = vmatmul.mubr.f32.gmra.mrb[0].mxu0 %v260
  %v1691 = vpop.f32.mrb[0].mxu0
  %v1692 = vadd.f32 0.0, %v1691
  %v1693 = vpop.f32.mrb[0].mxu0
  %1694 = vmatprep.mubr.f32.mxu0 0.0
  %1695 = vmatmul.mubr.f32.gmra.mrb[0].mxu0 %v263
  %v1696 = vpop.f32.mrb[0].mxu0
  %v1697 = vadd.f32 0.0, %v1696
  %v1698 = vpop.f32.mrb[0].mxu0
  %1699 = vmatprep.mubr.f32.mxu0 0.0
  %1700 = vmatmul.mubr.f32.gmra.mrb[0].mxu0 %v266
  %v1701 = vpop.f32.mrb[0].mxu0
  %v1702 = vadd.f32 0.0, %v1701
  %v1703 = vpop.f32.mrb[0].mxu0
  %1704 = vmatprep.mubr.f32.mxu0 0.0
  %1705 = vmatmul.mubr.f32.gmra.mrb[0].mxu0 %v269
  %v1706 = vpop.f32.mrb[0].mxu0
  %v1707 = vadd.f32 0.0, %v1706
  %v1708 = vpop.f32.mrb[0].mxu0
  %1709 = vmatprep.mubr.f32.mxu0 0.0
  %1710 = vmatmul.mubr.f32.gmra.mrb[0].mxu0 %v272
  %v1711 = vpop.f32.mrb[0].mxu0
  %v1712 = vadd.f32 0.0, %v1711
  %v1713 = vpop.f32.mrb[0].mxu0
  %1714 = vmatprep.mubr.f32.mxu0 0.0
  %1715 = vmatmul.mubr.f32.gmra.mrb[0].mxu0 %v275
  %v1716 = vpop.f32.mrb[0].mxu0
  %v1717 = vadd.f32 0.0, %v1716
  %v1718 = vpop.f32.mrb[0].mxu0
  %1719 = vmatprep.mubr.f32.mxu0 0.0
  %1720 = vmatmul.mubr.f32.gmra.mrb[0].mxu0 %v278
  %v1721 = vpop.f32.mrb[0].mxu0
  %v1722 = vadd.f32 0.0, %v1721
  %v1723 = vpop.f32.mrb[0].mxu0
  %1724 = vmatprep.mubr.f32.mxu0 0.0
  %1725 = vmatmul.mubr.f32.gmra.mrb[0].mxu0 %v281
  %v1726 = vpop.f32.mrb[0].mxu0
  %v1727 = vadd.f32 0.0, %v1726
  %v1728 = vpop.f32.mrb[0].mxu0
  %1729 = vmatprep.mubr.f32.mxu0 0.0
  %1730 = vmatmul.mubr.f32.gmra.mrb[0].mxu0 %v284
  %v1731 = vpop.f32.mrb[0].mxu0
  %v1732 = vadd.f32 0.0, %v1731
  %v1733 = vpop.f32.mrb[0].mxu0
  %1734 = vmatprep.mubr.f32.mxu0 0.0
  %1735 = vmatmul.mubr.f32.gmra.mrb[0].mxu0 %v287
  %v1736 = vpop.f32.mrb[0].mxu0
  %v1737 = vadd.f32 0.0, %v1736
  %v1738 = vpop.f32.mrb[0].mxu0
  %1739 = vmatprep.mubr.f32.mxu0 0.0
  %1740 = vmatmul.mubr.f32.gmra.mrb[0].mxu0 %v290
  %v1741 = vpop.f32.mrb[0].mxu0
  %v1742 = vadd.f32 0.0, %v1741
  %v1743 = vpop.f32.mrb[0].mxu0
  %1744 = vmatprep.mubr.f32.mxu0 0.0
  %1745 = vmatmul.mubr.f32.gmra.mrb[0].mxu0 %v293
  %v1746 = vpop.f32.mrb[0].mxu0
  %v1747 = vadd.f32 0.0, %v1746
  %v1748 = vpop.f32.mrb[0].mxu0
  %1749 = vmatprep.mubr.f32.mxu0 0.0
  %1750 = vmatmul.mubr.f32.gmra.mrb[0].mxu0 %v296
  %v1751 = vpop.f32.mrb[0].mxu0
  %v1752 = vadd.f32 0.0, %v1751
  %v1753 = vpop.f32.mrb[0].mxu0
  %1754 = vmatprep.mubr.f32.mxu0 0.0
  %1755 = vmatmul.mubr.f32.gmra.mrb[0].mxu0 %v299
  %v1756 = vpop.f32.mrb[0].mxu0
  %v1757 = vadd.f32 0.0, %v1756
  %v1758 = vpop.f32.mrb[0].mxu0
  %1759 = vmatprep.mubr.f32.mxu0 0.0
  %1760 = vmatmul.mubr.f32.gmra.mrb[0].mxu0 %v302
  %v1761 = vpop.f32.mrb[0].mxu0
  %v1762 = vadd.f32 0.0, %v1761
  %v1763 = vpop.f32.mrb[0].mxu0
  %1764 = vmatprep.mubr.f32.mxu0 0.0
  %1765 = vmatmul.mubr.f32.gmra.mrb[0].mxu0 %v305
  %v1766 = vpop.f32.mrb[0].mxu0
  %v1767 = vadd.f32 0.0, %v1766
  %v1768 = vpop.f32.mrb[0].mxu0
  %1769 = vmatprep.mubr.f32.mxu0 0.0
  %1770 = vmatmul.mubr.f32.gmra.mrb[0].mxu0 %v308
  %v1771 = vpop.f32.mrb[0].mxu0
  %v1772 = vadd.f32 0.0, %v1771
  %v1773 = vpop.f32.mrb[0].mxu0
  %1774 = vmatprep.mubr.f32.mxu0 0.0
  %1775 = vmatmul.mubr.f32.gmra.mrb[0].mxu0 %v311
  %v1776 = vpop.f32.mrb[0].mxu0
  %v1777 = vadd.f32 0.0, %v1776
  %v1778 = vpop.f32.mrb[0].mxu0
  %1779 = vmatprep.mubr.f32.mxu0 0.0
  %1780 = vmatmul.mubr.f32.gmra.mrb[0].mxu0 %v314
  %v1781 = vpop.f32.mrb[0].mxu0
  %v1782 = vadd.f32 0.0, %v1781
  %v1783 = vpop.f32.mrb[0].mxu0
  %1784 = vmatprep.mubr.f32.mxu0 0.0
  %1785 = vmatmul.mubr.f32.gmra.mrb[0].mxu0 %v317
  %v1786 = vpop.f32.mrb[0].mxu0
  %v1787 = vadd.f32 0.0, %v1786
  %v1788 = vpop.f32.mrb[0].mxu0
  %1789 = vmatprep.mubr.f32.mxu0 0.0
  %1790 = vmatmul.mubr.f32.gmra.mrb[0].mxu0 %v320
  %v1791 = vpop.f32.mrb[0].mxu0
  %v1792 = vadd.f32 0.0, %v1791
  %v1793 = vpop.f32.mrb[0].mxu0
  %1794 = vmatprep.mubr.f32.mxu0 0.0
  %1795 = vmatmul.mubr.f32.gmra.mrb[0].mxu0 %v323
  %v1796 = vpop.f32.mrb[0].mxu0
  %v1797 = vadd.f32 0.0, %v1796
  %v1798 = vpop.f32.mrb[0].mxu0
  %1799 = vmatprep.mubr.f32.mxu0 0.0
  %1800 = vmatmul.mubr.f32.gmra.mrb[0].mxu0 %v326
  %v1801 = vpop.f32.mrb[0].mxu0
  %v1802 = vadd.f32 0.0, %v1801
  %v1803 = vpop.f32.mrb[0].mxu0
  %1804 = vmatprep.mubr.f32.mxu0 0.0
  %1805 = vmatmul.mubr.f32.gmra.mrb[0].mxu0 %v329
  %v1806 = vpop.f32.mrb[0].mxu0
  %v1807 = vadd.f32 0.0, %v1806
  %v1808 = vpop.f32.mrb[0].mxu0
  %1809 = vmatprep.mubr.f32.mxu0 0.0
  %1810 = vmatmul.mubr.f32.gmra.mrb[0].mxu0 %v332
  %v1811 = vpop.f32.mrb[0].mxu0
  %v1812 = vadd.f32 0.0, %v1811
  %v1813 = vpop.f32.mrb[0].mxu0
  %1814 = vmatprep.mubr.f32.mxu0 0.0
  %1815 = vmatmul.mubr.f32.gmra.mrb[0].mxu0 %v335
  %v1816 = vpop.f32.mrb[0].mxu0
  %v1817 = vadd.f32 0.0, %v1816
  %v1818 = vpop.f32.mrb[0].mxu0
  %1819 = vmatprep.mubr.f32.mxu0 0.0
  %1820 = vmatmul.mubr.f32.gmra.mrb[0].mxu0 %v338
  %v1821 = vpop.f32.mrb[0].mxu0
  %v1822 = vadd.f32 0.0, %v1821
  %v1823 = vpop.f32.mrb[0].mxu0
  %1824 = vmatprep.mubr.f32.mxu0 0.0
  %1825 = vmatmul.mubr.f32.gmra.mrb[0].mxu0 %v341
  %v1826 = vpop.f32.mrb[0].mxu0
  %v1827 = vadd.f32 0.0, %v1826
  %v1828 = vpop.f32.mrb[0].mxu0
  %1829 = vdwg.mxu0
  %1830 = vmatprep.subr.mxu0 0.0
  %1831 = vmatpush1.msra.mxu0 %v1442
  %1832 = vmatprep.subr.mxu0 0.0
  %1833 = vmatpush1.msra.mxu0 0.0
  %1834 = vmatprep.subr.mxu0 0.0
  %1835 = vmatpush1.msra.mxu0 0.0
  %1836 = vmatprep.subr.mxu0 0.0
  %1837 = vmatpush1.msra.mxu0 0.0
  %1838 = vmatprep.subr.mxu0 0.0
  %1839 = vmatpush1.msra.mxu0 0.0
  %1840 = vmatprep.subr.mxu0 0.0
  %1841 = vmatpush1.msra.mxu0 0.0
  %1842 = vmatprep.subr.mxu0 0.0
  %1843 = vmatpush1.msra.mxu0 0.0
  %1844 = vmatprep.subr.mxu0 0.0
  %1845 = vmatpush1.msra.mxu0 0.0
  %1846 = vmatprep.subr.mxu0 0.0
  %1847 = vmatpush1.msra.mxu0 0.0
  %1848 = vmatprep.subr.mxu0 0.0
  %1849 = vmatpush1.msra.mxu0 0.0
  %1850 = vmatprep.subr.mxu0 0.0
  %1851 = vmatpush1.msra.mxu0 0.0
  %1852 = vmatprep.subr.mxu0 0.0
  %1853 = vmatpush1.msra.mxu0 0.0
  %1854 = vmatprep.subr.mxu0 0.0
  %1855 = vmatpush1.msra.mxu0 0.0
  %1856 = vmatprep.subr.mxu0 0.0
  %1857 = vmatpush1.msra.mxu0 0.0
  %1858 = vmatprep.subr.mxu0 0.0
  %1859 = vmatpush1.msra.mxu0 0.0
  %1860 = vmatprep.subr.mxu0 0.0
  %1861 = vmatpush1.msra.mxu0 0.0
  %1862 = vmatprep.subr.mxu0 0.0
  %1863 = vmatpush1.msra.mxu0 0.0
  %1864 = vmatprep.subr.mxu0 0.0
  %1865 = vmatpush1.msra.mxu0 0.0
  %1866 = vmatprep.subr.mxu0 0.0
  %1867 = vmatpush1.msra.mxu0 0.0
  %1868 = vmatprep.subr.mxu0 0.0
  %1869 = vmatpush1.msra.mxu0 0.0
  %1870 = vmatprep.subr.mxu0 0.0
  %1871 = vmatpush1.msra.mxu0 0.0
  %1872 = vmatprep.subr.mxu0 0.0
  %1873 = vmatpush1.msra.mxu0 0.0
  %1874 = vmatprep.subr.mxu0 0.0
  %1875 = vmatpush1.msra.mxu0 0.0
  %1876 = vmatprep.subr.mxu0 0.0
  %1877 = vmatpush1.msra.mxu0 0.0
  %1878 = vmatprep.subr.mxu0 0.0
  %1879 = vmatpush1.msra.mxu0 0.0
  %1880 = vmatprep.subr.mxu0 0.0
  %1881 = vmatpush1.msra.mxu0 0.0
  %1882 = vmatprep.subr.mxu0 0.0
  %1883 = vmatpush1.msra.mxu0 0.0
  %1884 = vmatprep.subr.mxu0 0.0
  %1885 = vmatpush1.msra.mxu0 0.0
  %1886 = vmatprep.subr.mxu0 0.0
  %1887 = vmatpush1.msra.mxu0 0.0
  %1888 = vmatprep.subr.mxu0 0.0
  %1889 = vmatpush1.msra.mxu0 0.0
  %1890 = vmatprep.subr.mxu0 0.0
  %1891 = vmatpush1.msra.mxu0 0.0
  %1892 = vmatprep.subr.mxu0 0.0
  %1893 = vmatpush1.msra.mxu0 0.0
  %1894 = vmatprep.mubr.f32.mxu0 0.0
  %1895 = vmatmul.mubr.f32.gmra.mrb[0].mxu0 %v729
  %v1896 = vpop.f32.mrb[0].mxu0
  %v1897 = vadd.f32 %v1512, %v1896
  %v1898 = vpop.f32.mrb[0].mxu0
  %1899 = vmatprep.mubr.f32.mxu0 0.0
  %1900 = vmatmul.mubr.f32.gmra.mrb[0].mxu0 %v732
  %v1901 = vpop.f32.mrb[0].mxu0
  %v1902 = vadd.f32 %v1517, %v1901
  %v1903 = vpop.f32.mrb[0].mxu0
  %1904 = vmatprep.mubr.f32.mxu0 0.0
  %1905 = vmatmul.mubr.f32.gmra.mrb[0].mxu0 %v735
  %v1906 = vpop.f32.mrb[0].mxu0
  %v1907 = vadd.f32 %v1522, %v1906
  %v1908 = vpop.f32.mrb[0].mxu0
  %1909 = vmatprep.mubr.f32.mxu0 0.0
  %1910 = vmatmul.mubr.f32.gmra.mrb[0].mxu0 %v738
  %v1911 = vpop.f32.mrb[0].mxu0
  %v1912 = vadd.f32 %v1527, %v1911
  %v1913 = vpop.f32.mrb[0].mxu0
  %1914 = vmatprep.mubr.f32.mxu0 0.0
  %1915 = vmatmul.mubr.f32.gmra.mrb[0].mxu0 %v741
  %v1916 = vpop.f32.mrb[0].mxu0
  %v1917 = vadd.f32 %v1532, %v1916
  %v1918 = vpop.f32.mrb[0].mxu0
  %1919 = vmatprep.mubr.f32.mxu0 0.0
  %1920 = vmatmul.mubr.f32.gmra.mrb[0].mxu0 %v744
  %v1921 = vpop.f32.mrb[0].mxu0
  %v1922 = vadd.f32 %v1537, %v1921
  %v1923 = vpop.f32.mrb[0].mxu0
  %1924 = vmatprep.mubr.f32.mxu0 0.0
  %1925 = vmatmul.mubr.f32.gmra.mrb[0].mxu0 %v747
  %v1926 = vpop.f32.mrb[0].mxu0
  %v1927 = vadd.f32 %v1542, %v1926
  %v1928 = vpop.f32.mrb[0].mxu0
  %1929 = vmatprep.mubr.f32.mxu0 0.0
  %1930 = vmatmul.mubr.f32.gmra.mrb[0].mxu0 %v750
  %v1931 = vpop.f32.mrb[0].mxu0
  %v1932 = vadd.f32 %v1547, %v1931
  %v1933 = vpop.f32.mrb[0].mxu0
  %1934 = vmatprep.mubr.f32.mxu0 0.0
  %1935 = vmatmul.mubr.f32.gmra.mrb[0].mxu0 %v753
  %v1936 = vpop.f32.mrb[0].mxu0
  %v1937 = vadd.f32 %v1552, %v1936
  %v1938 = vpop.f32.mrb[0].mxu0
  %1939 = vmatprep.mubr.f32.mxu0 0.0
  %1940 = vmatmul.mubr.f32.gmra.mrb[0].mxu0 %v756
  %v1941 = vpop.f32.mrb[0].mxu0
  %v1942 = vadd.f32 %v1557, %v1941
  %v1943 = vpop.f32.mrb[0].mxu0
  %1944 = vmatprep.mubr.f32.mxu0 0.0
  %1945 = vmatmul.mubr.f32.gmra.mrb[0].mxu0 %v759
  %v1946 = vpop.f32.mrb[0].mxu0
  %v1947 = vadd.f32 %v1562, %v1946
  %v1948 = vpop.f32.mrb[0].mxu0
  %1949 = vmatprep.mubr.f32.mxu0 0.0
  %1950 = vmatmul.mubr.f32.gmra.mrb[0].mxu0 %v762
  %v1951 = vpop.f32.mrb[0].mxu0
  %v1952 = vadd.f32 %v1567, %v1951
  %v1953 = vpop.f32.mrb[0].mxu0
  %1954 = vmatprep.mubr.f32.mxu0 0.0
  %1955 = vmatmul.mubr.f32.gmra.mrb[0].mxu0 %v765
  %v1956 = vpop.f32.mrb[0].mxu0
  %v1957 = vadd.f32 %v1572, %v1956
  %v1958 = vpop.f32.mrb[0].mxu0
  %1959 = vmatprep.mubr.f32.mxu0 0.0
  %1960 = vmatmul.mubr.f32.gmra.mrb[0].mxu0 %v768
  %v1961 = vpop.f32.mrb[0].mxu0
  %v1962 = vadd.f32 %v1577, %v1961
  %v1963 = vpop.f32.mrb[0].mxu0
  %1964 = vmatprep.mubr.f32.mxu0 0.0
  %1965 = vmatmul.mubr.f32.gmra.mrb[0].mxu0 %v771
  %v1966 = vpop.f32.mrb[0].mxu0
  %v1967 = vadd.f32 %v1582, %v1966
  %v1968 = vpop.f32.mrb[0].mxu0
  %1969 = vmatprep.mubr.f32.mxu0 0.0
  %1970 = vmatmul.mubr.f32.gmra.mrb[0].mxu0 %v774
  %v1971 = vpop.f32.mrb[0].mxu0
  %v1972 = vadd.f32 %v1587, %v1971
  %v1973 = vpop.f32.mrb[0].mxu0
  %1974 = vmatprep.mubr.f32.mxu0 0.0
  %1975 = vmatmul.mubr.f32.gmra.mrb[0].mxu0 %v777
  %v1976 = vpop.f32.mrb[0].mxu0
  %v1977 = vadd.f32 %v1592, %v1976
  %v1978 = vpop.f32.mrb[0].mxu0
  %1979 = vmatprep.mubr.f32.mxu0 0.0
  %1980 = vmatmul.mubr.f32.gmra.mrb[0].mxu0 %v780
  %v1981 = vpop.f32.mrb[0].mxu0
  %v1982 = vadd.f32 %v1597, %v1981
  %v1983 = vpop.f32.mrb[0].mxu0
  %1984 = vmatprep.mubr.f32.mxu0 0.0
  %1985 = vmatmul.mubr.f32.gmra.mrb[0].mxu0 %v783
  %v1986 = vpop.f32.mrb[0].mxu0
  %v1987 = vadd.f32 %v1602, %v1986
  %v1988 = vpop.f32.mrb[0].mxu0
  %1989 = vmatprep.mubr.f32.mxu0 0.0
  %1990 = vmatmul.mubr.f32.gmra.mrb[0].mxu0 %v786
  %v1991 = vpop.f32.mrb[0].mxu0
  %v1992 = vadd.f32 %v1607, %v1991
  %v1993 = vpop.f32.mrb[0].mxu0
  %1994 = vmatprep.mubr.f32.mxu0 0.0
  %1995 = vmatmul.mubr.f32.gmra.mrb[0].mxu0 %v789
  %v1996 = vpop.f32.mrb[0].mxu0
  %v1997 = vadd.f32 %v1612, %v1996
  %v1998 = vpop.f32.mrb[0].mxu0
  %1999 = vmatprep.mubr.f32.mxu0 0.0
  %2000 = vmatmul.mubr.f32.gmra.mrb[0].mxu0 %v792
  %v2001 = vpop.f32.mrb[0].mxu0
  %v2002 = vadd.f32 %v1617, %v2001
  %v2003 = vpop.f32.mrb[0].mxu0
  %2004 = vmatprep.mubr.f32.mxu0 0.0
  %2005 = vmatmul.mubr.f32.gmra.mrb[0].mxu0 %v795
  %v2006 = vpop.f32.mrb[0].mxu0
  %v2007 = vadd.f32 %v1622, %v2006
  %v2008 = vpop.f32.mrb[0].mxu0
  %2009 = vmatprep.mubr.f32.mxu0 0.0
  %2010 = vmatmul.mubr.f32.gmra.mrb[0].mxu0 %v798
  %v2011 = vpop.f32.mrb[0].mxu0
  %v2012 = vadd.f32 %v1627, %v2011
  %v2013 = vpop.f32.mrb[0].mxu0
  %2014 = vmatprep.mubr.f32.mxu0 0.0
  %2015 = vmatmul.mubr.f32.gmra.mrb[0].mxu0 %v801
  %v2016 = vpop.f32.mrb[0].mxu0
  %v2017 = vadd.f32 %v1632, %v2016
  %v2018 = vpop.f32.mrb[0].mxu0
  %2019 = vmatprep.mubr.f32.mxu0 0.0
  %2020 = vmatmul.mubr.f32.gmra.mrb[0].mxu0 %v804
  %v2021 = vpop.f32.mrb[0].mxu0
  %v2022 = vadd.f32 %v1637, %v2021
  %v2023 = vpop.f32.mrb[0].mxu0
  %2024 = vmatprep.mubr.f32.mxu0 0.0
  %2025 = vmatmul.mubr.f32.gmra.mrb[0].mxu0 %v807
  %v2026 = vpop.f32.mrb[0].mxu0
  %v2027 = vadd.f32 %v1642, %v2026
  %v2028 = vpop.f32.mrb[0].mxu0
  %2029 = vmatprep.mubr.f32.mxu0 0.0
  %2030 = vmatmul.mubr.f32.gmra.mrb[0].mxu0 %v810
  %v2031 = vpop.f32.mrb[0].mxu0
  %v2032 = vadd.f32 %v1647, %v2031
  %v2033 = vpop.f32.mrb[0].mxu0
  %2034 = vmatprep.mubr.f32.mxu0 0.0
  %2035 = vmatmul.mubr.f32.gmra.mrb[0].mxu0 %v813
  %v2036 = vpop.f32.mrb[0].mxu0
  %v2037 = vadd.f32 %v1652, %v2036
  %v2038 = vpop.f32.mrb[0].mxu0
  %2039 = vmatprep.mubr.f32.mxu0 0.0
  %2040 = vmatmul.mubr.f32.gmra.mrb[0].mxu0 %v816
  %v2041 = vpop.f32.mrb[0].mxu0
  %v2042 = vadd.f32 %v1657, %v2041
  %v2043 = vpop.f32.mrb[0].mxu0
  %2044 = vmatprep.mubr.f32.mxu0 0.0
  %2045 = vmatmul.mubr.f32.gmra.mrb[0].mxu0 %v819
  %v2046 = vpop.f32.mrb[0].mxu0
  %v2047 = vadd.f32 %v1662, %v2046
  %v2048 = vpop.f32.mrb[0].mxu0
  %2049 = vmatprep.mubr.f32.mxu0 0.0
  %2050 = vmatmul.mubr.f32.gmra.mrb[0].mxu0 %v822
  %v2051 = vpop.f32.mrb[0].mxu0
  %v2052 = vadd.f32 %v1667, %v2051
  %v2053 = vpop.f32.mrb[0].mxu0
  %2054 = vmatprep.mubr.f32.mxu0 0.0
  %2055 = vmatmul.mubr.f32.gmra.mrb[0].mxu0 %v825
  %v2056 = vpop.f32.mrb[0].mxu0
  %v2057 = vadd.f32 %v1672, %v2056
  %v2058 = vpop.f32.mrb[0].mxu0
  %2059 = vmatprep.mubr.f32.mxu0 0.0
  %2060 = vmatmul.mubr.f32.gmra.mrb[0].mxu0 %v828
  %v2061 = vpop.f32.mrb[0].mxu0
  %v2062 = vadd.f32 %v1677, %v2061
  %v2063 = vpop.f32.mrb[0].mxu0
  %2064 = vmatprep.mubr.f32.mxu0 0.0
  %2065 = vmatmul.mubr.f32.gmra.mrb[0].mxu0 %v831
  %v2066 = vpop.f32.mrb[0].mxu0
  %v2067 = vadd.f32 %v1682, %v2066
  %v2068 = vpop.f32.mrb[0].mxu0
  %2069 = vmatprep.mubr.f32.mxu0 0.0
  %2070 = vmatmul.mubr.f32.gmra.mrb[0].mxu0 %v834
  %v2071 = vpop.f32.mrb[0].mxu0
  %v2072 = vadd.f32 %v1687, %v2071
  %v2073 = vpop.f32.mrb[0].mxu0
  %2074 = vmatprep.mubr.f32.mxu0 0.0
  %2075 = vmatmul.mubr.f32.gmra.mrb[0].mxu0 %v837
  %v2076 = vpop.f32.mrb[0].mxu0
  %v2077 = vadd.f32 %v1692, %v2076
  %v2078 = vpop.f32.mrb[0].mxu0
  %2079 = vmatprep.mubr.f32.mxu0 0.0
  %2080 = vmatmul.mubr.f32.gmra.mrb[0].mxu0 %v840
  %v2081 = vpop.f32.mrb[0].mxu0
  %v2082 = vadd.f32 %v1697, %v2081
  %v2083 = vpop.f32.mrb[0].mxu0
  %2084 = vmatprep.mubr.f32.mxu0 0.0
  %2085 = vmatmul.mubr.f32.gmra.mrb[0].mxu0 %v843
  %v2086 = vpop.f32.mrb[0].mxu0
  %v2087 = vadd.f32 %v1702, %v2086
  %v2088 = vpop.f32.mrb[0].mxu0
  %2089 = vmatprep.mubr.f32.mxu0 0.0
  %2090 = vmatmul.mubr.f32.gmra.mrb[0].mxu0 %v846
  %v2091 = vpop.f32.mrb[0].mxu0
  %v2092 = vadd.f32 %v1707, %v2091
  %v2093 = vpop.f32.mrb[0].mxu0
  %2094 = vmatprep.mubr.f32.mxu0 0.0
  %2095 = vmatmul.mubr.f32.gmra.mrb[0].mxu0 %v849
  %v2096 = vpop.f32.mrb[0].mxu0
  %v2097 = vadd.f32 %v1712, %v2096
  %v2098 = vpop.f32.mrb[0].mxu0
  %2099 = vmatprep.mubr.f32.mxu0 0.0
  %2100 = vmatmul.mubr.f32.gmra.mrb[0].mxu0 %v852
  %v2101 = vpop.f32.mrb[0].mxu0
  %v2102 = vadd.f32 %v1717, %v2101
  %v2103 = vpop.f32.mrb[0].mxu0
  %2104 = vmatprep.mubr.f32.mxu0 0.0
  %2105 = vmatmul.mubr.f32.gmra.mrb[0].mxu0 %v855
  %v2106 = vpop.f32.mrb[0].mxu0
  %v2107 = vadd.f32 %v1722, %v2106
  %v2108 = vpop.f32.mrb[0].mxu0
  %2109 = vmatprep.mubr.f32.mxu0 0.0
  %2110 = vmatmul.mubr.f32.gmra.mrb[0].mxu0 %v858
  %v2111 = vpop.f32.mrb[0].mxu0
  %v2112 = vadd.f32 %v1727, %v2111
  %v2113 = vpop.f32.mrb[0].mxu0
  %2114 = vmatprep.mubr.f32.mxu0 0.0
  %2115 = vmatmul.mubr.f32.gmra.mrb[0].mxu0 %v861
  %v2116 = vpop.f32.mrb[0].mxu0
  %v2117 = vadd.f32 %v1732, %v2116
  %v2118 = vpop.f32.mrb[0].mxu0
  %2119 = vmatprep.mubr.f32.mxu0 0.0
  %2120 = vmatmul.mubr.f32.gmra.mrb[0].mxu0 %v864
  %v2121 = vpop.f32.mrb[0].mxu0
  %v2122 = vadd.f32 %v1737, %v2121
  %v2123 = vpop.f32.mrb[0].mxu0
  %2124 = vmatprep.mubr.f32.mxu0 0.0
  %2125 = vmatmul.mubr.f32.gmra.mrb[0].mxu0 %v867
  %v2126 = vpop.f32.mrb[0].mxu0
  %v2127 = vadd.f32 %v1742, %v2126
  %v2128 = vpop.f32.mrb[0].mxu0
  %2129 = vmatprep.mubr.f32.mxu0 0.0
  %2130 = vmatmul.mubr.f32.gmra.mrb[0].mxu0 %v870
  %v2131 = vpop.f32.mrb[0].mxu0
  %v2132 = vadd.f32 %v1747, %v2131
  %v2133 = vpop.f32.mrb[0].mxu0
  %2134 = vmatprep.mubr.f32.mxu0 0.0
  %2135 = vmatmul.mubr.f32.gmra.mrb[0].mxu0 %v873
  %v2136 = vpop.f32.mrb[0].mxu0
  %v2137 = vadd.f32 %v1752, %v2136
  %v2138 = vpop.f32.mrb[0].mxu0
  %2139 = vmatprep.mubr.f32.mxu0 0.0
  %2140 = vmatmul.mubr.f32.gmra.mrb[0].mxu0 %v876
  %v2141 = vpop.f32.mrb[0].mxu0
  %v2142 = vadd.f32 %v1757, %v2141
  %v2143 = vpop.f32.mrb[0].mxu0
  %2144 = vmatprep.mubr.f32.mxu0 0.0
  %2145 = vmatmul.mubr.f32.gmra.mrb[0].mxu0 %v879
  %v2146 = vpop.f32.mrb[0].mxu0
  %v2147 = vadd.f32 %v1762, %v2146
  %v2148 = vpop.f32.mrb[0].mxu0
  %2149 = vmatprep.mubr.f32.mxu0 0.0
  %2150 = vmatmul.mubr.f32.gmra.mrb[0].mxu0 %v882
  %v2151 = vpop.f32.mrb[0].mxu0
  %v2152 = vadd.f32 %v1767, %v2151
  %v2153 = vpop.f32.mrb[0].mxu0
  %2154 = vmatprep.mubr.f32.mxu0 0.0
  %2155 = vmatmul.mubr.f32.gmra.mrb[0].mxu0 %v885
  %v2156 = vpop.f32.mrb[0].mxu0
  %v2157 = vadd.f32 %v1772, %v2156
  %v2158 = vpop.f32.mrb[0].mxu0
  %2159 = vmatprep.mubr.f32.mxu0 0.0
  %2160 = vmatmul.mubr.f32.gmra.mrb[0].mxu0 %v888
  %v2161 = vpop.f32.mrb[0].mxu0
  %v2162 = vadd.f32 %v1777, %v2161
  %v2163 = vpop.f32.mrb[0].mxu0
  %2164 = vmatprep.mubr.f32.mxu0 0.0
  %2165 = vmatmul.mubr.f32.gmra.mrb[0].mxu0 %v891
  %v2166 = vpop.f32.mrb[0].mxu0
  %v2167 = vadd.f32 %v1782, %v2166
  %v2168 = vpop.f32.mrb[0].mxu0
  %2169 = vmatprep.mubr.f32.mxu0 0.0
  %2170 = vmatmul.mubr.f32.gmra.mrb[0].mxu0 %v894
  %v2171 = vpop.f32.mrb[0].mxu0
  %v2172 = vadd.f32 %v1787, %v2171
  %v2173 = vpop.f32.mrb[0].mxu0
  %2174 = vmatprep.mubr.f32.mxu0 0.0
  %2175 = vmatmul.mubr.f32.gmra.mrb[0].mxu0 %v897
  %v2176 = vpop.f32.mrb[0].mxu0
  %v2177 = vadd.f32 %v1792, %v2176
  %v2178 = vpop.f32.mrb[0].mxu0
  %2179 = vmatprep.mubr.f32.mxu0 0.0
  %2180 = vmatmul.mubr.f32.gmra.mrb[0].mxu0 %v900
  %v2181 = vpop.f32.mrb[0].mxu0
  %v2182 = vadd.f32 %v1797, %v2181
  %v2183 = vpop.f32.mrb[0].mxu0
  %2184 = vmatprep.mubr.f32.mxu0 0.0
  %2185 = vmatmul.mubr.f32.gmra.mrb[0].mxu0 %v903
  %v2186 = vpop.f32.mrb[0].mxu0
  %v2187 = vadd.f32 %v1802, %v2186
  %v2188 = vpop.f32.mrb[0].mxu0
  %2189 = vmatprep.mubr.f32.mxu0 0.0
  %2190 = vmatmul.mubr.f32.gmra.mrb[0].mxu0 %v906
  %v2191 = vpop.f32.mrb[0].mxu0
  %v2192 = vadd.f32 %v1807, %v2191
  %v2193 = vpop.f32.mrb[0].mxu0
  %2194 = vmatprep.mubr.f32.mxu0 0.0
  %2195 = vmatmul.mubr.f32.gmra.mrb[0].mxu0 %v909
  %v2196 = vpop.f32.mrb[0].mxu0
  %v2197 = vadd.f32 %v1812, %v2196
  %v2198 = vpop.f32.mrb[0].mxu0
  %2199 = vmatprep.mubr.f32.mxu0 0.0
  %2200 = vmatmul.mubr.f32.gmra.mrb[0].mxu0 %v912
  %v2201 = vpop.f32.mrb[0].mxu0
  %v2202 = vadd.f32 %v1817, %v2201
  %v2203 = vpop.f32.mrb[0].mxu0
  %2204 = vmatprep.mubr.f32.mxu0 0.0
  %2205 = vmatmul.mubr.f32.gmra.mrb[0].mxu0 %v915
  %v2206 = vpop.f32.mrb[0].mxu0
  %v2207 = vadd.f32 %v1822, %v2206
  %v2208 = vpop.f32.mrb[0].mxu0
  %2209 = vmatprep.mubr.f32.mxu0 0.0
  %2210 = vmatmul.mubr.f32.gmra.mrb[0].mxu0 %v918
  %v2211 = vpop.f32.mrb[0].mxu0
  %v2212 = vadd.f32 %v1827, %v2211
  %v2213 = vpop.f32.mrb[0].mxu0
  %2214 = vdwg.mxu0
  %s2215 = scalar_lea.vmem %s4, 1
  %v2216 = vld [vmem:[%s2215] sm:$0x1]
  %v2218 = vlaneseq
  %v2219 = vshrl.u32 %v2218, 7
  %v2220 = vsub.s32 0, %v2219
  %v2221 = vrot.slane %v2216, %v2220
  %v2223 = vadd.f32 %v1897, %v2221
  %v2224 = vadd.f32 %v1902, %v2221
  %v2225 = vadd.f32 %v1907, %v2221
  %v2226 = vadd.f32 %v1912, %v2221
  %v2227 = vadd.f32 %v1917, %v2221
  %v2228 = vadd.f32 %v1922, %v2221
  %v2229 = vadd.f32 %v1927, %v2221
  %v2230 = vadd.f32 %v1932, %v2221
  %v2231 = vadd.f32 %v1937, %v2221
  %v2232 = vadd.f32 %v1942, %v2221
  %v2233 = vadd.f32 %v1947, %v2221
  %v2234 = vadd.f32 %v1952, %v2221
  %v2235 = vadd.f32 %v1957, %v2221
  %v2236 = vadd.f32 %v1962, %v2221
  %v2237 = vadd.f32 %v1967, %v2221
  %v2238 = vadd.f32 %v1972, %v2221
  %v2239 = vadd.f32 %v1977, %v2221
  %v2240 = vadd.f32 %v1982, %v2221
  %v2241 = vadd.f32 %v1987, %v2221
  %v2242 = vadd.f32 %v1992, %v2221
  %v2243 = vadd.f32 %v1997, %v2221
  %v2244 = vadd.f32 %v2002, %v2221
  %v2245 = vadd.f32 %v2007, %v2221
  %v2246 = vadd.f32 %v2012, %v2221
  %v2247 = vadd.f32 %v2017, %v2221
  %v2248 = vadd.f32 %v2022, %v2221
  %v2249 = vadd.f32 %v2027, %v2221
  %v2250 = vadd.f32 %v2032, %v2221
  %v2251 = vadd.f32 %v2037, %v2221
  %v2252 = vadd.f32 %v2042, %v2221
  %v2253 = vadd.f32 %v2047, %v2221
  %v2254 = vadd.f32 %v2052, %v2221
  %v2255 = vadd.f32 %v2057, %v2221
  %v2256 = vadd.f32 %v2062, %v2221
  %v2257 = vadd.f32 %v2067, %v2221
  %v2258 = vadd.f32 %v2072, %v2221
  %v2259 = vadd.f32 %v2077, %v2221
  %v2260 = vadd.f32 %v2082, %v2221
  %v2261 = vadd.f32 %v2087, %v2221
  %v2262 = vadd.f32 %v2092, %v2221
  %v2263 = vadd.f32 %v2097, %v2221
  %v2264 = vadd.f32 %v2102, %v2221
  %v2265 = vadd.f32 %v2107, %v2221
  %v2266 = vadd.f32 %v2112, %v2221
  %v2267 = vadd.f32 %v2117, %v2221
  %v2268 = vadd.f32 %v2122, %v2221
  %v2269 = vadd.f32 %v2127, %v2221
  %v2270 = vadd.f32 %v2132, %v2221
  %v2271 = vadd.f32 %v2137, %v2221
  %v2272 = vadd.f32 %v2142, %v2221
  %v2273 = vadd.f32 %v2147, %v2221
  %v2274 = vadd.f32 %v2152, %v2221
  %v2275 = vadd.f32 %v2157, %v2221
  %v2276 = vadd.f32 %v2162, %v2221
  %v2277 = vadd.f32 %v2167, %v2221
  %v2278 = vadd.f32 %v2172, %v2221
  %v2279 = vadd.f32 %v2177, %v2221
  %v2280 = vadd.f32 %v2182, %v2221
  %v2281 = vadd.f32 %v2187, %v2221
  %v2282 = vadd.f32 %v2192, %v2221
  %v2283 = vadd.f32 %v2197, %v2221
  %v2284 = vadd.f32 %v2202, %v2221
  %v2285 = vadd.f32 %v2207, %v2221
  %v2286 = vadd.f32 %v2212, %v2221
  %s2287 = scalar_lea.vmem %s5, 16
  %2288 = vst.msk [vmem:[%s2287] sm:$0xff] %vm1376, %v2223
  %2289 = vst.msk [vmem:[%s2287 + $0x8] sm:$0xff] %vm1376, %v2224
  %2290 = vst.msk [vmem:[%s2287 + $0x40] sm:$0xff] %vm1376, %v2225
  %2291 = vst.msk [vmem:[%s2287 + $0x48] sm:$0xff] %vm1376, %v2226
  %2292 = vst.msk [vmem:[%s2287 + $0x80] sm:$0xff] %vm1376, %v2227
  %2293 = vst.msk [vmem:[%s2287 + $0x88] sm:$0xff] %vm1376, %v2228
  %2294 = vst.msk [vmem:[%s2287 + $0xc0] sm:$0xff] %vm1376, %v2229
  %2295 = vst.msk [vmem:[%s2287 + $0xc8] sm:$0xff] %vm1376, %v2230
  %2296 = vst.msk [vmem:[%s2287 + $0x100] sm:$0xff] %vm1376, %v2231
  %2297 = vst.msk [vmem:[%s2287 + $0x108] sm:$0xff] %vm1376, %v2232
  %2298 = vst.msk [vmem:[%s2287 + $0x140] sm:$0xff] %vm1376, %v2233
  %2299 = vst.msk [vmem:[%s2287 + $0x148] sm:$0xff] %vm1376, %v2234
  %2300 = vst.msk [vmem:[%s2287 + $0x180] sm:$0xff] %vm1376, %v2235
  %2301 = vst.msk [vmem:[%s2287 + $0x188] sm:$0xff] %vm1376, %v2236
  %2302 = vst.msk [vmem:[%s2287 + $0x1c0] sm:$0xff] %vm1376, %v2237
  %2303 = vst.msk [vmem:[%s2287 + $0x1c8] sm:$0xff] %vm1376, %v2238
  %2304 = vst.msk [vmem:[%s2287 + $0x200] sm:$0xff] %vm1376, %v2239
  %2305 = vst.msk [vmem:[%s2287 + $0x208] sm:$0xff] %vm1376, %v2240
  %2306 = vst.msk [vmem:[%s2287 + $0x240] sm:$0xff] %vm1376, %v2241
  %2307 = vst.msk [vmem:[%s2287 + $0x248] sm:$0xff] %vm1376, %v2242
  %2308 = vst.msk [vmem:[%s2287 + $0x280] sm:$0xff] %vm1376, %v2243
  %2309 = vst.msk [vmem:[%s2287 + $0x288] sm:$0xff] %vm1376, %v2244
  %2310 = vst.msk [vmem:[%s2287 + $0x2c0] sm:$0xff] %vm1376, %v2245
  %2311 = vst.msk [vmem:[%s2287 + $0x2c8] sm:$0xff] %vm1376, %v2246
  %2312 = vst.msk [vmem:[%s2287 + $0x300] sm:$0xff] %vm1376, %v2247
  %2313 = vst.msk [vmem:[%s2287 + $0x308] sm:$0xff] %vm1376, %v2248
  %2314 = vst.msk [vmem:[%s2287 + $0x340] sm:$0xff] %vm1376, %v2249
  %2315 = vst.msk [vmem:[%s2287 + $0x348] sm:$0xff] %vm1376, %v2250
  %2316 = vst.msk [vmem:[%s2287 + $0x380] sm:$0xff] %vm1376, %v2251
  %2317 = vst.msk [vmem:[%s2287 + $0x388] sm:$0xff] %vm1376, %v2252
  %2318 = vst.msk [vmem:[%s2287 + $0x3c0] sm:$0xff] %vm1376, %v2253
  %2319 = vst.msk [vmem:[%s2287 + $0x3c8] sm:$0xff] %vm1376, %v2254
  %2320 = vst.msk [vmem:[%s2287 + $0x400] sm:$0xff] %vm1376, %v2255
  %2321 = vst.msk [vmem:[%s2287 + $0x408] sm:$0xff] %vm1376, %v2256
  %2322 = vst.msk [vmem:[%s2287 + $0x440] sm:$0xff] %vm1376, %v2257
  %2323 = vst.msk [vmem:[%s2287 + $0x448] sm:$0xff] %vm1376, %v2258
  %2324 = vst.msk [vmem:[%s2287 + $0x480] sm:$0xff] %vm1376, %v2259
  %2325 = vst.msk [vmem:[%s2287 + $0x488] sm:$0xff] %vm1376, %v2260
  %2326 = vst.msk [vmem:[%s2287 + $0x4c0] sm:$0xff] %vm1376, %v2261
  %2327 = vst.msk [vmem:[%s2287 + $0x4c8] sm:$0xff] %vm1376, %v2262
  %2328 = vst.msk [vmem:[%s2287 + $0x500] sm:$0xff] %vm1376, %v2263
  %2329 = vst.msk [vmem:[%s2287 + $0x508] sm:$0xff] %vm1376, %v2264
  %2330 = vst.msk [vmem:[%s2287 + $0x540] sm:$0xff] %vm1376, %v2265
  %2331 = vst.msk [vmem:[%s2287 + $0x548] sm:$0xff] %vm1376, %v2266
  %2332 = vst.msk [vmem:[%s2287 + $0x580] sm:$0xff] %vm1376, %v2267
  %2333 = vst.msk [vmem:[%s2287 + $0x588] sm:$0xff] %vm1376, %v2268
  %2334 = vst.msk [vmem:[%s2287 + $0x5c0] sm:$0xff] %vm1376, %v2269
  %2335 = vst.msk [vmem:[%s2287 + $0x5c8] sm:$0xff] %vm1376, %v2270
  %2336 = vst.msk [vmem:[%s2287 + $0x600] sm:$0xff] %vm1376, %v2271
  %2337 = vst.msk [vmem:[%s2287 + $0x608] sm:$0xff] %vm1376, %v2272
  %2338 = vst.msk [vmem:[%s2287 + $0x640] sm:$0xff] %vm1376, %v2273
  %2339 = vst.msk [vmem:[%s2287 + $0x648] sm:$0xff] %vm1376, %v2274
  %2340 = vst.msk [vmem:[%s2287 + $0x680] sm:$0xff] %vm1376, %v2275
  %2341 = vst.msk [vmem:[%s2287 + $0x688] sm:$0xff] %vm1376, %v2276
  %2342 = vst.msk [vmem:[%s2287 + $0x6c0] sm:$0xff] %vm1376, %v2277
  %2343 = vst.msk [vmem:[%s2287 + $0x6c8] sm:$0xff] %vm1376, %v2278
  %2344 = vst.msk [vmem:[%s2287 + $0x700] sm:$0xff] %vm1376, %v2279
  %2345 = vst.msk [vmem:[%s2287 + $0x708] sm:$0xff] %vm1376, %v2280
  %2346 = vst.msk [vmem:[%s2287 + $0x740] sm:$0xff] %vm1376, %v2281
  %2347 = vst.msk [vmem:[%s2287 + $0x748] sm:$0xff] %vm1376, %v2282
  %2348 = vst.msk [vmem:[%s2287 + $0x780] sm:$0xff] %vm1376, %v2283
  %2349 = vst.msk [vmem:[%s2287 + $0x788] sm:$0xff] %vm1376, %v2284
  %2350 = vst.msk [vmem:[%s2287 + $0x7c0] sm:$0xff] %vm1376, %v2285
  %2351 = vst.msk [vmem:[%s2287 + $0x7c8] sm:$0xff] %vm1376, %v2286
  %s2352 = scalar_lea.vmem %s1, 16
  %v2353 = vld [vmem:[%s2352] sm:$0xff]
  %v2354 = vld [vmem:[%s2352 + $0x8] sm:$0xff]
  %v2355 = vld [vmem:[%s2352 + $0x20] sm:$0xff]
  %v2356 = vld [vmem:[%s2352 + $0x28] sm:$0xff]
  %v2357 = vld [vmem:[%s2352 + $0x40] sm:$0xff]
  %v2358 = vld [vmem:[%s2352 + $0x48] sm:$0xff]
  %v2359 = vld [vmem:[%s2352 + $0x60] sm:$0xff]
  %v2360 = vld [vmem:[%s2352 + $0x68] sm:$0xff]
  %v2361 = vld [vmem:[%s2352 + $0x80] sm:$0xff]
  %v2362 = vld [vmem:[%s2352 + $0x88] sm:$0xff]
  %v2363 = vld [vmem:[%s2352 + $0xa0] sm:$0xff]
  %v2364 = vld [vmem:[%s2352 + $0xa8] sm:$0xff]
  %v2365 = vld [vmem:[%s2352 + $0xc0] sm:$0xff]
  %v2366 = vld [vmem:[%s2352 + $0xc8] sm:$0xff]
  %v2367 = vld [vmem:[%s2352 + $0xe0] sm:$0xff]
  %v2368 = vld [vmem:[%s2352 + $0xe8] sm:$0xff]
  %v2369 = vld [vmem:[%s2352 + $0x100] sm:$0xff]
  %v2370 = vld [vmem:[%s2352 + $0x108] sm:$0xff]
  %v2371 = vld [vmem:[%s2352 + $0x120] sm:$0xff]
  %v2372 = vld [vmem:[%s2352 + $0x128] sm:$0xff]
  %v2373 = vld [vmem:[%s2352 + $0x140] sm:$0xff]
  %v2374 = vld [vmem:[%s2352 + $0x148] sm:$0xff]
  %v2375 = vld [vmem:[%s2352 + $0x160] sm:$0xff]
  %v2376 = vld [vmem:[%s2352 + $0x168] sm:$0xff]
  %v2377 = vld [vmem:[%s2352 + $0x180] sm:$0xff]
  %v2378 = vld [vmem:[%s2352 + $0x188] sm:$0xff]
  %v2379 = vld [vmem:[%s2352 + $0x1a0] sm:$0xff]
  %v2380 = vld [vmem:[%s2352 + $0x1a8] sm:$0xff]
  %v2381 = vld [vmem:[%s2352 + $0x1c0] sm:$0xff]
  %v2382 = vld [vmem:[%s2352 + $0x1c8] sm:$0xff]
  %v2383 = vld [vmem:[%s2352 + $0x1e0] sm:$0xff]
  %v2384 = vld [vmem:[%s2352 + $0x1e8] sm:$0xff]
  %v2385 = vld [vmem:[%s2352 + $0x200] sm:$0xff]
  %v2386 = vld [vmem:[%s2352 + $0x208] sm:$0xff]
  %v2387 = vld [vmem:[%s2352 + $0x220] sm:$0xff]
  %v2388 = vld [vmem:[%s2352 + $0x228] sm:$0xff]
  %v2389 = vld [vmem:[%s2352 + $0x240] sm:$0xff]
  %v2390 = vld [vmem:[%s2352 + $0x248] sm:$0xff]
  %v2391 = vld [vmem:[%s2352 + $0x260] sm:$0xff]
  %v2392 = vld [vmem:[%s2352 + $0x268] sm:$0xff]
  %v2393 = vld [vmem:[%s2352 + $0x280] sm:$0xff]
  %v2394 = vld [vmem:[%s2352 + $0x288] sm:$0xff]
  %v2395 = vld [vmem:[%s2352 + $0x2a0] sm:$0xff]
  %v2396 = vld [vmem:[%s2352 + $0x2a8] sm:$0xff]
  %v2397 = vld [vmem:[%s2352 + $0x2c0] sm:$0xff]
  %v2398 = vld [vmem:[%s2352 + $0x2c8] sm:$0xff]
  %v2399 = vld [vmem:[%s2352 + $0x2e0] sm:$0xff]
  %v2400 = vld [vmem:[%s2352 + $0x2e8] sm:$0xff]
  %v2401 = vld [vmem:[%s2352 + $0x300] sm:$0xff]
  %v2402 = vld [vmem:[%s2352 + $0x308] sm:$0xff]
  %v2403 = vld [vmem:[%s2352 + $0x320] sm:$0xff]
  %v2404 = vld [vmem:[%s2352 + $0x328] sm:$0xff]
  %v2405 = vld [vmem:[%s2352 + $0x340] sm:$0xff]
  %v2406 = vld [vmem:[%s2352 + $0x348] sm:$0xff]
  %v2407 = vld [vmem:[%s2352 + $0x360] sm:$0xff]
  %v2408 = vld [vmem:[%s2352 + $0x368] sm:$0xff]
  %v2409 = vld [vmem:[%s2352 + $0x380] sm:$0xff]
  %v2410 = vld [vmem:[%s2352 + $0x388] sm:$0xff]
  %v2411 = vld [vmem:[%s2352 + $0x3a0] sm:$0xff]
  %v2412 = vld [vmem:[%s2352 + $0x3a8] sm:$0xff]
  %v2413 = vld [vmem:[%s2352 + $0x3c0] sm:$0xff]
  %v2414 = vld [vmem:[%s2352 + $0x3c8] sm:$0xff]
  %v2415 = vld [vmem:[%s2352 + $0x3e0] sm:$0xff]
  %v2416 = vld [vmem:[%s2352 + $0x3e8] sm:$0xff]
  %s2417 = scalar_lea.vmem %s2, 16
  %v2418 = vld [vmem:[%s2417] sm:$0xff]
  %v2419 = vld [vmem:[%s3] sm:$0xff]
  %v2421 = vsel %vm150, %v2353, 0
  %v2424 = vsel %vm150, %v2354, 0
  %v2427 = vsel %vm150, %v2355, 0
  %v2430 = vsel %vm150, %v2356, 0
  %v2433 = vsel %vm150, %v2357, 0
  %v2436 = vsel %vm150, %v2358, 0
  %v2439 = vsel %vm150, %v2359, 0
  %v2442 = vsel %vm150, %v2360, 0
  %v2445 = vsel %vm150, %v2361, 0
  %v2448 = vsel %vm150, %v2362, 0
  %v2451 = vsel %vm150, %v2363, 0
  %v2454 = vsel %vm150, %v2364, 0
  %v2457 = vsel %vm150, %v2365, 0
  %v2460 = vsel %vm150, %v2366, 0
  %v2463 = vsel %vm150, %v2367, 0
  %v2466 = vsel %vm150, %v2368, 0
  %v2469 = vsel %vm150, %v2369, 0
  %v2472 = vsel %vm150, %v2370, 0
  %v2475 = vsel %vm150, %v2371, 0
  %v2478 = vsel %vm150, %v2372, 0
  %v2481 = vsel %vm150, %v2373, 0
  %v2484 = vsel %vm150, %v2374, 0
  %v2487 = vsel %vm150, %v2375, 0
  %v2490 = vsel %vm150, %v2376, 0
  %v2493 = vsel %vm150, %v2377, 0
  %v2496 = vsel %vm150, %v2378, 0
  %v2499 = vsel %vm150, %v2379, 0
  %v2502 = vsel %vm150, %v2380, 0
  %v2505 = vsel %vm150, %v2381, 0
  %v2508 = vsel %vm150, %v2382, 0
  %v2511 = vsel %vm150, %v2383, 0
  %v2514 = vsel %vm150, %v2384, 0
  %v2517 = vsel %vm150, %v2385, 0
  %v2520 = vsel %vm150, %v2386, 0
  %v2523 = vsel %vm150, %v2387, 0
  %v2526 = vsel %vm150, %v2388, 0
  %v2529 = vsel %vm150, %v2389, 0
  %v2532 = vsel %vm150, %v2390, 0
  %v2535 = vsel %vm150, %v2391, 0
  %v2538 = vsel %vm150, %v2392, 0
  %v2541 = vsel %vm150, %v2393, 0
  %v2544 = vsel %vm150, %v2394, 0
  %v2547 = vsel %vm150, %v2395, 0
  %v2550 = vsel %vm150, %v2396, 0
  %v2553 = vsel %vm150, %v2397, 0
  %v2556 = vsel %vm150, %v2398, 0
  %v2559 = vsel %vm150, %v2399, 0
  %v2562 = vsel %vm150, %v2400, 0
  %v2565 = vsel %vm150, %v2401, 0
  %v2568 = vsel %vm150, %v2402, 0
  %v2571 = vsel %vm150, %v2403, 0
  %v2574 = vsel %vm150, %v2404, 0
  %v2577 = vsel %vm150, %v2405, 0
  %v2580 = vsel %vm150, %v2406, 0
  %v2583 = vsel %vm150, %v2407, 0
  %v2586 = vsel %vm150, %v2408, 0
  %v2589 = vsel %vm150, %v2409, 0
  %v2592 = vsel %vm150, %v2410, 0
  %v2595 = vsel %vm150, %v2411, 0
  %v2598 = vsel %vm150, %v2412, 0
  %v2601 = vsel %vm150, %v2413, 0
  %v2604 = vsel %vm150, %v2414, 0
  %v2607 = vsel %vm150, %v2415, 0
  %v2610 = vsel %vm150, %v2416, 0
  %2612 = vmatprep.subr.mxu0 0.0
  %2613 = vmatpush1.msra.mxu0 %v2419
  %2614 = vmatprep.subr.mxu0 0.0
  %2615 = vmatpush1.msra.mxu0 0.0
  %2616 = vmatprep.subr.mxu0 0.0
  %2617 = vmatpush1.msra.mxu0 0.0
  %2618 = vmatprep.subr.mxu0 0.0
  %2619 = vmatpush1.msra.mxu0 0.0
  %2620 = vmatprep.subr.mxu0 0.0
  %2621 = vmatpush1.msra.mxu0 0.0
  %2622 = vmatprep.subr.mxu0 0.0
  %2623 = vmatpush1.msra.mxu0 0.0
  %2624 = vmatprep.subr.mxu0 0.0
  %2625 = vmatpush1.msra.mxu0 0.0
  %2626 = vmatprep.subr.mxu0 0.0
  %2627 = vmatpush1.msra.mxu0 0.0
  %2628 = vmatprep.subr.mxu0 0.0
  %2629 = vmatpush1.msra.mxu0 0.0
  %2630 = vmatprep.subr.mxu0 0.0
  %2631 = vmatpush1.msra.mxu0 0.0
  %2632 = vmatprep.subr.mxu0 0.0
  %2633 = vmatpush1.msra.mxu0 0.0
  %2634 = vmatprep.subr.mxu0 0.0
  %2635 = vmatpush1.msra.mxu0 0.0
  %2636 = vmatprep.subr.mxu0 0.0
  %2637 = vmatpush1.msra.mxu0 0.0
  %2638 = vmatprep.subr.mxu0 0.0
  %2639 = vmatpush1.msra.mxu0 0.0
  %2640 = vmatprep.subr.mxu0 0.0
  %2641 = vmatpush1.msra.mxu0 0.0
  %2642 = vmatprep.subr.mxu0 0.0
  %2643 = vmatpush1.msra.mxu0 0.0
  %2644 = vmatprep.subr.mxu0 0.0
  %2645 = vmatpush1.msra.mxu0 0.0
  %2646 = vmatprep.subr.mxu0 0.0
  %2647 = vmatpush1.msra.mxu0 0.0
  %2648 = vmatprep.subr.mxu0 0.0
  %2649 = vmatpush1.msra.mxu0 0.0
  %2650 = vmatprep.subr.mxu0 0.0
  %2651 = vmatpush1.msra.mxu0 0.0
  %2652 = vmatprep.subr.mxu0 0.0
  %2653 = vmatpush1.msra.mxu0 0.0
  %2654 = vmatprep.subr.mxu0 0.0
  %2655 = vmatpush1.msra.mxu0 0.0
  %2656 = vmatprep.subr.mxu0 0.0
  %2657 = vmatpush1.msra.mxu0 0.0
  %2658 = vmatprep.subr.mxu0 0.0
  %2659 = vmatpush1.msra.mxu0 0.0
  %2660 = vmatprep.subr.mxu0 0.0
  %2661 = vmatpush1.msra.mxu0 0.0
  %2662 = vmatprep.subr.mxu0 0.0
  %2663 = vmatpush1.msra.mxu0 0.0
  %2664 = vmatprep.subr.mxu0 0.0
  %2665 = vmatpush1.msra.mxu0 0.0
  %2666 = vmatprep.subr.mxu0 0.0
  %2667 = vmatpush1.msra.mxu0 0.0
  %2668 = vmatprep.subr.mxu0 0.0
  %2669 = vmatpush1.msra.mxu0 0.0
  %2670 = vmatprep.subr.mxu0 0.0
  %2671 = vmatpush1.msra.mxu0 0.0
  %2672 = vmatprep.subr.mxu0 0.0
  %2673 = vmatpush1.msra.mxu0 0.0
  %2674 = vmatprep.subr.mxu0 0.0
  %2675 = vmatpush1.msra.mxu0 0.0
  %2676 = vmatprep.mubr.f32.mxu0 0.0
  %2677 = vmatmul.mubr.f32.gmra.mrb[0].mxu0 %v2421
  %v2678 = vpop.f32.mrb[0].mxu0
  %v2679 = vadd.f32 0.0, %v2678
  %v2680 = vpop.f32.mrb[0].mxu0
  %2681 = vmatprep.mubr.f32.mxu0 0.0
  %2682 = vmatmul.mubr.f32.gmra.mrb[0].mxu0 %v2424
  %v2683 = vpop.f32.mrb[0].mxu0
  %v2684 = vadd.f32 0.0, %v2683
  %v2685 = vpop.f32.mrb[0].mxu0
  %2686 = vmatprep.mubr.f32.mxu0 0.0
  %2687 = vmatmul.mubr.f32.gmra.mrb[0].mxu0 %v2427
  %v2688 = vpop.f32.mrb[0].mxu0
  %v2689 = vadd.f32 0.0, %v2688
  %v2690 = vpop.f32.mrb[0].mxu0
  %2691 = vmatprep.mubr.f32.mxu0 0.0
  %2692 = vmatmul.mubr.f32.gmra.mrb[0].mxu0 %v2430
  %v2693 = vpop.f32.mrb[0].mxu0
  %v2694 = vadd.f32 0.0, %v2693
  %v2695 = vpop.f32.mrb[0].mxu0
  %2696 = vmatprep.mubr.f32.mxu0 0.0
  %2697 = vmatmul.mubr.f32.gmra.mrb[0].mxu0 %v2433
  %v2698 = vpop.f32.mrb[0].mxu0
  %v2699 = vadd.f32 0.0, %v2698
  %v2700 = vpop.f32.mrb[0].mxu0
  %2701 = vmatprep.mubr.f32.mxu0 0.0
  %2702 = vmatmul.mubr.f32.gmra.mrb[0].mxu0 %v2436
  %v2703 = vpop.f32.mrb[0].mxu0
  %v2704 = vadd.f32 0.0, %v2703
  %v2705 = vpop.f32.mrb[0].mxu0
  %2706 = vmatprep.mubr.f32.mxu0 0.0
  %2707 = vmatmul.mubr.f32.gmra.mrb[0].mxu0 %v2439
  %v2708 = vpop.f32.mrb[0].mxu0
  %v2709 = vadd.f32 0.0, %v2708
  %v2710 = vpop.f32.mrb[0].mxu0
  %2711 = vmatprep.mubr.f32.mxu0 0.0
  %2712 = vmatmul.mubr.f32.gmra.mrb[0].mxu0 %v2442
  %v2713 = vpop.f32.mrb[0].mxu0
  %v2714 = vadd.f32 0.0, %v2713
  %v2715 = vpop.f32.mrb[0].mxu0
  %2716 = vmatprep.mubr.f32.mxu0 0.0
  %2717 = vmatmul.mubr.f32.gmra.mrb[0].mxu0 %v2445
  %v2718 = vpop.f32.mrb[0].mxu0
  %v2719 = vadd.f32 0.0, %v2718
  %v2720 = vpop.f32.mrb[0].mxu0
  %2721 = vmatprep.mubr.f32.mxu0 0.0
  %2722 = vmatmul.mubr.f32.gmra.mrb[0].mxu0 %v2448
  %v2723 = vpop.f32.mrb[0].mxu0
  %v2724 = vadd.f32 0.0, %v2723
  %v2725 = vpop.f32.mrb[0].mxu0
  %2726 = vmatprep.mubr.f32.mxu0 0.0
  %2727 = vmatmul.mubr.f32.gmra.mrb[0].mxu0 %v2451
  %v2728 = vpop.f32.mrb[0].mxu0
  %v2729 = vadd.f32 0.0, %v2728
  %v2730 = vpop.f32.mrb[0].mxu0
  %2731 = vmatprep.mubr.f32.mxu0 0.0
  %2732 = vmatmul.mubr.f32.gmra.mrb[0].mxu0 %v2454
  %v2733 = vpop.f32.mrb[0].mxu0
  %v2734 = vadd.f32 0.0, %v2733
  %v2735 = vpop.f32.mrb[0].mxu0
  %2736 = vmatprep.mubr.f32.mxu0 0.0
  %2737 = vmatmul.mubr.f32.gmra.mrb[0].mxu0 %v2457
  %v2738 = vpop.f32.mrb[0].mxu0
  %v2739 = vadd.f32 0.0, %v2738
  %v2740 = vpop.f32.mrb[0].mxu0
  %2741 = vmatprep.mubr.f32.mxu0 0.0
  %2742 = vmatmul.mubr.f32.gmra.mrb[0].mxu0 %v2460
  %v2743 = vpop.f32.mrb[0].mxu0
  %v2744 = vadd.f32 0.0, %v2743
  %v2745 = vpop.f32.mrb[0].mxu0
  %2746 = vmatprep.mubr.f32.mxu0 0.0
  %2747 = vmatmul.mubr.f32.gmra.mrb[0].mxu0 %v2463
  %v2748 = vpop.f32.mrb[0].mxu0
  %v2749 = vadd.f32 0.0, %v2748
  %v2750 = vpop.f32.mrb[0].mxu0
  %2751 = vmatprep.mubr.f32.mxu0 0.0
  %2752 = vmatmul.mubr.f32.gmra.mrb[0].mxu0 %v2466
  %v2753 = vpop.f32.mrb[0].mxu0
  %v2754 = vadd.f32 0.0, %v2753
  %v2755 = vpop.f32.mrb[0].mxu0
  %2756 = vmatprep.mubr.f32.mxu0 0.0
  %2757 = vmatmul.mubr.f32.gmra.mrb[0].mxu0 %v2469
  %v2758 = vpop.f32.mrb[0].mxu0
  %v2759 = vadd.f32 0.0, %v2758
  %v2760 = vpop.f32.mrb[0].mxu0
  %2761 = vmatprep.mubr.f32.mxu0 0.0
  %2762 = vmatmul.mubr.f32.gmra.mrb[0].mxu0 %v2472
  %v2763 = vpop.f32.mrb[0].mxu0
  %v2764 = vadd.f32 0.0, %v2763
  %v2765 = vpop.f32.mrb[0].mxu0
  %2766 = vmatprep.mubr.f32.mxu0 0.0
  %2767 = vmatmul.mubr.f32.gmra.mrb[0].mxu0 %v2475
  %v2768 = vpop.f32.mrb[0].mxu0
  %v2769 = vadd.f32 0.0, %v2768
  %v2770 = vpop.f32.mrb[0].mxu0
  %2771 = vmatprep.mubr.f32.mxu0 0.0
  %2772 = vmatmul.mubr.f32.gmra.mrb[0].mxu0 %v2478
  %v2773 = vpop.f32.mrb[0].mxu0
  %v2774 = vadd.f32 0.0, %v2773
  %v2775 = vpop.f32.mrb[0].mxu0
  %2776 = vmatprep.mubr.f32.mxu0 0.0
  %2777 = vmatmul.mubr.f32.gmra.mrb[0].mxu0 %v2481
  %v2778 = vpop.f32.mrb[0].mxu0
  %v2779 = vadd.f32 0.0, %v2778
  %v2780 = vpop.f32.mrb[0].mxu0
  %2781 = vmatprep.mubr.f32.mxu0 0.0
  %2782 = vmatmul.mubr.f32.gmra.mrb[0].mxu0 %v2484
  %v2783 = vpop.f32.mrb[0].mxu0
  %v2784 = vadd.f32 0.0, %v2783
  %v2785 = vpop.f32.mrb[0].mxu0
  %2786 = vmatprep.mubr.f32.mxu0 0.0
  %2787 = vmatmul.mubr.f32.gmra.mrb[0].mxu0 %v2487
  %v2788 = vpop.f32.mrb[0].mxu0
  %v2789 = vadd.f32 0.0, %v2788
  %v2790 = vpop.f32.mrb[0].mxu0
  %2791 = vmatprep.mubr.f32.mxu0 0.0
  %2792 = vmatmul.mubr.f32.gmra.mrb[0].mxu0 %v2490
  %v2793 = vpop.f32.mrb[0].mxu0
  %v2794 = vadd.f32 0.0, %v2793
  %v2795 = vpop.f32.mrb[0].mxu0
  %2796 = vmatprep.mubr.f32.mxu0 0.0
  %2797 = vmatmul.mubr.f32.gmra.mrb[0].mxu0 %v2493
  %v2798 = vpop.f32.mrb[0].mxu0
  %v2799 = vadd.f32 0.0, %v2798
  %v2800 = vpop.f32.mrb[0].mxu0
  %2801 = vmatprep.mubr.f32.mxu0 0.0
  %2802 = vmatmul.mubr.f32.gmra.mrb[0].mxu0 %v2496
  %v2803 = vpop.f32.mrb[0].mxu0
  %v2804 = vadd.f32 0.0, %v2803
  %v2805 = vpop.f32.mrb[0].mxu0
  %2806 = vmatprep.mubr.f32.mxu0 0.0
  %2807 = vmatmul.mubr.f32.gmra.mrb[0].mxu0 %v2499
  %v2808 = vpop.f32.mrb[0].mxu0
  %v2809 = vadd.f32 0.0, %v2808
  %v2810 = vpop.f32.mrb[0].mxu0
  %2811 = vmatprep.mubr.f32.mxu0 0.0
  %2812 = vmatmul.mubr.f32.gmra.mrb[0].mxu0 %v2502
  %v2813 = vpop.f32.mrb[0].mxu0
  %v2814 = vadd.f32 0.0, %v2813
  %v2815 = vpop.f32.mrb[0].mxu0
  %2816 = vmatprep.mubr.f32.mxu0 0.0
  %2817 = vmatmul.mubr.f32.gmra.mrb[0].mxu0 %v2505
  %v2818 = vpop.f32.mrb[0].mxu0
  %v2819 = vadd.f32 0.0, %v2818
  %v2820 = vpop.f32.mrb[0].mxu0
  %2821 = vmatprep.mubr.f32.mxu0 0.0
  %2822 = vmatmul.mubr.f32.gmra.mrb[0].mxu0 %v2508
  %v2823 = vpop.f32.mrb[0].mxu0
  %v2824 = vadd.f32 0.0, %v2823
  %v2825 = vpop.f32.mrb[0].mxu0
  %2826 = vmatprep.mubr.f32.mxu0 0.0
  %2827 = vmatmul.mubr.f32.gmra.mrb[0].mxu0 %v2511
  %v2828 = vpop.f32.mrb[0].mxu0
  %v2829 = vadd.f32 0.0, %v2828
  %v2830 = vpop.f32.mrb[0].mxu0
  %2831 = vmatprep.mubr.f32.mxu0 0.0
  %2832 = vmatmul.mubr.f32.gmra.mrb[0].mxu0 %v2514
  %v2833 = vpop.f32.mrb[0].mxu0
  %v2834 = vadd.f32 0.0, %v2833
  %v2835 = vpop.f32.mrb[0].mxu0
  %2836 = vmatprep.mubr.f32.mxu0 0.0
  %2837 = vmatmul.mubr.f32.gmra.mrb[0].mxu0 %v2517
  %v2838 = vpop.f32.mrb[0].mxu0
  %v2839 = vadd.f32 0.0, %v2838
  %v2840 = vpop.f32.mrb[0].mxu0
  %2841 = vmatprep.mubr.f32.mxu0 0.0
  %2842 = vmatmul.mubr.f32.gmra.mrb[0].mxu0 %v2520
  %v2843 = vpop.f32.mrb[0].mxu0
  %v2844 = vadd.f32 0.0, %v2843
  %v2845 = vpop.f32.mrb[0].mxu0
  %2846 = vmatprep.mubr.f32.mxu0 0.0
  %2847 = vmatmul.mubr.f32.gmra.mrb[0].mxu0 %v2523
  %v2848 = vpop.f32.mrb[0].mxu0
  %v2849 = vadd.f32 0.0, %v2848
  %v2850 = vpop.f32.mrb[0].mxu0
  %2851 = vmatprep.mubr.f32.mxu0 0.0
  %2852 = vmatmul.mubr.f32.gmra.mrb[0].mxu0 %v2526
  %v2853 = vpop.f32.mrb[0].mxu0
  %v2854 = vadd.f32 0.0, %v2853
  %v2855 = vpop.f32.mrb[0].mxu0
  %2856 = vmatprep.mubr.f32.mxu0 0.0
  %2857 = vmatmul.mubr.f32.gmra.mrb[0].mxu0 %v2529
  %v2858 = vpop.f32.mrb[0].mxu0
  %v2859 = vadd.f32 0.0, %v2858
  %v2860 = vpop.f32.mrb[0].mxu0
  %2861 = vmatprep.mubr.f32.mxu0 0.0
  %2862 = vmatmul.mubr.f32.gmra.mrb[0].mxu0 %v2532
  %v2863 = vpop.f32.mrb[0].mxu0
  %v2864 = vadd.f32 0.0, %v2863
  %v2865 = vpop.f32.mrb[0].mxu0
  %2866 = vmatprep.mubr.f32.mxu0 0.0
  %2867 = vmatmul.mubr.f32.gmra.mrb[0].mxu0 %v2535
  %v2868 = vpop.f32.mrb[0].mxu0
  %v2869 = vadd.f32 0.0, %v2868
  %v2870 = vpop.f32.mrb[0].mxu0
  %2871 = vmatprep.mubr.f32.mxu0 0.0
  %2872 = vmatmul.mubr.f32.gmra.mrb[0].mxu0 %v2538
  %v2873 = vpop.f32.mrb[0].mxu0
  %v2874 = vadd.f32 0.0, %v2873
  %v2875 = vpop.f32.mrb[0].mxu0
  %2876 = vmatprep.mubr.f32.mxu0 0.0
  %2877 = vmatmul.mubr.f32.gmra.mrb[0].mxu0 %v2541
  %v2878 = vpop.f32.mrb[0].mxu0
  %v2879 = vadd.f32 0.0, %v2878
  %v2880 = vpop.f32.mrb[0].mxu0
  %2881 = vmatprep.mubr.f32.mxu0 0.0
  %2882 = vmatmul.mubr.f32.gmra.mrb[0].mxu0 %v2544
  %v2883 = vpop.f32.mrb[0].mxu0
  %v2884 = vadd.f32 0.0, %v2883
  %v2885 = vpop.f32.mrb[0].mxu0
  %2886 = vmatprep.mubr.f32.mxu0 0.0
  %2887 = vmatmul.mubr.f32.gmra.mrb[0].mxu0 %v2547
  %v2888 = vpop.f32.mrb[0].mxu0
  %v2889 = vadd.f32 0.0, %v2888
  %v2890 = vpop.f32.mrb[0].mxu0
  %2891 = vmatprep.mubr.f32.mxu0 0.0
  %2892 = vmatmul.mubr.f32.gmra.mrb[0].mxu0 %v2550
  %v2893 = vpop.f32.mrb[0].mxu0
  %v2894 = vadd.f32 0.0, %v2893
  %v2895 = vpop.f32.mrb[0].mxu0
  %2896 = vmatprep.mubr.f32.mxu0 0.0
  %2897 = vmatmul.mubr.f32.gmra.mrb[0].mxu0 %v2553
  %v2898 = vpop.f32.mrb[0].mxu0
  %v2899 = vadd.f32 0.0, %v2898
  %v2900 = vpop.f32.mrb[0].mxu0
  %2901 = vmatprep.mubr.f32.mxu0 0.0
  %2902 = vmatmul.mubr.f32.gmra.mrb[0].mxu0 %v2556
  %v2903 = vpop.f32.mrb[0].mxu0
  %v2904 = vadd.f32 0.0, %v2903
  %v2905 = vpop.f32.mrb[0].mxu0
  %2906 = vmatprep.mubr.f32.mxu0 0.0
  %2907 = vmatmul.mubr.f32.gmra.mrb[0].mxu0 %v2559
  %v2908 = vpop.f32.mrb[0].mxu0
  %v2909 = vadd.f32 0.0, %v2908
  %v2910 = vpop.f32.mrb[0].mxu0
  %2911 = vmatprep.mubr.f32.mxu0 0.0
  %2912 = vmatmul.mubr.f32.gmra.mrb[0].mxu0 %v2562
  %v2913 = vpop.f32.mrb[0].mxu0
  %v2914 = vadd.f32 0.0, %v2913
  %v2915 = vpop.f32.mrb[0].mxu0
  %2916 = vmatprep.mubr.f32.mxu0 0.0
  %2917 = vmatmul.mubr.f32.gmra.mrb[0].mxu0 %v2565
  %v2918 = vpop.f32.mrb[0].mxu0
  %v2919 = vadd.f32 0.0, %v2918
  %v2920 = vpop.f32.mrb[0].mxu0
  %2921 = vmatprep.mubr.f32.mxu0 0.0
  %2922 = vmatmul.mubr.f32.gmra.mrb[0].mxu0 %v2568
  %v2923 = vpop.f32.mrb[0].mxu0
  %v2924 = vadd.f32 0.0, %v2923
  %v2925 = vpop.f32.mrb[0].mxu0
  %2926 = vmatprep.mubr.f32.mxu0 0.0
  %2927 = vmatmul.mubr.f32.gmra.mrb[0].mxu0 %v2571
  %v2928 = vpop.f32.mrb[0].mxu0
  %v2929 = vadd.f32 0.0, %v2928
  %v2930 = vpop.f32.mrb[0].mxu0
  %2931 = vmatprep.mubr.f32.mxu0 0.0
  %2932 = vmatmul.mubr.f32.gmra.mrb[0].mxu0 %v2574
  %v2933 = vpop.f32.mrb[0].mxu0
  %v2934 = vadd.f32 0.0, %v2933
  %v2935 = vpop.f32.mrb[0].mxu0
  %2936 = vmatprep.mubr.f32.mxu0 0.0
  %2937 = vmatmul.mubr.f32.gmra.mrb[0].mxu0 %v2577
  %v2938 = vpop.f32.mrb[0].mxu0
  %v2939 = vadd.f32 0.0, %v2938
  %v2940 = vpop.f32.mrb[0].mxu0
  %2941 = vmatprep.mubr.f32.mxu0 0.0
  %2942 = vmatmul.mubr.f32.gmra.mrb[0].mxu0 %v2580
  %v2943 = vpop.f32.mrb[0].mxu0
  %v2944 = vadd.f32 0.0, %v2943
  %v2945 = vpop.f32.mrb[0].mxu0
  %2946 = vmatprep.mubr.f32.mxu0 0.0
  %2947 = vmatmul.mubr.f32.gmra.mrb[0].mxu0 %v2583
  %v2948 = vpop.f32.mrb[0].mxu0
  %v2949 = vadd.f32 0.0, %v2948
  %v2950 = vpop.f32.mrb[0].mxu0
  %2951 = vmatprep.mubr.f32.mxu0 0.0
  %2952 = vmatmul.mubr.f32.gmra.mrb[0].mxu0 %v2586
  %v2953 = vpop.f32.mrb[0].mxu0
  %v2954 = vadd.f32 0.0, %v2953
  %v2955 = vpop.f32.mrb[0].mxu0
  %2956 = vmatprep.mubr.f32.mxu0 0.0
  %2957 = vmatmul.mubr.f32.gmra.mrb[0].mxu0 %v2589
  %v2958 = vpop.f32.mrb[0].mxu0
  %v2959 = vadd.f32 0.0, %v2958
  %v2960 = vpop.f32.mrb[0].mxu0
  %2961 = vmatprep.mubr.f32.mxu0 0.0
  %2962 = vmatmul.mubr.f32.gmra.mrb[0].mxu0 %v2592
  %v2963 = vpop.f32.mrb[0].mxu0
  %v2964 = vadd.f32 0.0, %v2963
  %v2965 = vpop.f32.mrb[0].mxu0
  %2966 = vmatprep.mubr.f32.mxu0 0.0
  %2967 = vmatmul.mubr.f32.gmra.mrb[0].mxu0 %v2595
  %v2968 = vpop.f32.mrb[0].mxu0
  %v2969 = vadd.f32 0.0, %v2968
  %v2970 = vpop.f32.mrb[0].mxu0
  %2971 = vmatprep.mubr.f32.mxu0 0.0
  %2972 = vmatmul.mubr.f32.gmra.mrb[0].mxu0 %v2598
  %v2973 = vpop.f32.mrb[0].mxu0
  %v2974 = vadd.f32 0.0, %v2973
  %v2975 = vpop.f32.mrb[0].mxu0
  %2976 = vmatprep.mubr.f32.mxu0 0.0
  %2977 = vmatmul.mubr.f32.gmra.mrb[0].mxu0 %v2601
  %v2978 = vpop.f32.mrb[0].mxu0
  %v2979 = vadd.f32 0.0, %v2978
  %v2980 = vpop.f32.mrb[0].mxu0
  %2981 = vmatprep.mubr.f32.mxu0 0.0
  %2982 = vmatmul.mubr.f32.gmra.mrb[0].mxu0 %v2604
  %v2983 = vpop.f32.mrb[0].mxu0
  %v2984 = vadd.f32 0.0, %v2983
  %v2985 = vpop.f32.mrb[0].mxu0
  %2986 = vmatprep.mubr.f32.mxu0 0.0
  %2987 = vmatmul.mubr.f32.gmra.mrb[0].mxu0 %v2607
  %v2988 = vpop.f32.mrb[0].mxu0
  %v2989 = vadd.f32 0.0, %v2988
  %v2990 = vpop.f32.mrb[0].mxu0
  %2991 = vmatprep.mubr.f32.mxu0 0.0
  %2992 = vmatmul.mubr.f32.gmra.mrb[0].mxu0 %v2610
  %v2993 = vpop.f32.mrb[0].mxu0
  %v2994 = vadd.f32 0.0, %v2993
  %v2995 = vpop.f32.mrb[0].mxu0
  %2996 = vdwg.mxu0
  %2997 = vmatprep.subr.mxu0 0.0
  %2998 = vmatpush1.msra.mxu0 %v2418
  %2999 = vmatprep.subr.mxu0 0.0
  %3000 = vmatpush1.msra.mxu0 0.0
  %3001 = vmatprep.subr.mxu0 0.0
  %3002 = vmatpush1.msra.mxu0 0.0
  %3003 = vmatprep.subr.mxu0 0.0
  %3004 = vmatpush1.msra.mxu0 0.0
  %3005 = vmatprep.subr.mxu0 0.0
  %3006 = vmatpush1.msra.mxu0 0.0
  %3007 = vmatprep.subr.mxu0 0.0
  %3008 = vmatpush1.msra.mxu0 0.0
  %3009 = vmatprep.subr.mxu0 0.0
  %3010 = vmatpush1.msra.mxu0 0.0
  %3011 = vmatprep.subr.mxu0 0.0
  %3012 = vmatpush1.msra.mxu0 0.0
  %3013 = vmatprep.subr.mxu0 0.0
  %3014 = vmatpush1.msra.mxu0 0.0
  %3015 = vmatprep.subr.mxu0 0.0
  %3016 = vmatpush1.msra.mxu0 0.0
  %3017 = vmatprep.subr.mxu0 0.0
  %3018 = vmatpush1.msra.mxu0 0.0
  %3019 = vmatprep.subr.mxu0 0.0
  %3020 = vmatpush1.msra.mxu0 0.0
  %3021 = vmatprep.subr.mxu0 0.0
  %3022 = vmatpush1.msra.mxu0 0.0
  %3023 = vmatprep.subr.mxu0 0.0
  %3024 = vmatpush1.msra.mxu0 0.0
  %3025 = vmatprep.subr.mxu0 0.0
  %3026 = vmatpush1.msra.mxu0 0.0
  %3027 = vmatprep.subr.mxu0 0.0
  %3028 = vmatpush1.msra.mxu0 0.0
  %3029 = vmatprep.subr.mxu0 0.0
  %3030 = vmatpush1.msra.mxu0 0.0
  %3031 = vmatprep.subr.mxu0 0.0
  %3032 = vmatpush1.msra.mxu0 0.0
  %3033 = vmatprep.subr.mxu0 0.0
  %3034 = vmatpush1.msra.mxu0 0.0
  %3035 = vmatprep.subr.mxu0 0.0
  %3036 = vmatpush1.msra.mxu0 0.0
  %3037 = vmatprep.subr.mxu0 0.0
  %3038 = vmatpush1.msra.mxu0 0.0
  %3039 = vmatprep.subr.mxu0 0.0
  %3040 = vmatpush1.msra.mxu0 0.0
  %3041 = vmatprep.subr.mxu0 0.0
  %3042 = vmatpush1.msra.mxu0 0.0
  %3043 = vmatprep.subr.mxu0 0.0
  %3044 = vmatpush1.msra.mxu0 0.0
  %3045 = vmatprep.subr.mxu0 0.0
  %3046 = vmatpush1.msra.mxu0 0.0
  %3047 = vmatprep.subr.mxu0 0.0
  %3048 = vmatpush1.msra.mxu0 0.0
  %3049 = vmatprep.subr.mxu0 0.0
  %3050 = vmatpush1.msra.mxu0 0.0
  %3051 = vmatprep.subr.mxu0 0.0
  %3052 = vmatpush1.msra.mxu0 0.0
  %3053 = vmatprep.subr.mxu0 0.0
  %3054 = vmatpush1.msra.mxu0 0.0
  %3055 = vmatprep.subr.mxu0 0.0
  %3056 = vmatpush1.msra.mxu0 0.0
  %3057 = vmatprep.subr.mxu0 0.0
  %3058 = vmatpush1.msra.mxu0 0.0
  %3059 = vmatprep.subr.mxu0 0.0
  %3060 = vmatpush1.msra.mxu0 0.0
  %3061 = vmatprep.mubr.f32.mxu0 0.0
  %3062 = vmatmul.mubr.f32.gmra.mrb[0].mxu0 %v729
  %v3063 = vpop.f32.mrb[0].mxu0
  %v3064 = vadd.f32 %v2679, %v3063
  %v3065 = vpop.f32.mrb[0].mxu0
  %3066 = vmatprep.mubr.f32.mxu0 0.0
  %3067 = vmatmul.mubr.f32.gmra.mrb[0].mxu0 %v732
  %v3068 = vpop.f32.mrb[0].mxu0
  %v3069 = vadd.f32 %v2684, %v3068
  %v3070 = vpop.f32.mrb[0].mxu0
  %3071 = vmatprep.mubr.f32.mxu0 0.0
  %3072 = vmatmul.mubr.f32.gmra.mrb[0].mxu0 %v735
  %v3073 = vpop.f32.mrb[0].mxu0
  %v3074 = vadd.f32 %v2689, %v3073
  %v3075 = vpop.f32.mrb[0].mxu0
  %3076 = vmatprep.mubr.f32.mxu0 0.0
  %3077 = vmatmul.mubr.f32.gmra.mrb[0].mxu0 %v738
  %v3078 = vpop.f32.mrb[0].mxu0
  %v3079 = vadd.f32 %v2694, %v3078
  %v3080 = vpop.f32.mrb[0].mxu0
  %3081 = vmatprep.mubr.f32.mxu0 0.0
  %3082 = vmatmul.mubr.f32.gmra.mrb[0].mxu0 %v741
  %v3083 = vpop.f32.mrb[0].mxu0
  %v3084 = vadd.f32 %v2699, %v3083
  %v3085 = vpop.f32.mrb[0].mxu0
  %3086 = vmatprep.mubr.f32.mxu0 0.0
  %3087 = vmatmul.mubr.f32.gmra.mrb[0].mxu0 %v744
  %v3088 = vpop.f32.mrb[0].mxu0
  %v3089 = vadd.f32 %v2704, %v3088
  %v3090 = vpop.f32.mrb[0].mxu0
  %3091 = vmatprep.mubr.f32.mxu0 0.0
  %3092 = vmatmul.mubr.f32.gmra.mrb[0].mxu0 %v747
  %v3093 = vpop.f32.mrb[0].mxu0
  %v3094 = vadd.f32 %v2709, %v3093
  %v3095 = vpop.f32.mrb[0].mxu0
  %3096 = vmatprep.mubr.f32.mxu0 0.0
  %3097 = vmatmul.mubr.f32.gmra.mrb[0].mxu0 %v750
  %v3098 = vpop.f32.mrb[0].mxu0
  %v3099 = vadd.f32 %v2714, %v3098
  %v3100 = vpop.f32.mrb[0].mxu0
  %3101 = vmatprep.mubr.f32.mxu0 0.0
  %3102 = vmatmul.mubr.f32.gmra.mrb[0].mxu0 %v753
  %v3103 = vpop.f32.mrb[0].mxu0
  %v3104 = vadd.f32 %v2719, %v3103
  %v3105 = vpop.f32.mrb[0].mxu0
  %3106 = vmatprep.mubr.f32.mxu0 0.0
  %3107 = vmatmul.mubr.f32.gmra.mrb[0].mxu0 %v756
  %v3108 = vpop.f32.mrb[0].mxu0
  %v3109 = vadd.f32 %v2724, %v3108
  %v3110 = vpop.f32.mrb[0].mxu0
  %3111 = vmatprep.mubr.f32.mxu0 0.0
  %3112 = vmatmul.mubr.f32.gmra.mrb[0].mxu0 %v759
  %v3113 = vpop.f32.mrb[0].mxu0
  %v3114 = vadd.f32 %v2729, %v3113
  %v3115 = vpop.f32.mrb[0].mxu0
  %3116 = vmatprep.mubr.f32.mxu0 0.0
  %3117 = vmatmul.mubr.f32.gmra.mrb[0].mxu0 %v762
  %v3118 = vpop.f32.mrb[0].mxu0
  %v3119 = vadd.f32 %v2734, %v3118
  %v3120 = vpop.f32.mrb[0].mxu0
  %3121 = vmatprep.mubr.f32.mxu0 0.0
  %3122 = vmatmul.mubr.f32.gmra.mrb[0].mxu0 %v765
  %v3123 = vpop.f32.mrb[0].mxu0
  %v3124 = vadd.f32 %v2739, %v3123
  %v3125 = vpop.f32.mrb[0].mxu0
  %3126 = vmatprep.mubr.f32.mxu0 0.0
  %3127 = vmatmul.mubr.f32.gmra.mrb[0].mxu0 %v768
  %v3128 = vpop.f32.mrb[0].mxu0
  %v3129 = vadd.f32 %v2744, %v3128
  %v3130 = vpop.f32.mrb[0].mxu0
  %3131 = vmatprep.mubr.f32.mxu0 0.0
  %3132 = vmatmul.mubr.f32.gmra.mrb[0].mxu0 %v771
  %v3133 = vpop.f32.mrb[0].mxu0
  %v3134 = vadd.f32 %v2749, %v3133
  %v3135 = vpop.f32.mrb[0].mxu0
  %3136 = vmatprep.mubr.f32.mxu0 0.0
  %3137 = vmatmul.mubr.f32.gmra.mrb[0].mxu0 %v774
  %v3138 = vpop.f32.mrb[0].mxu0
  %v3139 = vadd.f32 %v2754, %v3138
  %v3140 = vpop.f32.mrb[0].mxu0
  %3141 = vmatprep.mubr.f32.mxu0 0.0
  %3142 = vmatmul.mubr.f32.gmra.mrb[0].mxu0 %v777
  %v3143 = vpop.f32.mrb[0].mxu0
  %v3144 = vadd.f32 %v2759, %v3143
  %v3145 = vpop.f32.mrb[0].mxu0
  %3146 = vmatprep.mubr.f32.mxu0 0.0
  %3147 = vmatmul.mubr.f32.gmra.mrb[0].mxu0 %v780
  %v3148 = vpop.f32.mrb[0].mxu0
  %v3149 = vadd.f32 %v2764, %v3148
  %v3150 = vpop.f32.mrb[0].mxu0
  %3151 = vmatprep.mubr.f32.mxu0 0.0
  %3152 = vmatmul.mubr.f32.gmra.mrb[0].mxu0 %v783
  %v3153 = vpop.f32.mrb[0].mxu0
  %v3154 = vadd.f32 %v2769, %v3153
  %v3155 = vpop.f32.mrb[0].mxu0
  %3156 = vmatprep.mubr.f32.mxu0 0.0
  %3157 = vmatmul.mubr.f32.gmra.mrb[0].mxu0 %v786
  %v3158 = vpop.f32.mrb[0].mxu0
  %v3159 = vadd.f32 %v2774, %v3158
  %v3160 = vpop.f32.mrb[0].mxu0
  %3161 = vmatprep.mubr.f32.mxu0 0.0
  %3162 = vmatmul.mubr.f32.gmra.mrb[0].mxu0 %v789
  %v3163 = vpop.f32.mrb[0].mxu0
  %v3164 = vadd.f32 %v2779, %v3163
  %v3165 = vpop.f32.mrb[0].mxu0
  %3166 = vmatprep.mubr.f32.mxu0 0.0
  %3167 = vmatmul.mubr.f32.gmra.mrb[0].mxu0 %v792
  %v3168 = vpop.f32.mrb[0].mxu0
  %v3169 = vadd.f32 %v2784, %v3168
  %v3170 = vpop.f32.mrb[0].mxu0
  %3171 = vmatprep.mubr.f32.mxu0 0.0
  %3172 = vmatmul.mubr.f32.gmra.mrb[0].mxu0 %v795
  %v3173 = vpop.f32.mrb[0].mxu0
  %v3174 = vadd.f32 %v2789, %v3173
  %v3175 = vpop.f32.mrb[0].mxu0
  %3176 = vmatprep.mubr.f32.mxu0 0.0
  %3177 = vmatmul.mubr.f32.gmra.mrb[0].mxu0 %v798
  %v3178 = vpop.f32.mrb[0].mxu0
  %v3179 = vadd.f32 %v2794, %v3178
  %v3180 = vpop.f32.mrb[0].mxu0
  %3181 = vmatprep.mubr.f32.mxu0 0.0
  %3182 = vmatmul.mubr.f32.gmra.mrb[0].mxu0 %v801
  %v3183 = vpop.f32.mrb[0].mxu0
  %v3184 = vadd.f32 %v2799, %v3183
  %v3185 = vpop.f32.mrb[0].mxu0
  %3186 = vmatprep.mubr.f32.mxu0 0.0
  %3187 = vmatmul.mubr.f32.gmra.mrb[0].mxu0 %v804
  %v3188 = vpop.f32.mrb[0].mxu0
  %v3189 = vadd.f32 %v2804, %v3188
  %v3190 = vpop.f32.mrb[0].mxu0
  %3191 = vmatprep.mubr.f32.mxu0 0.0
  %3192 = vmatmul.mubr.f32.gmra.mrb[0].mxu0 %v807
  %v3193 = vpop.f32.mrb[0].mxu0
  %v3194 = vadd.f32 %v2809, %v3193
  %v3195 = vpop.f32.mrb[0].mxu0
  %3196 = vmatprep.mubr.f32.mxu0 0.0
  %3197 = vmatmul.mubr.f32.gmra.mrb[0].mxu0 %v810
  %v3198 = vpop.f32.mrb[0].mxu0
  %v3199 = vadd.f32 %v2814, %v3198
  %v3200 = vpop.f32.mrb[0].mxu0
  %3201 = vmatprep.mubr.f32.mxu0 0.0
  %3202 = vmatmul.mubr.f32.gmra.mrb[0].mxu0 %v813
  %v3203 = vpop.f32.mrb[0].mxu0
  %v3204 = vadd.f32 %v2819, %v3203
  %v3205 = vpop.f32.mrb[0].mxu0
  %3206 = vmatprep.mubr.f32.mxu0 0.0
  %3207 = vmatmul.mubr.f32.gmra.mrb[0].mxu0 %v816
  %v3208 = vpop.f32.mrb[0].mxu0
  %v3209 = vadd.f32 %v2824, %v3208
  %v3210 = vpop.f32.mrb[0].mxu0
  %3211 = vmatprep.mubr.f32.mxu0 0.0
  %3212 = vmatmul.mubr.f32.gmra.mrb[0].mxu0 %v819
  %v3213 = vpop.f32.mrb[0].mxu0
  %v3214 = vadd.f32 %v2829, %v3213
  %v3215 = vpop.f32.mrb[0].mxu0
  %3216 = vmatprep.mubr.f32.mxu0 0.0
  %3217 = vmatmul.mubr.f32.gmra.mrb[0].mxu0 %v822
  %v3218 = vpop.f32.mrb[0].mxu0
  %v3219 = vadd.f32 %v2834, %v3218
  %v3220 = vpop.f32.mrb[0].mxu0
  %3221 = vmatprep.mubr.f32.mxu0 0.0
  %3222 = vmatmul.mubr.f32.gmra.mrb[0].mxu0 %v825
  %v3223 = vpop.f32.mrb[0].mxu0
  %v3224 = vadd.f32 %v2839, %v3223
  %v3225 = vpop.f32.mrb[0].mxu0
  %3226 = vmatprep.mubr.f32.mxu0 0.0
  %3227 = vmatmul.mubr.f32.gmra.mrb[0].mxu0 %v828
  %v3228 = vpop.f32.mrb[0].mxu0
  %v3229 = vadd.f32 %v2844, %v3228
  %v3230 = vpop.f32.mrb[0].mxu0
  %3231 = vmatprep.mubr.f32.mxu0 0.0
  %3232 = vmatmul.mubr.f32.gmra.mrb[0].mxu0 %v831
  %v3233 = vpop.f32.mrb[0].mxu0
  %v3234 = vadd.f32 %v2849, %v3233
  %v3235 = vpop.f32.mrb[0].mxu0
  %3236 = vmatprep.mubr.f32.mxu0 0.0
  %3237 = vmatmul.mubr.f32.gmra.mrb[0].mxu0 %v834
  %v3238 = vpop.f32.mrb[0].mxu0
  %v3239 = vadd.f32 %v2854, %v3238
  %v3240 = vpop.f32.mrb[0].mxu0
  %3241 = vmatprep.mubr.f32.mxu0 0.0
  %3242 = vmatmul.mubr.f32.gmra.mrb[0].mxu0 %v837
  %v3243 = vpop.f32.mrb[0].mxu0
  %v3244 = vadd.f32 %v2859, %v3243
  %v3245 = vpop.f32.mrb[0].mxu0
  %3246 = vmatprep.mubr.f32.mxu0 0.0
  %3247 = vmatmul.mubr.f32.gmra.mrb[0].mxu0 %v840
  %v3248 = vpop.f32.mrb[0].mxu0
  %v3249 = vadd.f32 %v2864, %v3248
  %v3250 = vpop.f32.mrb[0].mxu0
  %3251 = vmatprep.mubr.f32.mxu0 0.0
  %3252 = vmatmul.mubr.f32.gmra.mrb[0].mxu0 %v843
  %v3253 = vpop.f32.mrb[0].mxu0
  %v3254 = vadd.f32 %v2869, %v3253
  %v3255 = vpop.f32.mrb[0].mxu0
  %3256 = vmatprep.mubr.f32.mxu0 0.0
  %3257 = vmatmul.mubr.f32.gmra.mrb[0].mxu0 %v846
  %v3258 = vpop.f32.mrb[0].mxu0
  %v3259 = vadd.f32 %v2874, %v3258
  %v3260 = vpop.f32.mrb[0].mxu0
  %3261 = vmatprep.mubr.f32.mxu0 0.0
  %3262 = vmatmul.mubr.f32.gmra.mrb[0].mxu0 %v849
  %v3263 = vpop.f32.mrb[0].mxu0
  %v3264 = vadd.f32 %v2879, %v3263
  %v3265 = vpop.f32.mrb[0].mxu0
  %3266 = vmatprep.mubr.f32.mxu0 0.0
  %3267 = vmatmul.mubr.f32.gmra.mrb[0].mxu0 %v852
  %v3268 = vpop.f32.mrb[0].mxu0
  %v3269 = vadd.f32 %v2884, %v3268
  %v3270 = vpop.f32.mrb[0].mxu0
  %3271 = vmatprep.mubr.f32.mxu0 0.0
  %3272 = vmatmul.mubr.f32.gmra.mrb[0].mxu0 %v855
  %v3273 = vpop.f32.mrb[0].mxu0
  %v3274 = vadd.f32 %v2889, %v3273
  %v3275 = vpop.f32.mrb[0].mxu0
  %3276 = vmatprep.mubr.f32.mxu0 0.0
  %3277 = vmatmul.mubr.f32.gmra.mrb[0].mxu0 %v858
  %v3278 = vpop.f32.mrb[0].mxu0
  %v3279 = vadd.f32 %v2894, %v3278
  %v3280 = vpop.f32.mrb[0].mxu0
  %3281 = vmatprep.mubr.f32.mxu0 0.0
  %3282 = vmatmul.mubr.f32.gmra.mrb[0].mxu0 %v861
  %v3283 = vpop.f32.mrb[0].mxu0
  %v3284 = vadd.f32 %v2899, %v3283
  %v3285 = vpop.f32.mrb[0].mxu0
  %3286 = vmatprep.mubr.f32.mxu0 0.0
  %3287 = vmatmul.mubr.f32.gmra.mrb[0].mxu0 %v864
  %v3288 = vpop.f32.mrb[0].mxu0
  %v3289 = vadd.f32 %v2904, %v3288
  %v3290 = vpop.f32.mrb[0].mxu0
  %3291 = vmatprep.mubr.f32.mxu0 0.0
  %3292 = vmatmul.mubr.f32.gmra.mrb[0].mxu0 %v867
  %v3293 = vpop.f32.mrb[0].mxu0
  %v3294 = vadd.f32 %v2909, %v3293
  %v3295 = vpop.f32.mrb[0].mxu0
  %3296 = vmatprep.mubr.f32.mxu0 0.0
  %3297 = vmatmul.mubr.f32.gmra.mrb[0].mxu0 %v870
  %v3298 = vpop.f32.mrb[0].mxu0
  %v3299 = vadd.f32 %v2914, %v3298
  %v3300 = vpop.f32.mrb[0].mxu0
  %3301 = vmatprep.mubr.f32.mxu0 0.0
  %3302 = vmatmul.mubr.f32.gmra.mrb[0].mxu0 %v873
  %v3303 = vpop.f32.mrb[0].mxu0
  %v3304 = vadd.f32 %v2919, %v3303
  %v3305 = vpop.f32.mrb[0].mxu0
  %3306 = vmatprep.mubr.f32.mxu0 0.0
  %3307 = vmatmul.mubr.f32.gmra.mrb[0].mxu0 %v876
  %v3308 = vpop.f32.mrb[0].mxu0
  %v3309 = vadd.f32 %v2924, %v3308
  %v3310 = vpop.f32.mrb[0].mxu0
  %3311 = vmatprep.mubr.f32.mxu0 0.0
  %3312 = vmatmul.mubr.f32.gmra.mrb[0].mxu0 %v879
  %v3313 = vpop.f32.mrb[0].mxu0
  %v3314 = vadd.f32 %v2929, %v3313
  %v3315 = vpop.f32.mrb[0].mxu0
  %3316 = vmatprep.mubr.f32.mxu0 0.0
  %3317 = vmatmul.mubr.f32.gmra.mrb[0].mxu0 %v882
  %v3318 = vpop.f32.mrb[0].mxu0
  %v3319 = vadd.f32 %v2934, %v3318
  %v3320 = vpop.f32.mrb[0].mxu0
  %3321 = vmatprep.mubr.f32.mxu0 0.0
  %3322 = vmatmul.mubr.f32.gmra.mrb[0].mxu0 %v885
  %v3323 = vpop.f32.mrb[0].mxu0
  %v3324 = vadd.f32 %v2939, %v3323
  %v3325 = vpop.f32.mrb[0].mxu0
  %3326 = vmatprep.mubr.f32.mxu0 0.0
  %3327 = vmatmul.mubr.f32.gmra.mrb[0].mxu0 %v888
  %v3328 = vpop.f32.mrb[0].mxu0
  %v3329 = vadd.f32 %v2944, %v3328
  %v3330 = vpop.f32.mrb[0].mxu0
  %3331 = vmatprep.mubr.f32.mxu0 0.0
  %3332 = vmatmul.mubr.f32.gmra.mrb[0].mxu0 %v891
  %v3333 = vpop.f32.mrb[0].mxu0
  %v3334 = vadd.f32 %v2949, %v3333
  %v3335 = vpop.f32.mrb[0].mxu0
  %3336 = vmatprep.mubr.f32.mxu0 0.0
  %3337 = vmatmul.mubr.f32.gmra.mrb[0].mxu0 %v894
  %v3338 = vpop.f32.mrb[0].mxu0
  %v3339 = vadd.f32 %v2954, %v3338
  %v3340 = vpop.f32.mrb[0].mxu0
  %3341 = vmatprep.mubr.f32.mxu0 0.0
  %3342 = vmatmul.mubr.f32.gmra.mrb[0].mxu0 %v897
  %v3343 = vpop.f32.mrb[0].mxu0
  %v3344 = vadd.f32 %v2959, %v3343
  %v3345 = vpop.f32.mrb[0].mxu0
  %3346 = vmatprep.mubr.f32.mxu0 0.0
  %3347 = vmatmul.mubr.f32.gmra.mrb[0].mxu0 %v900
  %v3348 = vpop.f32.mrb[0].mxu0
  %v3349 = vadd.f32 %v2964, %v3348
  %v3350 = vpop.f32.mrb[0].mxu0
  %3351 = vmatprep.mubr.f32.mxu0 0.0
  %3352 = vmatmul.mubr.f32.gmra.mrb[0].mxu0 %v903
  %v3353 = vpop.f32.mrb[0].mxu0
  %v3354 = vadd.f32 %v2969, %v3353
  %v3355 = vpop.f32.mrb[0].mxu0
  %3356 = vmatprep.mubr.f32.mxu0 0.0
  %3357 = vmatmul.mubr.f32.gmra.mrb[0].mxu0 %v906
  %v3358 = vpop.f32.mrb[0].mxu0
  %v3359 = vadd.f32 %v2974, %v3358
  %v3360 = vpop.f32.mrb[0].mxu0
  %3361 = vmatprep.mubr.f32.mxu0 0.0
  %3362 = vmatmul.mubr.f32.gmra.mrb[0].mxu0 %v909
  %v3363 = vpop.f32.mrb[0].mxu0
  %v3364 = vadd.f32 %v2979, %v3363
  %v3365 = vpop.f32.mrb[0].mxu0
  %3366 = vmatprep.mubr.f32.mxu0 0.0
  %3367 = vmatmul.mubr.f32.gmra.mrb[0].mxu0 %v912
  %v3368 = vpop.f32.mrb[0].mxu0
  %v3369 = vadd.f32 %v2984, %v3368
  %v3370 = vpop.f32.mrb[0].mxu0
  %3371 = vmatprep.mubr.f32.mxu0 0.0
  %3372 = vmatmul.mubr.f32.gmra.mrb[0].mxu0 %v915
  %v3373 = vpop.f32.mrb[0].mxu0
  %v3374 = vadd.f32 %v2989, %v3373
  %v3375 = vpop.f32.mrb[0].mxu0
  %3376 = vmatprep.mubr.f32.mxu0 0.0
  %3377 = vmatmul.mubr.f32.gmra.mrb[0].mxu0 %v918
  %v3378 = vpop.f32.mrb[0].mxu0
  %v3379 = vadd.f32 %v2994, %v3378
  %v3380 = vpop.f32.mrb[0].mxu0
  %3381 = vdwg.mxu0
  %v3382 = vld [vmem:[%s4] sm:$0x1]
  %v3384 = vlaneseq
  %v3385 = vshrl.u32 %v3384, 7
  %v3386 = vsub.s32 0, %v3385
  %v3387 = vrot.slane %v3382, %v3386
  %v3389 = vadd.f32 %v3064, %v3387
  %v3390 = vadd.f32 %v3069, %v3387
  %v3391 = vadd.f32 %v3074, %v3387
  %v3392 = vadd.f32 %v3079, %v3387
  %v3393 = vadd.f32 %v3084, %v3387
  %v3394 = vadd.f32 %v3089, %v3387
  %v3395 = vadd.f32 %v3094, %v3387
  %v3396 = vadd.f32 %v3099, %v3387
  %v3397 = vadd.f32 %v3104, %v3387
  %v3398 = vadd.f32 %v3109, %v3387
  %v3399 = vadd.f32 %v3114, %v3387
  %v3400 = vadd.f32 %v3119, %v3387
  %v3401 = vadd.f32 %v3124, %v3387
  %v3402 = vadd.f32 %v3129, %v3387
  %v3403 = vadd.f32 %v3134, %v3387
  %v3404 = vadd.f32 %v3139, %v3387
  %v3405 = vadd.f32 %v3144, %v3387
  %v3406 = vadd.f32 %v3149, %v3387
  %v3407 = vadd.f32 %v3154, %v3387
  %v3408 = vadd.f32 %v3159, %v3387
  %v3409 = vadd.f32 %v3164, %v3387
  %v3410 = vadd.f32 %v3169, %v3387
  %v3411 = vadd.f32 %v3174, %v3387
  %v3412 = vadd.f32 %v3179, %v3387
  %v3413 = vadd.f32 %v3184, %v3387
  %v3414 = vadd.f32 %v3189, %v3387
  %v3415 = vadd.f32 %v3194, %v3387
  %v3416 = vadd.f32 %v3199, %v3387
  %v3417 = vadd.f32 %v3204, %v3387
  %v3418 = vadd.f32 %v3209, %v3387
  %v3419 = vadd.f32 %v3214, %v3387
  %v3420 = vadd.f32 %v3219, %v3387
  %v3421 = vadd.f32 %v3224, %v3387
  %v3422 = vadd.f32 %v3229, %v3387
  %v3423 = vadd.f32 %v3234, %v3387
  %v3424 = vadd.f32 %v3239, %v3387
  %v3425 = vadd.f32 %v3244, %v3387
  %v3426 = vadd.f32 %v3249, %v3387
  %v3427 = vadd.f32 %v3254, %v3387
  %v3428 = vadd.f32 %v3259, %v3387
  %v3429 = vadd.f32 %v3264, %v3387
  %v3430 = vadd.f32 %v3269, %v3387
  %v3431 = vadd.f32 %v3274, %v3387
  %v3432 = vadd.f32 %v3279, %v3387
  %v3433 = vadd.f32 %v3284, %v3387
  %v3434 = vadd.f32 %v3289, %v3387
  %v3435 = vadd.f32 %v3294, %v3387
  %v3436 = vadd.f32 %v3299, %v3387
  %v3437 = vadd.f32 %v3304, %v3387
  %v3438 = vadd.f32 %v3309, %v3387
  %v3439 = vadd.f32 %v3314, %v3387
  %v3440 = vadd.f32 %v3319, %v3387
  %v3441 = vadd.f32 %v3324, %v3387
  %v3442 = vadd.f32 %v3329, %v3387
  %v3443 = vadd.f32 %v3334, %v3387
  %v3444 = vadd.f32 %v3339, %v3387
  %v3445 = vadd.f32 %v3344, %v3387
  %v3446 = vadd.f32 %v3349, %v3387
  %v3447 = vadd.f32 %v3354, %v3387
  %v3448 = vadd.f32 %v3359, %v3387
  %v3449 = vadd.f32 %v3364, %v3387
  %v3450 = vadd.f32 %v3369, %v3387
  %v3451 = vadd.f32 %v3374, %v3387
  %v3452 = vadd.f32 %v3379, %v3387
  %s3453 = scalar_lea.vmem %s5, 32
  %3454 = vst.msk [vmem:[%s3453] sm:$0xff] %vm1376, %v3389
  %3455 = vst.msk [vmem:[%s3453 + $0x8] sm:$0xff] %vm1376, %v3390
  %3456 = vst.msk [vmem:[%s3453 + $0x40] sm:$0xff] %vm1376, %v3391
  %3457 = vst.msk [vmem:[%s3453 + $0x48] sm:$0xff] %vm1376, %v3392
  %3458 = vst.msk [vmem:[%s3453 + $0x80] sm:$0xff] %vm1376, %v3393
  %3459 = vst.msk [vmem:[%s3453 + $0x88] sm:$0xff] %vm1376, %v3394
  %3460 = vst.msk [vmem:[%s3453 + $0xc0] sm:$0xff] %vm1376, %v3395
  %3461 = vst.msk [vmem:[%s3453 + $0xc8] sm:$0xff] %vm1376, %v3396
  %3462 = vst.msk [vmem:[%s3453 + $0x100] sm:$0xff] %vm1376, %v3397
  %3463 = vst.msk [vmem:[%s3453 + $0x108] sm:$0xff] %vm1376, %v3398
  %3464 = vst.msk [vmem:[%s3453 + $0x140] sm:$0xff] %vm1376, %v3399
  %3465 = vst.msk [vmem:[%s3453 + $0x148] sm:$0xff] %vm1376, %v3400
  %3466 = vst.msk [vmem:[%s3453 + $0x180] sm:$0xff] %vm1376, %v3401
  %3467 = vst.msk [vmem:[%s3453 + $0x188] sm:$0xff] %vm1376, %v3402
  %3468 = vst.msk [vmem:[%s3453 + $0x1c0] sm:$0xff] %vm1376, %v3403
  %3469 = vst.msk [vmem:[%s3453 + $0x1c8] sm:$0xff] %vm1376, %v3404
  %3470 = vst.msk [vmem:[%s3453 + $0x200] sm:$0xff] %vm1376, %v3405
  %3471 = vst.msk [vmem:[%s3453 + $0x208] sm:$0xff] %vm1376, %v3406
  %3472 = vst.msk [vmem:[%s3453 + $0x240] sm:$0xff] %vm1376, %v3407
  %3473 = vst.msk [vmem:[%s3453 + $0x248] sm:$0xff] %vm1376, %v3408
  %3474 = vst.msk [vmem:[%s3453 + $0x280] sm:$0xff] %vm1376, %v3409
  %3475 = vst.msk [vmem:[%s3453 + $0x288] sm:$0xff] %vm1376, %v3410
  %3476 = vst.msk [vmem:[%s3453 + $0x2c0] sm:$0xff] %vm1376, %v3411
  %3477 = vst.msk [vmem:[%s3453 + $0x2c8] sm:$0xff] %vm1376, %v3412
  %3478 = vst.msk [vmem:[%s3453 + $0x300] sm:$0xff] %vm1376, %v3413
  %3479 = vst.msk [vmem:[%s3453 + $0x308] sm:$0xff] %vm1376, %v3414
  %3480 = vst.msk [vmem:[%s3453 + $0x340] sm:$0xff] %vm1376, %v3415
  %3481 = vst.msk [vmem:[%s3453 + $0x348] sm:$0xff] %vm1376, %v3416
  %3482 = vst.msk [vmem:[%s3453 + $0x380] sm:$0xff] %vm1376, %v3417
  %3483 = vst.msk [vmem:[%s3453 + $0x388] sm:$0xff] %vm1376, %v3418
  %3484 = vst.msk [vmem:[%s3453 + $0x3c0] sm:$0xff] %vm1376, %v3419
  %3485 = vst.msk [vmem:[%s3453 + $0x3c8] sm:$0xff] %vm1376, %v3420
  %3486 = vst.msk [vmem:[%s3453 + $0x400] sm:$0xff] %vm1376, %v3421
  %3487 = vst.msk [vmem:[%s3453 + $0x408] sm:$0xff] %vm1376, %v3422
  %3488 = vst.msk [vmem:[%s3453 + $0x440] sm:$0xff] %vm1376, %v3423
  %3489 = vst.msk [vmem:[%s3453 + $0x448] sm:$0xff] %vm1376, %v3424
  %3490 = vst.msk [vmem:[%s3453 + $0x480] sm:$0xff] %vm1376, %v3425
  %3491 = vst.msk [vmem:[%s3453 + $0x488] sm:$0xff] %vm1376, %v3426
  %3492 = vst.msk [vmem:[%s3453 + $0x4c0] sm:$0xff] %vm1376, %v3427
  %3493 = vst.msk [vmem:[%s3453 + $0x4c8] sm:$0xff] %vm1376, %v3428
  %3494 = vst.msk [vmem:[%s3453 + $0x500] sm:$0xff] %vm1376, %v3429
  %3495 = vst.msk [vmem:[%s3453 + $0x508] sm:$0xff] %vm1376, %v3430
  %3496 = vst.msk [vmem:[%s3453 + $0x540] sm:$0xff] %vm1376, %v3431
  %3497 = vst.msk [vmem:[%s3453 + $0x548] sm:$0xff] %vm1376, %v3432
  %3498 = vst.msk [vmem:[%s3453 + $0x580] sm:$0xff] %vm1376, %v3433
  %3499 = vst.msk [vmem:[%s3453 + $0x588] sm:$0xff] %vm1376, %v3434
  %3500 = vst.msk [vmem:[%s3453 + $0x5c0] sm:$0xff] %vm1376, %v3435
  %3501 = vst.msk [vmem:[%s3453 + $0x5c8] sm:$0xff] %vm1376, %v3436
  %3502 = vst.msk [vmem:[%s3453 + $0x600] sm:$0xff] %vm1376, %v3437
  %3503 = vst.msk [vmem:[%s3453 + $0x608] sm:$0xff] %vm1376, %v3438
  %3504 = vst.msk [vmem:[%s3453 + $0x640] sm:$0xff] %vm1376, %v3439
  %3505 = vst.msk [vmem:[%s3453 + $0x648] sm:$0xff] %vm1376, %v3440
  %3506 = vst.msk [vmem:[%s3453 + $0x680] sm:$0xff] %vm1376, %v3441
  %3507 = vst.msk [vmem:[%s3453 + $0x688] sm:$0xff] %vm1376, %v3442
  %3508 = vst.msk [vmem:[%s3453 + $0x6c0] sm:$0xff] %vm1376, %v3443
  %3509 = vst.msk [vmem:[%s3453 + $0x6c8] sm:$0xff] %vm1376, %v3444
  %3510 = vst.msk [vmem:[%s3453 + $0x700] sm:$0xff] %vm1376, %v3445
  %3511 = vst.msk [vmem:[%s3453 + $0x708] sm:$0xff] %vm1376, %v3446
  %3512 = vst.msk [vmem:[%s3453 + $0x740] sm:$0xff] %vm1376, %v3447
  %3513 = vst.msk [vmem:[%s3453 + $0x748] sm:$0xff] %vm1376, %v3448
  %3514 = vst.msk [vmem:[%s3453 + $0x780] sm:$0xff] %vm1376, %v3449
  %3515 = vst.msk [vmem:[%s3453 + $0x788] sm:$0xff] %vm1376, %v3450
  %3516 = vst.msk [vmem:[%s3453 + $0x7c0] sm:$0xff] %vm1376, %v3451
  %3517 = vst.msk [vmem:[%s3453 + $0x7c8] sm:$0xff] %vm1376, %v3452
  %s3518 = scalar_lea.vmem %s2, 24
  %v3519 = vld [vmem:[%s3518] sm:$0xff]
  %v3520 = vld [vmem:[%s1443] sm:$0xff]
  %3521 = vmatprep.subr.mxu0 0.0
  %3522 = vmatpush1.msra.mxu0 %v3520
  %3523 = vmatprep.subr.mxu0 0.0
  %3524 = vmatpush1.msra.mxu0 0.0
  %3525 = vmatprep.subr.mxu0 0.0
  %3526 = vmatpush1.msra.mxu0 0.0
  %3527 = vmatprep.subr.mxu0 0.0
  %3528 = vmatpush1.msra.mxu0 0.0
  %3529 = vmatprep.subr.mxu0 0.0
  %3530 = vmatpush1.msra.mxu0 0.0
  %3531 = vmatprep.subr.mxu0 0.0
  %3532 = vmatpush1.msra.mxu0 0.0
  %3533 = vmatprep.subr.mxu0 0.0
  %3534 = vmatpush1.msra.mxu0 0.0
  %3535 = vmatprep.subr.mxu0 0.0
  %3536 = vmatpush1.msra.mxu0 0.0
  %3537 = vmatprep.subr.mxu0 0.0
  %3538 = vmatpush1.msra.mxu0 0.0
  %3539 = vmatprep.subr.mxu0 0.0
  %3540 = vmatpush1.msra.mxu0 0.0
  %3541 = vmatprep.subr.mxu0 0.0
  %3542 = vmatpush1.msra.mxu0 0.0
  %3543 = vmatprep.subr.mxu0 0.0
  %3544 = vmatpush1.msra.mxu0 0.0
  %3545 = vmatprep.subr.mxu0 0.0
  %3546 = vmatpush1.msra.mxu0 0.0
  %3547 = vmatprep.subr.mxu0 0.0
  %3548 = vmatpush1.msra.mxu0 0.0
  %3549 = vmatprep.subr.mxu0 0.0
  %3550 = vmatpush1.msra.mxu0 0.0
  %3551 = vmatprep.subr.mxu0 0.0
  %3552 = vmatpush1.msra.mxu0 0.0
  %3553 = vmatprep.subr.mxu0 0.0
  %3554 = vmatpush1.msra.mxu0 0.0
  %3555 = vmatprep.subr.mxu0 0.0
  %3556 = vmatpush1.msra.mxu0 0.0
  %3557 = vmatprep.subr.mxu0 0.0
  %3558 = vmatpush1.msra.mxu0 0.0
  %3559 = vmatprep.subr.mxu0 0.0
  %3560 = vmatpush1.msra.mxu0 0.0
  %3561 = vmatprep.subr.mxu0 0.0
  %3562 = vmatpush1.msra.mxu0 0.0
  %3563 = vmatprep.subr.mxu0 0.0
  %3564 = vmatpush1.msra.mxu0 0.0
  %3565 = vmatprep.subr.mxu0 0.0
  %3566 = vmatpush1.msra.mxu0 0.0
  %3567 = vmatprep.subr.mxu0 0.0
  %3568 = vmatpush1.msra.mxu0 0.0
  %3569 = vmatprep.subr.mxu0 0.0
  %3570 = vmatpush1.msra.mxu0 0.0
  %3571 = vmatprep.subr.mxu0 0.0
  %3572 = vmatpush1.msra.mxu0 0.0
  %3573 = vmatprep.subr.mxu0 0.0
  %3574 = vmatpush1.msra.mxu0 0.0
  %3575 = vmatprep.subr.mxu0 0.0
  %3576 = vmatpush1.msra.mxu0 0.0
  %3577 = vmatprep.subr.mxu0 0.0
  %3578 = vmatpush1.msra.mxu0 0.0
  %3579 = vmatprep.subr.mxu0 0.0
  %3580 = vmatpush1.msra.mxu0 0.0
  %3581 = vmatprep.subr.mxu0 0.0
  %3582 = vmatpush1.msra.mxu0 0.0
  %3583 = vmatprep.subr.mxu0 0.0
  %3584 = vmatpush1.msra.mxu0 0.0
  %3585 = vmatprep.mubr.f32.mxu0 0.0
  %3586 = vmatmul.mubr.f32.gmra.mrb[0].mxu0 %v2421
  %v3587 = vpop.f32.mrb[0].mxu0
  %v3588 = vadd.f32 0.0, %v3587
  %v3589 = vpop.f32.mrb[0].mxu0
  %3590 = vmatprep.mubr.f32.mxu0 0.0
  %3591 = vmatmul.mubr.f32.gmra.mrb[0].mxu0 %v2424
  %v3592 = vpop.f32.mrb[0].mxu0
  %v3593 = vadd.f32 0.0, %v3592
  %v3594 = vpop.f32.mrb[0].mxu0
  %3595 = vmatprep.mubr.f32.mxu0 0.0
  %3596 = vmatmul.mubr.f32.gmra.mrb[0].mxu0 %v2427
  %v3597 = vpop.f32.mrb[0].mxu0
  %v3598 = vadd.f32 0.0, %v3597
  %v3599 = vpop.f32.mrb[0].mxu0
  %3600 = vmatprep.mubr.f32.mxu0 0.0
  %3601 = vmatmul.mubr.f32.gmra.mrb[0].mxu0 %v2430
  %v3602 = vpop.f32.mrb[0].mxu0
  %v3603 = vadd.f32 0.0, %v3602
  %v3604 = vpop.f32.mrb[0].mxu0
  %3605 = vmatprep.mubr.f32.mxu0 0.0
  %3606 = vmatmul.mubr.f32.gmra.mrb[0].mxu0 %v2433
  %v3607 = vpop.f32.mrb[0].mxu0
  %v3608 = vadd.f32 0.0, %v3607
  %v3609 = vpop.f32.mrb[0].mxu0
  %3610 = vmatprep.mubr.f32.mxu0 0.0
  %3611 = vmatmul.mubr.f32.gmra.mrb[0].mxu0 %v2436
  %v3612 = vpop.f32.mrb[0].mxu0
  %v3613 = vadd.f32 0.0, %v3612
  %v3614 = vpop.f32.mrb[0].mxu0
  %3615 = vmatprep.mubr.f32.mxu0 0.0
  %3616 = vmatmul.mubr.f32.gmra.mrb[0].mxu0 %v2439
  %v3617 = vpop.f32.mrb[0].mxu0
  %v3618 = vadd.f32 0.0, %v3617
  %v3619 = vpop.f32.mrb[0].mxu0
  %3620 = vmatprep.mubr.f32.mxu0 0.0
  %3621 = vmatmul.mubr.f32.gmra.mrb[0].mxu0 %v2442
  %v3622 = vpop.f32.mrb[0].mxu0
  %v3623 = vadd.f32 0.0, %v3622
  %v3624 = vpop.f32.mrb[0].mxu0
  %3625 = vmatprep.mubr.f32.mxu0 0.0
  %3626 = vmatmul.mubr.f32.gmra.mrb[0].mxu0 %v2445
  %v3627 = vpop.f32.mrb[0].mxu0
  %v3628 = vadd.f32 0.0, %v3627
  %v3629 = vpop.f32.mrb[0].mxu0
  %3630 = vmatprep.mubr.f32.mxu0 0.0
  %3631 = vmatmul.mubr.f32.gmra.mrb[0].mxu0 %v2448
  %v3632 = vpop.f32.mrb[0].mxu0
  %v3633 = vadd.f32 0.0, %v3632
  %v3634 = vpop.f32.mrb[0].mxu0
  %3635 = vmatprep.mubr.f32.mxu0 0.0
  %3636 = vmatmul.mubr.f32.gmra.mrb[0].mxu0 %v2451
  %v3637 = vpop.f32.mrb[0].mxu0
  %v3638 = vadd.f32 0.0, %v3637
  %v3639 = vpop.f32.mrb[0].mxu0
  %3640 = vmatprep.mubr.f32.mxu0 0.0
  %3641 = vmatmul.mubr.f32.gmra.mrb[0].mxu0 %v2454
  %v3642 = vpop.f32.mrb[0].mxu0
  %v3643 = vadd.f32 0.0, %v3642
  %v3644 = vpop.f32.mrb[0].mxu0
  %3645 = vmatprep.mubr.f32.mxu0 0.0
  %3646 = vmatmul.mubr.f32.gmra.mrb[0].mxu0 %v2457
  %v3647 = vpop.f32.mrb[0].mxu0
  %v3648 = vadd.f32 0.0, %v3647
  %v3649 = vpop.f32.mrb[0].mxu0
  %3650 = vmatprep.mubr.f32.mxu0 0.0
  %3651 = vmatmul.mubr.f32.gmra.mrb[0].mxu0 %v2460
  %v3652 = vpop.f32.mrb[0].mxu0
  %v3653 = vadd.f32 0.0, %v3652
  %v3654 = vpop.f32.mrb[0].mxu0
  %3655 = vmatprep.mubr.f32.mxu0 0.0
  %3656 = vmatmul.mubr.f32.gmra.mrb[0].mxu0 %v2463
  %v3657 = vpop.f32.mrb[0].mxu0
  %v3658 = vadd.f32 0.0, %v3657
  %v3659 = vpop.f32.mrb[0].mxu0
  %3660 = vmatprep.mubr.f32.mxu0 0.0
  %3661 = vmatmul.mubr.f32.gmra.mrb[0].mxu0 %v2466
  %v3662 = vpop.f32.mrb[0].mxu0
  %v3663 = vadd.f32 0.0, %v3662
  %v3664 = vpop.f32.mrb[0].mxu0
  %3665 = vmatprep.mubr.f32.mxu0 0.0
  %3666 = vmatmul.mubr.f32.gmra.mrb[0].mxu0 %v2469
  %v3667 = vpop.f32.mrb[0].mxu0
  %v3668 = vadd.f32 0.0, %v3667
  %v3669 = vpop.f32.mrb[0].mxu0
  %3670 = vmatprep.mubr.f32.mxu0 0.0
  %3671 = vmatmul.mubr.f32.gmra.mrb[0].mxu0 %v2472
  %v3672 = vpop.f32.mrb[0].mxu0
  %v3673 = vadd.f32 0.0, %v3672
  %v3674 = vpop.f32.mrb[0].mxu0
  %3675 = vmatprep.mubr.f32.mxu0 0.0
  %3676 = vmatmul.mubr.f32.gmra.mrb[0].mxu0 %v2475
  %v3677 = vpop.f32.mrb[0].mxu0
  %v3678 = vadd.f32 0.0, %v3677
  %v3679 = vpop.f32.mrb[0].mxu0
  %3680 = vmatprep.mubr.f32.mxu0 0.0
  %3681 = vmatmul.mubr.f32.gmra.mrb[0].mxu0 %v2478
  %v3682 = vpop.f32.mrb[0].mxu0
  %v3683 = vadd.f32 0.0, %v3682
  %v3684 = vpop.f32.mrb[0].mxu0
  %3685 = vmatprep.mubr.f32.mxu0 0.0
  %3686 = vmatmul.mubr.f32.gmra.mrb[0].mxu0 %v2481
  %v3687 = vpop.f32.mrb[0].mxu0
  %v3688 = vadd.f32 0.0, %v3687
  %v3689 = vpop.f32.mrb[0].mxu0
  %3690 = vmatprep.mubr.f32.mxu0 0.0
  %3691 = vmatmul.mubr.f32.gmra.mrb[0].mxu0 %v2484
  %v3692 = vpop.f32.mrb[0].mxu0
  %v3693 = vadd.f32 0.0, %v3692
  %v3694 = vpop.f32.mrb[0].mxu0
  %3695 = vmatprep.mubr.f32.mxu0 0.0
  %3696 = vmatmul.mubr.f32.gmra.mrb[0].mxu0 %v2487
  %v3697 = vpop.f32.mrb[0].mxu0
  %v3698 = vadd.f32 0.0, %v3697
  %v3699 = vpop.f32.mrb[0].mxu0
  %3700 = vmatprep.mubr.f32.mxu0 0.0
  %3701 = vmatmul.mubr.f32.gmra.mrb[0].mxu0 %v2490
  %v3702 = vpop.f32.mrb[0].mxu0
  %v3703 = vadd.f32 0.0, %v3702
  %v3704 = vpop.f32.mrb[0].mxu0
  %3705 = vmatprep.mubr.f32.mxu0 0.0
  %3706 = vmatmul.mubr.f32.gmra.mrb[0].mxu0 %v2493
  %v3707 = vpop.f32.mrb[0].mxu0
  %v3708 = vadd.f32 0.0, %v3707
  %v3709 = vpop.f32.mrb[0].mxu0
  %3710 = vmatprep.mubr.f32.mxu0 0.0
  %3711 = vmatmul.mubr.f32.gmra.mrb[0].mxu0 %v2496
  %v3712 = vpop.f32.mrb[0].mxu0
  %v3713 = vadd.f32 0.0, %v3712
  %v3714 = vpop.f32.mrb[0].mxu0
  %3715 = vmatprep.mubr.f32.mxu0 0.0
  %3716 = vmatmul.mubr.f32.gmra.mrb[0].mxu0 %v2499
  %v3717 = vpop.f32.mrb[0].mxu0
  %v3718 = vadd.f32 0.0, %v3717
  %v3719 = vpop.f32.mrb[0].mxu0
  %3720 = vmatprep.mubr.f32.mxu0 0.0
  %3721 = vmatmul.mubr.f32.gmra.mrb[0].mxu0 %v2502
  %v3722 = vpop.f32.mrb[0].mxu0
  %v3723 = vadd.f32 0.0, %v3722
  %v3724 = vpop.f32.mrb[0].mxu0
  %3725 = vmatprep.mubr.f32.mxu0 0.0
  %3726 = vmatmul.mubr.f32.gmra.mrb[0].mxu0 %v2505
  %v3727 = vpop.f32.mrb[0].mxu0
  %v3728 = vadd.f32 0.0, %v3727
  %v3729 = vpop.f32.mrb[0].mxu0
  %3730 = vmatprep.mubr.f32.mxu0 0.0
  %3731 = vmatmul.mubr.f32.gmra.mrb[0].mxu0 %v2508
  %v3732 = vpop.f32.mrb[0].mxu0
  %v3733 = vadd.f32 0.0, %v3732
  %v3734 = vpop.f32.mrb[0].mxu0
  %3735 = vmatprep.mubr.f32.mxu0 0.0
  %3736 = vmatmul.mubr.f32.gmra.mrb[0].mxu0 %v2511
  %v3737 = vpop.f32.mrb[0].mxu0
  %v3738 = vadd.f32 0.0, %v3737
  %v3739 = vpop.f32.mrb[0].mxu0
  %3740 = vmatprep.mubr.f32.mxu0 0.0
  %3741 = vmatmul.mubr.f32.gmra.mrb[0].mxu0 %v2514
  %v3742 = vpop.f32.mrb[0].mxu0
  %v3743 = vadd.f32 0.0, %v3742
  %v3744 = vpop.f32.mrb[0].mxu0
  %3745 = vmatprep.mubr.f32.mxu0 0.0
  %3746 = vmatmul.mubr.f32.gmra.mrb[0].mxu0 %v2517
  %v3747 = vpop.f32.mrb[0].mxu0
  %v3748 = vadd.f32 0.0, %v3747
  %v3749 = vpop.f32.mrb[0].mxu0
  %3750 = vmatprep.mubr.f32.mxu0 0.0
  %3751 = vmatmul.mubr.f32.gmra.mrb[0].mxu0 %v2520
  %v3752 = vpop.f32.mrb[0].mxu0
  %v3753 = vadd.f32 0.0, %v3752
  %v3754 = vpop.f32.mrb[0].mxu0
  %3755 = vmatprep.mubr.f32.mxu0 0.0
  %3756 = vmatmul.mubr.f32.gmra.mrb[0].mxu0 %v2523
  %v3757 = vpop.f32.mrb[0].mxu0
  %v3758 = vadd.f32 0.0, %v3757
  %v3759 = vpop.f32.mrb[0].mxu0
  %3760 = vmatprep.mubr.f32.mxu0 0.0
  %3761 = vmatmul.mubr.f32.gmra.mrb[0].mxu0 %v2526
  %v3762 = vpop.f32.mrb[0].mxu0
  %v3763 = vadd.f32 0.0, %v3762
  %v3764 = vpop.f32.mrb[0].mxu0
  %3765 = vmatprep.mubr.f32.mxu0 0.0
  %3766 = vmatmul.mubr.f32.gmra.mrb[0].mxu0 %v2529
  %v3767 = vpop.f32.mrb[0].mxu0
  %v3768 = vadd.f32 0.0, %v3767
  %v3769 = vpop.f32.mrb[0].mxu0
  %3770 = vmatprep.mubr.f32.mxu0 0.0
  %3771 = vmatmul.mubr.f32.gmra.mrb[0].mxu0 %v2532
  %v3772 = vpop.f32.mrb[0].mxu0
  %v3773 = vadd.f32 0.0, %v3772
  %v3774 = vpop.f32.mrb[0].mxu0
  %3775 = vmatprep.mubr.f32.mxu0 0.0
  %3776 = vmatmul.mubr.f32.gmra.mrb[0].mxu0 %v2535
  %v3777 = vpop.f32.mrb[0].mxu0
  %v3778 = vadd.f32 0.0, %v3777
  %v3779 = vpop.f32.mrb[0].mxu0
  %3780 = vmatprep.mubr.f32.mxu0 0.0
  %3781 = vmatmul.mubr.f32.gmra.mrb[0].mxu0 %v2538
  %v3782 = vpop.f32.mrb[0].mxu0
  %v3783 = vadd.f32 0.0, %v3782
  %v3784 = vpop.f32.mrb[0].mxu0
  %3785 = vmatprep.mubr.f32.mxu0 0.0
  %3786 = vmatmul.mubr.f32.gmra.mrb[0].mxu0 %v2541
  %v3787 = vpop.f32.mrb[0].mxu0
  %v3788 = vadd.f32 0.0, %v3787
  %v3789 = vpop.f32.mrb[0].mxu0
  %3790 = vmatprep.mubr.f32.mxu0 0.0
  %3791 = vmatmul.mubr.f32.gmra.mrb[0].mxu0 %v2544
  %v3792 = vpop.f32.mrb[0].mxu0
  %v3793 = vadd.f32 0.0, %v3792
  %v3794 = vpop.f32.mrb[0].mxu0
  %3795 = vmatprep.mubr.f32.mxu0 0.0
  %3796 = vmatmul.mubr.f32.gmra.mrb[0].mxu0 %v2547
  %v3797 = vpop.f32.mrb[0].mxu0
  %v3798 = vadd.f32 0.0, %v3797
  %v3799 = vpop.f32.mrb[0].mxu0
  %3800 = vmatprep.mubr.f32.mxu0 0.0
  %3801 = vmatmul.mubr.f32.gmra.mrb[0].mxu0 %v2550
  %v3802 = vpop.f32.mrb[0].mxu0
  %v3803 = vadd.f32 0.0, %v3802
  %v3804 = vpop.f32.mrb[0].mxu0
  %3805 = vmatprep.mubr.f32.mxu0 0.0
  %3806 = vmatmul.mubr.f32.gmra.mrb[0].mxu0 %v2553
  %v3807 = vpop.f32.mrb[0].mxu0
  %v3808 = vadd.f32 0.0, %v3807
  %v3809 = vpop.f32.mrb[0].mxu0
  %3810 = vmatprep.mubr.f32.mxu0 0.0
  %3811 = vmatmul.mubr.f32.gmra.mrb[0].mxu0 %v2556
  %v3812 = vpop.f32.mrb[0].mxu0
  %v3813 = vadd.f32 0.0, %v3812
  %v3814 = vpop.f32.mrb[0].mxu0
  %3815 = vmatprep.mubr.f32.mxu0 0.0
  %3816 = vmatmul.mubr.f32.gmra.mrb[0].mxu0 %v2559
  %v3817 = vpop.f32.mrb[0].mxu0
  %v3818 = vadd.f32 0.0, %v3817
  %v3819 = vpop.f32.mrb[0].mxu0
  %3820 = vmatprep.mubr.f32.mxu0 0.0
  %3821 = vmatmul.mubr.f32.gmra.mrb[0].mxu0 %v2562
  %v3822 = vpop.f32.mrb[0].mxu0
  %v3823 = vadd.f32 0.0, %v3822
  %v3824 = vpop.f32.mrb[0].mxu0
  %3825 = vmatprep.mubr.f32.mxu0 0.0
  %3826 = vmatmul.mubr.f32.gmra.mrb[0].mxu0 %v2565
  %v3827 = vpop.f32.mrb[0].mxu0
  %v3828 = vadd.f32 0.0, %v3827
  %v3829 = vpop.f32.mrb[0].mxu0
  %3830 = vmatprep.mubr.f32.mxu0 0.0
  %3831 = vmatmul.mubr.f32.gmra.mrb[0].mxu0 %v2568
  %v3832 = vpop.f32.mrb[0].mxu0
  %v3833 = vadd.f32 0.0, %v3832
  %v3834 = vpop.f32.mrb[0].mxu0
  %3835 = vmatprep.mubr.f32.mxu0 0.0
  %3836 = vmatmul.mubr.f32.gmra.mrb[0].mxu0 %v2571
  %v3837 = vpop.f32.mrb[0].mxu0
  %v3838 = vadd.f32 0.0, %v3837
  %v3839 = vpop.f32.mrb[0].mxu0
  %3840 = vmatprep.mubr.f32.mxu0 0.0
  %3841 = vmatmul.mubr.f32.gmra.mrb[0].mxu0 %v2574
  %v3842 = vpop.f32.mrb[0].mxu0
  %v3843 = vadd.f32 0.0, %v3842
  %v3844 = vpop.f32.mrb[0].mxu0
  %3845 = vmatprep.mubr.f32.mxu0 0.0
  %3846 = vmatmul.mubr.f32.gmra.mrb[0].mxu0 %v2577
  %v3847 = vpop.f32.mrb[0].mxu0
  %v3848 = vadd.f32 0.0, %v3847
  %v3849 = vpop.f32.mrb[0].mxu0
  %3850 = vmatprep.mubr.f32.mxu0 0.0
  %3851 = vmatmul.mubr.f32.gmra.mrb[0].mxu0 %v2580
  %v3852 = vpop.f32.mrb[0].mxu0
  %v3853 = vadd.f32 0.0, %v3852
  %v3854 = vpop.f32.mrb[0].mxu0
  %3855 = vmatprep.mubr.f32.mxu0 0.0
  %3856 = vmatmul.mubr.f32.gmra.mrb[0].mxu0 %v2583
  %v3857 = vpop.f32.mrb[0].mxu0
  %v3858 = vadd.f32 0.0, %v3857
  %v3859 = vpop.f32.mrb[0].mxu0
  %3860 = vmatprep.mubr.f32.mxu0 0.0
  %3861 = vmatmul.mubr.f32.gmra.mrb[0].mxu0 %v2586
  %v3862 = vpop.f32.mrb[0].mxu0
  %v3863 = vadd.f32 0.0, %v3862
  %v3864 = vpop.f32.mrb[0].mxu0
  %3865 = vmatprep.mubr.f32.mxu0 0.0
  %3866 = vmatmul.mubr.f32.gmra.mrb[0].mxu0 %v2589
  %v3867 = vpop.f32.mrb[0].mxu0
  %v3868 = vadd.f32 0.0, %v3867
  %v3869 = vpop.f32.mrb[0].mxu0
  %3870 = vmatprep.mubr.f32.mxu0 0.0
  %3871 = vmatmul.mubr.f32.gmra.mrb[0].mxu0 %v2592
  %v3872 = vpop.f32.mrb[0].mxu0
  %v3873 = vadd.f32 0.0, %v3872
  %v3874 = vpop.f32.mrb[0].mxu0
  %3875 = vmatprep.mubr.f32.mxu0 0.0
  %3876 = vmatmul.mubr.f32.gmra.mrb[0].mxu0 %v2595
  %v3877 = vpop.f32.mrb[0].mxu0
  %v3878 = vadd.f32 0.0, %v3877
  %v3879 = vpop.f32.mrb[0].mxu0
  %3880 = vmatprep.mubr.f32.mxu0 0.0
  %3881 = vmatmul.mubr.f32.gmra.mrb[0].mxu0 %v2598
  %v3882 = vpop.f32.mrb[0].mxu0
  %v3883 = vadd.f32 0.0, %v3882
  %v3884 = vpop.f32.mrb[0].mxu0
  %3885 = vmatprep.mubr.f32.mxu0 0.0
  %3886 = vmatmul.mubr.f32.gmra.mrb[0].mxu0 %v2601
  %v3887 = vpop.f32.mrb[0].mxu0
  %v3888 = vadd.f32 0.0, %v3887
  %v3889 = vpop.f32.mrb[0].mxu0
  %3890 = vmatprep.mubr.f32.mxu0 0.0
  %3891 = vmatmul.mubr.f32.gmra.mrb[0].mxu0 %v2604
  %v3892 = vpop.f32.mrb[0].mxu0
  %v3893 = vadd.f32 0.0, %v3892
  %v3894 = vpop.f32.mrb[0].mxu0
  %3895 = vmatprep.mubr.f32.mxu0 0.0
  %3896 = vmatmul.mubr.f32.gmra.mrb[0].mxu0 %v2607
  %v3897 = vpop.f32.mrb[0].mxu0
  %v3898 = vadd.f32 0.0, %v3897
  %v3899 = vpop.f32.mrb[0].mxu0
  %3900 = vmatprep.mubr.f32.mxu0 0.0
  %3901 = vmatmul.mubr.f32.gmra.mrb[0].mxu0 %v2610
  %v3902 = vpop.f32.mrb[0].mxu0
  %v3903 = vadd.f32 0.0, %v3902
  %v3904 = vpop.f32.mrb[0].mxu0
  %3905 = vdwg.mxu0
  %3906 = vmatprep.subr.mxu0 0.0
  %3907 = vmatpush1.msra.mxu0 %v3519
  %3908 = vmatprep.subr.mxu0 0.0
  %3909 = vmatpush1.msra.mxu0 0.0
  %3910 = vmatprep.subr.mxu0 0.0
  %3911 = vmatpush1.msra.mxu0 0.0
  %3912 = vmatprep.subr.mxu0 0.0
  %3913 = vmatpush1.msra.mxu0 0.0
  %3914 = vmatprep.subr.mxu0 0.0
  %3915 = vmatpush1.msra.mxu0 0.0
  %3916 = vmatprep.subr.mxu0 0.0
  %3917 = vmatpush1.msra.mxu0 0.0
  %3918 = vmatprep.subr.mxu0 0.0
  %3919 = vmatpush1.msra.mxu0 0.0
  %3920 = vmatprep.subr.mxu0 0.0
  %3921 = vmatpush1.msra.mxu0 0.0
  %3922 = vmatprep.subr.mxu0 0.0
  %3923 = vmatpush1.msra.mxu0 0.0
  %3924 = vmatprep.subr.mxu0 0.0
  %3925 = vmatpush1.msra.mxu0 0.0
  %3926 = vmatprep.subr.mxu0 0.0
  %3927 = vmatpush1.msra.mxu0 0.0
  %3928 = vmatprep.subr.mxu0 0.0
  %3929 = vmatpush1.msra.mxu0 0.0
  %3930 = vmatprep.subr.mxu0 0.0
  %3931 = vmatpush1.msra.mxu0 0.0
  %3932 = vmatprep.subr.mxu0 0.0
  %3933 = vmatpush1.msra.mxu0 0.0
  %3934 = vmatprep.subr.mxu0 0.0
  %3935 = vmatpush1.msra.mxu0 0.0
  %3936 = vmatprep.subr.mxu0 0.0
  %3937 = vmatpush1.msra.mxu0 0.0
  %3938 = vmatprep.subr.mxu0 0.0
  %3939 = vmatpush1.msra.mxu0 0.0
  %3940 = vmatprep.subr.mxu0 0.0
  %3941 = vmatpush1.msra.mxu0 0.0
  %3942 = vmatprep.subr.mxu0 0.0
  %3943 = vmatpush1.msra.mxu0 0.0
  %3944 = vmatprep.subr.mxu0 0.0
  %3945 = vmatpush1.msra.mxu0 0.0
  %3946 = vmatprep.subr.mxu0 0.0
  %3947 = vmatpush1.msra.mxu0 0.0
  %3948 = vmatprep.subr.mxu0 0.0
  %3949 = vmatpush1.msra.mxu0 0.0
  %3950 = vmatprep.subr.mxu0 0.0
  %3951 = vmatpush1.msra.mxu0 0.0
  %3952 = vmatprep.subr.mxu0 0.0
  %3953 = vmatpush1.msra.mxu0 0.0
  %3954 = vmatprep.subr.mxu0 0.0
  %3955 = vmatpush1.msra.mxu0 0.0
  %3956 = vmatprep.subr.mxu0 0.0
  %3957 = vmatpush1.msra.mxu0 0.0
  %3958 = vmatprep.subr.mxu0 0.0
  %3959 = vmatpush1.msra.mxu0 0.0
  %3960 = vmatprep.subr.mxu0 0.0
  %3961 = vmatpush1.msra.mxu0 0.0
  %3962 = vmatprep.subr.mxu0 0.0
  %3963 = vmatpush1.msra.mxu0 0.0
  %3964 = vmatprep.subr.mxu0 0.0
  %3965 = vmatpush1.msra.mxu0 0.0
  %3966 = vmatprep.subr.mxu0 0.0
  %3967 = vmatpush1.msra.mxu0 0.0
  %3968 = vmatprep.subr.mxu0 0.0
  %3969 = vmatpush1.msra.mxu0 0.0
  %3970 = vmatprep.mubr.f32.mxu0 0.0
  %3971 = vmatmul.mubr.f32.gmra.mrb[0].mxu0 %v729
  %v3972 = vpop.f32.mrb[0].mxu0
  %v3973 = vadd.f32 %v3588, %v3972
  %v3974 = vpop.f32.mrb[0].mxu0
  %3975 = vmatprep.mubr.f32.mxu0 0.0
  %3976 = vmatmul.mubr.f32.gmra.mrb[0].mxu0 %v732
  %v3977 = vpop.f32.mrb[0].mxu0
  %v3978 = vadd.f32 %v3593, %v3977
  %v3979 = vpop.f32.mrb[0].mxu0
  %3980 = vmatprep.mubr.f32.mxu0 0.0
  %3981 = vmatmul.mubr.f32.gmra.mrb[0].mxu0 %v735
  %v3982 = vpop.f32.mrb[0].mxu0
  %v3983 = vadd.f32 %v3598, %v3982
  %v3984 = vpop.f32.mrb[0].mxu0
  %3985 = vmatprep.mubr.f32.mxu0 0.0
  %3986 = vmatmul.mubr.f32.gmra.mrb[0].mxu0 %v738
  %v3987 = vpop.f32.mrb[0].mxu0
  %v3988 = vadd.f32 %v3603, %v3987
  %v3989 = vpop.f32.mrb[0].mxu0
  %3990 = vmatprep.mubr.f32.mxu0 0.0
  %3991 = vmatmul.mubr.f32.gmra.mrb[0].mxu0 %v741
  %v3992 = vpop.f32.mrb[0].mxu0
  %v3993 = vadd.f32 %v3608, %v3992
  %v3994 = vpop.f32.mrb[0].mxu0
  %3995 = vmatprep.mubr.f32.mxu0 0.0
  %3996 = vmatmul.mubr.f32.gmra.mrb[0].mxu0 %v744
  %v3997 = vpop.f32.mrb[0].mxu0
  %v3998 = vadd.f32 %v3613, %v3997
  %v3999 = vpop.f32.mrb[0].mxu0
  %4000 = vmatprep.mubr.f32.mxu0 0.0
  %4001 = vmatmul.mubr.f32.gmra.mrb[0].mxu0 %v747
  %v4002 = vpop.f32.mrb[0].mxu0
  %v4003 = vadd.f32 %v3618, %v4002
  %v4004 = vpop.f32.mrb[0].mxu0
  %4005 = vmatprep.mubr.f32.mxu0 0.0
  %4006 = vmatmul.mubr.f32.gmra.mrb[0].mxu0 %v750
  %v4007 = vpop.f32.mrb[0].mxu0
  %v4008 = vadd.f32 %v3623, %v4007
  %v4009 = vpop.f32.mrb[0].mxu0
  %4010 = vmatprep.mubr.f32.mxu0 0.0
  %4011 = vmatmul.mubr.f32.gmra.mrb[0].mxu0 %v753
  %v4012 = vpop.f32.mrb[0].mxu0
  %v4013 = vadd.f32 %v3628, %v4012
  %v4014 = vpop.f32.mrb[0].mxu0
  %4015 = vmatprep.mubr.f32.mxu0 0.0
  %4016 = vmatmul.mubr.f32.gmra.mrb[0].mxu0 %v756
  %v4017 = vpop.f32.mrb[0].mxu0
  %v4018 = vadd.f32 %v3633, %v4017
  %v4019 = vpop.f32.mrb[0].mxu0
  %4020 = vmatprep.mubr.f32.mxu0 0.0
  %4021 = vmatmul.mubr.f32.gmra.mrb[0].mxu0 %v759
  %v4022 = vpop.f32.mrb[0].mxu0
  %v4023 = vadd.f32 %v3638, %v4022
  %v4024 = vpop.f32.mrb[0].mxu0
  %4025 = vmatprep.mubr.f32.mxu0 0.0
  %4026 = vmatmul.mubr.f32.gmra.mrb[0].mxu0 %v762
  %v4027 = vpop.f32.mrb[0].mxu0
  %v4028 = vadd.f32 %v3643, %v4027
  %v4029 = vpop.f32.mrb[0].mxu0
  %4030 = vmatprep.mubr.f32.mxu0 0.0
  %4031 = vmatmul.mubr.f32.gmra.mrb[0].mxu0 %v765
  %v4032 = vpop.f32.mrb[0].mxu0
  %v4033 = vadd.f32 %v3648, %v4032
  %v4034 = vpop.f32.mrb[0].mxu0
  %4035 = vmatprep.mubr.f32.mxu0 0.0
  %4036 = vmatmul.mubr.f32.gmra.mrb[0].mxu0 %v768
  %v4037 = vpop.f32.mrb[0].mxu0
  %v4038 = vadd.f32 %v3653, %v4037
  %v4039 = vpop.f32.mrb[0].mxu0
  %4040 = vmatprep.mubr.f32.mxu0 0.0
  %4041 = vmatmul.mubr.f32.gmra.mrb[0].mxu0 %v771
  %v4042 = vpop.f32.mrb[0].mxu0
  %v4043 = vadd.f32 %v3658, %v4042
  %v4044 = vpop.f32.mrb[0].mxu0
  %4045 = vmatprep.mubr.f32.mxu0 0.0
  %4046 = vmatmul.mubr.f32.gmra.mrb[0].mxu0 %v774
  %v4047 = vpop.f32.mrb[0].mxu0
  %v4048 = vadd.f32 %v3663, %v4047
  %v4049 = vpop.f32.mrb[0].mxu0
  %4050 = vmatprep.mubr.f32.mxu0 0.0
  %4051 = vmatmul.mubr.f32.gmra.mrb[0].mxu0 %v777
  %v4052 = vpop.f32.mrb[0].mxu0
  %v4053 = vadd.f32 %v3668, %v4052
  %v4054 = vpop.f32.mrb[0].mxu0
  %4055 = vmatprep.mubr.f32.mxu0 0.0
  %4056 = vmatmul.mubr.f32.gmra.mrb[0].mxu0 %v780
  %v4057 = vpop.f32.mrb[0].mxu0
  %v4058 = vadd.f32 %v3673, %v4057
  %v4059 = vpop.f32.mrb[0].mxu0
  %4060 = vmatprep.mubr.f32.mxu0 0.0
  %4061 = vmatmul.mubr.f32.gmra.mrb[0].mxu0 %v783
  %v4062 = vpop.f32.mrb[0].mxu0
  %v4063 = vadd.f32 %v3678, %v4062
  %v4064 = vpop.f32.mrb[0].mxu0
  %4065 = vmatprep.mubr.f32.mxu0 0.0
  %4066 = vmatmul.mubr.f32.gmra.mrb[0].mxu0 %v786
  %v4067 = vpop.f32.mrb[0].mxu0
  %v4068 = vadd.f32 %v3683, %v4067
  %v4069 = vpop.f32.mrb[0].mxu0
  %4070 = vmatprep.mubr.f32.mxu0 0.0
  %4071 = vmatmul.mubr.f32.gmra.mrb[0].mxu0 %v789
  %v4072 = vpop.f32.mrb[0].mxu0
  %v4073 = vadd.f32 %v3688, %v4072
  %v4074 = vpop.f32.mrb[0].mxu0
  %4075 = vmatprep.mubr.f32.mxu0 0.0
  %4076 = vmatmul.mubr.f32.gmra.mrb[0].mxu0 %v792
  %v4077 = vpop.f32.mrb[0].mxu0
  %v4078 = vadd.f32 %v3693, %v4077
  %v4079 = vpop.f32.mrb[0].mxu0
  %4080 = vmatprep.mubr.f32.mxu0 0.0
  %4081 = vmatmul.mubr.f32.gmra.mrb[0].mxu0 %v795
  %v4082 = vpop.f32.mrb[0].mxu0
  %v4083 = vadd.f32 %v3698, %v4082
  %v4084 = vpop.f32.mrb[0].mxu0
  %4085 = vmatprep.mubr.f32.mxu0 0.0
  %4086 = vmatmul.mubr.f32.gmra.mrb[0].mxu0 %v798
  %v4087 = vpop.f32.mrb[0].mxu0
  %v4088 = vadd.f32 %v3703, %v4087
  %v4089 = vpop.f32.mrb[0].mxu0
  %4090 = vmatprep.mubr.f32.mxu0 0.0
  %4091 = vmatmul.mubr.f32.gmra.mrb[0].mxu0 %v801
  %v4092 = vpop.f32.mrb[0].mxu0
  %v4093 = vadd.f32 %v3708, %v4092
  %v4094 = vpop.f32.mrb[0].mxu0
  %4095 = vmatprep.mubr.f32.mxu0 0.0
  %4096 = vmatmul.mubr.f32.gmra.mrb[0].mxu0 %v804
  %v4097 = vpop.f32.mrb[0].mxu0
  %v4098 = vadd.f32 %v3713, %v4097
  %v4099 = vpop.f32.mrb[0].mxu0
  %4100 = vmatprep.mubr.f32.mxu0 0.0
  %4101 = vmatmul.mubr.f32.gmra.mrb[0].mxu0 %v807
  %v4102 = vpop.f32.mrb[0].mxu0
  %v4103 = vadd.f32 %v3718, %v4102
  %v4104 = vpop.f32.mrb[0].mxu0
  %4105 = vmatprep.mubr.f32.mxu0 0.0
  %4106 = vmatmul.mubr.f32.gmra.mrb[0].mxu0 %v810
  %v4107 = vpop.f32.mrb[0].mxu0
  %v4108 = vadd.f32 %v3723, %v4107
  %v4109 = vpop.f32.mrb[0].mxu0
  %4110 = vmatprep.mubr.f32.mxu0 0.0
  %4111 = vmatmul.mubr.f32.gmra.mrb[0].mxu0 %v813
  %v4112 = vpop.f32.mrb[0].mxu0
  %v4113 = vadd.f32 %v3728, %v4112
  %v4114 = vpop.f32.mrb[0].mxu0
  %4115 = vmatprep.mubr.f32.mxu0 0.0
  %4116 = vmatmul.mubr.f32.gmra.mrb[0].mxu0 %v816
  %v4117 = vpop.f32.mrb[0].mxu0
  %v4118 = vadd.f32 %v3733, %v4117
  %v4119 = vpop.f32.mrb[0].mxu0
  %4120 = vmatprep.mubr.f32.mxu0 0.0
  %4121 = vmatmul.mubr.f32.gmra.mrb[0].mxu0 %v819
  %v4122 = vpop.f32.mrb[0].mxu0
  %v4123 = vadd.f32 %v3738, %v4122
  %v4124 = vpop.f32.mrb[0].mxu0
  %4125 = vmatprep.mubr.f32.mxu0 0.0
  %4126 = vmatmul.mubr.f32.gmra.mrb[0].mxu0 %v822
  %v4127 = vpop.f32.mrb[0].mxu0
  %v4128 = vadd.f32 %v3743, %v4127
  %v4129 = vpop.f32.mrb[0].mxu0
  %4130 = vmatprep.mubr.f32.mxu0 0.0
  %4131 = vmatmul.mubr.f32.gmra.mrb[0].mxu0 %v825
  %v4132 = vpop.f32.mrb[0].mxu0
  %v4133 = vadd.f32 %v3748, %v4132
  %v4134 = vpop.f32.mrb[0].mxu0
  %4135 = vmatprep.mubr.f32.mxu0 0.0
  %4136 = vmatmul.mubr.f32.gmra.mrb[0].mxu0 %v828
  %v4137 = vpop.f32.mrb[0].mxu0
  %v4138 = vadd.f32 %v3753, %v4137
  %v4139 = vpop.f32.mrb[0].mxu0
  %4140 = vmatprep.mubr.f32.mxu0 0.0
  %4141 = vmatmul.mubr.f32.gmra.mrb[0].mxu0 %v831
  %v4142 = vpop.f32.mrb[0].mxu0
  %v4143 = vadd.f32 %v3758, %v4142
  %v4144 = vpop.f32.mrb[0].mxu0
  %4145 = vmatprep.mubr.f32.mxu0 0.0
  %4146 = vmatmul.mubr.f32.gmra.mrb[0].mxu0 %v834
  %v4147 = vpop.f32.mrb[0].mxu0
  %v4148 = vadd.f32 %v3763, %v4147
  %v4149 = vpop.f32.mrb[0].mxu0
  %4150 = vmatprep.mubr.f32.mxu0 0.0
  %4151 = vmatmul.mubr.f32.gmra.mrb[0].mxu0 %v837
  %v4152 = vpop.f32.mrb[0].mxu0
  %v4153 = vadd.f32 %v3768, %v4152
  %v4154 = vpop.f32.mrb[0].mxu0
  %4155 = vmatprep.mubr.f32.mxu0 0.0
  %4156 = vmatmul.mubr.f32.gmra.mrb[0].mxu0 %v840
  %v4157 = vpop.f32.mrb[0].mxu0
  %v4158 = vadd.f32 %v3773, %v4157
  %v4159 = vpop.f32.mrb[0].mxu0
  %4160 = vmatprep.mubr.f32.mxu0 0.0
  %4161 = vmatmul.mubr.f32.gmra.mrb[0].mxu0 %v843
  %v4162 = vpop.f32.mrb[0].mxu0
  %v4163 = vadd.f32 %v3778, %v4162
  %v4164 = vpop.f32.mrb[0].mxu0
  %4165 = vmatprep.mubr.f32.mxu0 0.0
  %4166 = vmatmul.mubr.f32.gmra.mrb[0].mxu0 %v846
  %v4167 = vpop.f32.mrb[0].mxu0
  %v4168 = vadd.f32 %v3783, %v4167
  %v4169 = vpop.f32.mrb[0].mxu0
  %4170 = vmatprep.mubr.f32.mxu0 0.0
  %4171 = vmatmul.mubr.f32.gmra.mrb[0].mxu0 %v849
  %v4172 = vpop.f32.mrb[0].mxu0
  %v4173 = vadd.f32 %v3788, %v4172
  %v4174 = vpop.f32.mrb[0].mxu0
  %4175 = vmatprep.mubr.f32.mxu0 0.0
  %4176 = vmatmul.mubr.f32.gmra.mrb[0].mxu0 %v852
  %v4177 = vpop.f32.mrb[0].mxu0
  %v4178 = vadd.f32 %v3793, %v4177
  %v4179 = vpop.f32.mrb[0].mxu0
  %4180 = vmatprep.mubr.f32.mxu0 0.0
  %4181 = vmatmul.mubr.f32.gmra.mrb[0].mxu0 %v855
  %v4182 = vpop.f32.mrb[0].mxu0
  %v4183 = vadd.f32 %v3798, %v4182
  %v4184 = vpop.f32.mrb[0].mxu0
  %4185 = vmatprep.mubr.f32.mxu0 0.0
  %4186 = vmatmul.mubr.f32.gmra.mrb[0].mxu0 %v858
  %v4187 = vpop.f32.mrb[0].mxu0
  %v4188 = vadd.f32 %v3803, %v4187
  %v4189 = vpop.f32.mrb[0].mxu0
  %4190 = vmatprep.mubr.f32.mxu0 0.0
  %4191 = vmatmul.mubr.f32.gmra.mrb[0].mxu0 %v861
  %v4192 = vpop.f32.mrb[0].mxu0
  %v4193 = vadd.f32 %v3808, %v4192
  %v4194 = vpop.f32.mrb[0].mxu0
  %4195 = vmatprep.mubr.f32.mxu0 0.0
  %4196 = vmatmul.mubr.f32.gmra.mrb[0].mxu0 %v864
  %v4197 = vpop.f32.mrb[0].mxu0
  %v4198 = vadd.f32 %v3813, %v4197
  %v4199 = vpop.f32.mrb[0].mxu0
  %4200 = vmatprep.mubr.f32.mxu0 0.0
  %4201 = vmatmul.mubr.f32.gmra.mrb[0].mxu0 %v867
  %v4202 = vpop.f32.mrb[0].mxu0
  %v4203 = vadd.f32 %v3818, %v4202
  %v4204 = vpop.f32.mrb[0].mxu0
  %4205 = vmatprep.mubr.f32.mxu0 0.0
  %4206 = vmatmul.mubr.f32.gmra.mrb[0].mxu0 %v870
  %v4207 = vpop.f32.mrb[0].mxu0
  %v4208 = vadd.f32 %v3823, %v4207
  %v4209 = vpop.f32.mrb[0].mxu0
  %4210 = vmatprep.mubr.f32.mxu0 0.0
  %4211 = vmatmul.mubr.f32.gmra.mrb[0].mxu0 %v873
  %v4212 = vpop.f32.mrb[0].mxu0
  %v4213 = vadd.f32 %v3828, %v4212
  %v4214 = vpop.f32.mrb[0].mxu0
  %4215 = vmatprep.mubr.f32.mxu0 0.0
  %4216 = vmatmul.mubr.f32.gmra.mrb[0].mxu0 %v876
  %v4217 = vpop.f32.mrb[0].mxu0
  %v4218 = vadd.f32 %v3833, %v4217
  %v4219 = vpop.f32.mrb[0].mxu0
  %4220 = vmatprep.mubr.f32.mxu0 0.0
  %4221 = vmatmul.mubr.f32.gmra.mrb[0].mxu0 %v879
  %v4222 = vpop.f32.mrb[0].mxu0
  %v4223 = vadd.f32 %v3838, %v4222
  %v4224 = vpop.f32.mrb[0].mxu0
  %4225 = vmatprep.mubr.f32.mxu0 0.0
  %4226 = vmatmul.mubr.f32.gmra.mrb[0].mxu0 %v882
  %v4227 = vpop.f32.mrb[0].mxu0
  %v4228 = vadd.f32 %v3843, %v4227
  %v4229 = vpop.f32.mrb[0].mxu0
  %4230 = vmatprep.mubr.f32.mxu0 0.0
  %4231 = vmatmul.mubr.f32.gmra.mrb[0].mxu0 %v885
  %v4232 = vpop.f32.mrb[0].mxu0
  %v4233 = vadd.f32 %v3848, %v4232
  %v4234 = vpop.f32.mrb[0].mxu0
  %4235 = vmatprep.mubr.f32.mxu0 0.0
  %4236 = vmatmul.mubr.f32.gmra.mrb[0].mxu0 %v888
  %v4237 = vpop.f32.mrb[0].mxu0
  %v4238 = vadd.f32 %v3853, %v4237
  %v4239 = vpop.f32.mrb[0].mxu0
  %4240 = vmatprep.mubr.f32.mxu0 0.0
  %4241 = vmatmul.mubr.f32.gmra.mrb[0].mxu0 %v891
  %v4242 = vpop.f32.mrb[0].mxu0
  %v4243 = vadd.f32 %v3858, %v4242
  %v4244 = vpop.f32.mrb[0].mxu0
  %4245 = vmatprep.mubr.f32.mxu0 0.0
  %4246 = vmatmul.mubr.f32.gmra.mrb[0].mxu0 %v894
  %v4247 = vpop.f32.mrb[0].mxu0
  %v4248 = vadd.f32 %v3863, %v4247
  %v4249 = vpop.f32.mrb[0].mxu0
  %4250 = vmatprep.mubr.f32.mxu0 0.0
  %4251 = vmatmul.mubr.f32.gmra.mrb[0].mxu0 %v897
  %v4252 = vpop.f32.mrb[0].mxu0
  %v4253 = vadd.f32 %v3868, %v4252
  %v4254 = vpop.f32.mrb[0].mxu0
  %4255 = vmatprep.mubr.f32.mxu0 0.0
  %4256 = vmatmul.mubr.f32.gmra.mrb[0].mxu0 %v900
  %v4257 = vpop.f32.mrb[0].mxu0
  %v4258 = vadd.f32 %v3873, %v4257
  %v4259 = vpop.f32.mrb[0].mxu0
  %4260 = vmatprep.mubr.f32.mxu0 0.0
  %4261 = vmatmul.mubr.f32.gmra.mrb[0].mxu0 %v903
  %v4262 = vpop.f32.mrb[0].mxu0
  %v4263 = vadd.f32 %v3878, %v4262
  %v4264 = vpop.f32.mrb[0].mxu0
  %4265 = vmatprep.mubr.f32.mxu0 0.0
  %4266 = vmatmul.mubr.f32.gmra.mrb[0].mxu0 %v906
  %v4267 = vpop.f32.mrb[0].mxu0
  %v4268 = vadd.f32 %v3883, %v4267
  %v4269 = vpop.f32.mrb[0].mxu0
  %4270 = vmatprep.mubr.f32.mxu0 0.0
  %4271 = vmatmul.mubr.f32.gmra.mrb[0].mxu0 %v909
  %v4272 = vpop.f32.mrb[0].mxu0
  %v4273 = vadd.f32 %v3888, %v4272
  %v4274 = vpop.f32.mrb[0].mxu0
  %4275 = vmatprep.mubr.f32.mxu0 0.0
  %4276 = vmatmul.mubr.f32.gmra.mrb[0].mxu0 %v912
  %v4277 = vpop.f32.mrb[0].mxu0
  %v4278 = vadd.f32 %v3893, %v4277
  %v4279 = vpop.f32.mrb[0].mxu0
  %4280 = vmatprep.mubr.f32.mxu0 0.0
  %4281 = vmatmul.mubr.f32.gmra.mrb[0].mxu0 %v915
  %v4282 = vpop.f32.mrb[0].mxu0
  %v4283 = vadd.f32 %v3898, %v4282
  %v4284 = vpop.f32.mrb[0].mxu0
  %4285 = vmatprep.mubr.f32.mxu0 0.0
  %4286 = vmatmul.mubr.f32.gmra.mrb[0].mxu0 %v918
  %v4287 = vpop.f32.mrb[0].mxu0
  %v4288 = vadd.f32 %v3903, %v4287
  %v4289 = vpop.f32.mrb[0].mxu0
  %4290 = vdwg.mxu0
  %v4291 = vld [vmem:[%s2215] sm:$0x1]
  %v4293 = vlaneseq
  %v4294 = vshrl.u32 %v4293, 7
  %v4295 = vsub.s32 0, %v4294
  %v4296 = vrot.slane %v4291, %v4295
  %v4298 = vadd.f32 %v3973, %v4296
  %v4299 = vadd.f32 %v3978, %v4296
  %v4300 = vadd.f32 %v3983, %v4296
  %v4301 = vadd.f32 %v3988, %v4296
  %v4302 = vadd.f32 %v3993, %v4296
  %v4303 = vadd.f32 %v3998, %v4296
  %v4304 = vadd.f32 %v4003, %v4296
  %v4305 = vadd.f32 %v4008, %v4296
  %v4306 = vadd.f32 %v4013, %v4296
  %v4307 = vadd.f32 %v4018, %v4296
  %v4308 = vadd.f32 %v4023, %v4296
  %v4309 = vadd.f32 %v4028, %v4296
  %v4310 = vadd.f32 %v4033, %v4296
  %v4311 = vadd.f32 %v4038, %v4296
  %v4312 = vadd.f32 %v4043, %v4296
  %v4313 = vadd.f32 %v4048, %v4296
  %v4314 = vadd.f32 %v4053, %v4296
  %v4315 = vadd.f32 %v4058, %v4296
  %v4316 = vadd.f32 %v4063, %v4296
  %v4317 = vadd.f32 %v4068, %v4296
  %v4318 = vadd.f32 %v4073, %v4296
  %v4319 = vadd.f32 %v4078, %v4296
  %v4320 = vadd.f32 %v4083, %v4296
  %v4321 = vadd.f32 %v4088, %v4296
  %v4322 = vadd.f32 %v4093, %v4296
  %v4323 = vadd.f32 %v4098, %v4296
  %v4324 = vadd.f32 %v4103, %v4296
  %v4325 = vadd.f32 %v4108, %v4296
  %v4326 = vadd.f32 %v4113, %v4296
  %v4327 = vadd.f32 %v4118, %v4296
  %v4328 = vadd.f32 %v4123, %v4296
  %v4329 = vadd.f32 %v4128, %v4296
  %v4330 = vadd.f32 %v4133, %v4296
  %v4331 = vadd.f32 %v4138, %v4296
  %v4332 = vadd.f32 %v4143, %v4296
  %v4333 = vadd.f32 %v4148, %v4296
  %v4334 = vadd.f32 %v4153, %v4296
  %v4335 = vadd.f32 %v4158, %v4296
  %v4336 = vadd.f32 %v4163, %v4296
  %v4337 = vadd.f32 %v4168, %v4296
  %v4338 = vadd.f32 %v4173, %v4296
  %v4339 = vadd.f32 %v4178, %v4296
  %v4340 = vadd.f32 %v4183, %v4296
  %v4341 = vadd.f32 %v4188, %v4296
  %v4342 = vadd.f32 %v4193, %v4296
  %v4343 = vadd.f32 %v4198, %v4296
  %v4344 = vadd.f32 %v4203, %v4296
  %v4345 = vadd.f32 %v4208, %v4296
  %v4346 = vadd.f32 %v4213, %v4296
  %v4347 = vadd.f32 %v4218, %v4296
  %v4348 = vadd.f32 %v4223, %v4296
  %v4349 = vadd.f32 %v4228, %v4296
  %v4350 = vadd.f32 %v4233, %v4296
  %v4351 = vadd.f32 %v4238, %v4296
  %v4352 = vadd.f32 %v4243, %v4296
  %v4353 = vadd.f32 %v4248, %v4296
  %v4354 = vadd.f32 %v4253, %v4296
  %v4355 = vadd.f32 %v4258, %v4296
  %v4356 = vadd.f32 %v4263, %v4296
  %v4357 = vadd.f32 %v4268, %v4296
  %v4358 = vadd.f32 %v4273, %v4296
  %v4359 = vadd.f32 %v4278, %v4296
  %v4360 = vadd.f32 %v4283, %v4296
  %v4361 = vadd.f32 %v4288, %v4296
  %s4362 = scalar_lea.vmem %s5, 48
  %4363 = vst.msk [vmem:[%s4362] sm:$0xff] %vm1376, %v4298
  %4364 = vst.msk [vmem:[%s4362 + $0x8] sm:$0xff] %vm1376, %v4299
  %4365 = vst.msk [vmem:[%s4362 + $0x40] sm:$0xff] %vm1376, %v4300
  %4366 = vst.msk [vmem:[%s4362 + $0x48] sm:$0xff] %vm1376, %v4301
  %4367 = vst.msk [vmem:[%s4362 + $0x80] sm:$0xff] %vm1376, %v4302
  %4368 = vst.msk [vmem:[%s4362 + $0x88] sm:$0xff] %vm1376, %v4303
  %4369 = vst.msk [vmem:[%s4362 + $0xc0] sm:$0xff] %vm1376, %v4304
  %4370 = vst.msk [vmem:[%s4362 + $0xc8] sm:$0xff] %vm1376, %v4305
  %4371 = vst.msk [vmem:[%s4362 + $0x100] sm:$0xff] %vm1376, %v4306
  %4372 = vst.msk [vmem:[%s4362 + $0x108] sm:$0xff] %vm1376, %v4307
  %4373 = vst.msk [vmem:[%s4362 + $0x140] sm:$0xff] %vm1376, %v4308
  %4374 = vst.msk [vmem:[%s4362 + $0x148] sm:$0xff] %vm1376, %v4309
  %4375 = vst.msk [vmem:[%s4362 + $0x180] sm:$0xff] %vm1376, %v4310
  %4376 = vst.msk [vmem:[%s4362 + $0x188] sm:$0xff] %vm1376, %v4311
  %4377 = vst.msk [vmem:[%s4362 + $0x1c0] sm:$0xff] %vm1376, %v4312
  %4378 = vst.msk [vmem:[%s4362 + $0x1c8] sm:$0xff] %vm1376, %v4313
  %4379 = vst.msk [vmem:[%s4362 + $0x200] sm:$0xff] %vm1376, %v4314
  %4380 = vst.msk [vmem:[%s4362 + $0x208] sm:$0xff] %vm1376, %v4315
  %4381 = vst.msk [vmem:[%s4362 + $0x240] sm:$0xff] %vm1376, %v4316
  %4382 = vst.msk [vmem:[%s4362 + $0x248] sm:$0xff] %vm1376, %v4317
  %4383 = vst.msk [vmem:[%s4362 + $0x280] sm:$0xff] %vm1376, %v4318
  %4384 = vst.msk [vmem:[%s4362 + $0x288] sm:$0xff] %vm1376, %v4319
  %4385 = vst.msk [vmem:[%s4362 + $0x2c0] sm:$0xff] %vm1376, %v4320
  %4386 = vst.msk [vmem:[%s4362 + $0x2c8] sm:$0xff] %vm1376, %v4321
  %4387 = vst.msk [vmem:[%s4362 + $0x300] sm:$0xff] %vm1376, %v4322
  %4388 = vst.msk [vmem:[%s4362 + $0x308] sm:$0xff] %vm1376, %v4323
  %4389 = vst.msk [vmem:[%s4362 + $0x340] sm:$0xff] %vm1376, %v4324
  %4390 = vst.msk [vmem:[%s4362 + $0x348] sm:$0xff] %vm1376, %v4325
  %4391 = vst.msk [vmem:[%s4362 + $0x380] sm:$0xff] %vm1376, %v4326
  %4392 = vst.msk [vmem:[%s4362 + $0x388] sm:$0xff] %vm1376, %v4327
  %4393 = vst.msk [vmem:[%s4362 + $0x3c0] sm:$0xff] %vm1376, %v4328
  %4394 = vst.msk [vmem:[%s4362 + $0x3c8] sm:$0xff] %vm1376, %v4329
  %4395 = vst.msk [vmem:[%s4362 + $0x400] sm:$0xff] %vm1376, %v4330
  %4396 = vst.msk [vmem:[%s4362 + $0x408] sm:$0xff] %vm1376, %v4331
  %4397 = vst.msk [vmem:[%s4362 + $0x440] sm:$0xff] %vm1376, %v4332
  %4398 = vst.msk [vmem:[%s4362 + $0x448] sm:$0xff] %vm1376, %v4333
  %4399 = vst.msk [vmem:[%s4362 + $0x480] sm:$0xff] %vm1376, %v4334
  %4400 = vst.msk [vmem:[%s4362 + $0x488] sm:$0xff] %vm1376, %v4335
  %4401 = vst.msk [vmem:[%s4362 + $0x4c0] sm:$0xff] %vm1376, %v4336
  %4402 = vst.msk [vmem:[%s4362 + $0x4c8] sm:$0xff] %vm1376, %v4337
  %4403 = vst.msk [vmem:[%s4362 + $0x500] sm:$0xff] %vm1376, %v4338
  %4404 = vst.msk [vmem:[%s4362 + $0x508] sm:$0xff] %vm1376, %v4339
  %4405 = vst.msk [vmem:[%s4362 + $0x540] sm:$0xff] %vm1376, %v4340
  %4406 = vst.msk [vmem:[%s4362 + $0x548] sm:$0xff] %vm1376, %v4341
  %4407 = vst.msk [vmem:[%s4362 + $0x580] sm:$0xff] %vm1376, %v4342
  %4408 = vst.msk [vmem:[%s4362 + $0x588] sm:$0xff] %vm1376, %v4343
  %4409 = vst.msk [vmem:[%s4362 + $0x5c0] sm:$0xff] %vm1376, %v4344
  %4410 = vst.msk [vmem:[%s4362 + $0x5c8] sm:$0xff] %vm1376, %v4345
  %4411 = vst.msk [vmem:[%s4362 + $0x600] sm:$0xff] %vm1376, %v4346
  %4412 = vst.msk [vmem:[%s4362 + $0x608] sm:$0xff] %vm1376, %v4347
  %4413 = vst.msk [vmem:[%s4362 + $0x640] sm:$0xff] %vm1376, %v4348
  %4414 = vst.msk [vmem:[%s4362 + $0x648] sm:$0xff] %vm1376, %v4349
  %4415 = vst.msk [vmem:[%s4362 + $0x680] sm:$0xff] %vm1376, %v4350
  %4416 = vst.msk [vmem:[%s4362 + $0x688] sm:$0xff] %vm1376, %v4351
  %4417 = vst.msk [vmem:[%s4362 + $0x6c0] sm:$0xff] %vm1376, %v4352
  %4418 = vst.msk [vmem:[%s4362 + $0x6c8] sm:$0xff] %vm1376, %v4353
  %4419 = vst.msk [vmem:[%s4362 + $0x700] sm:$0xff] %vm1376, %v4354
  %4420 = vst.msk [vmem:[%s4362 + $0x708] sm:$0xff] %vm1376, %v4355
  %4421 = vst.msk [vmem:[%s4362 + $0x740] sm:$0xff] %vm1376, %v4356
  %4422 = vst.msk [vmem:[%s4362 + $0x748] sm:$0xff] %vm1376, %v4357
  %4423 = vst.msk [vmem:[%s4362 + $0x780] sm:$0xff] %vm1376, %v4358
  %4424 = vst.msk [vmem:[%s4362 + $0x788] sm:$0xff] %vm1376, %v4359
  %4425 = vst.msk [vmem:[%s4362 + $0x7c0] sm:$0xff] %vm1376, %v4360
  %4426 = vst.msk [vmem:[%s4362 + $0x7c8] sm:$0xff] %vm1376, %v4361
  // Predicated region
  $region22: #{_lambda_.1} parent=0 // pred_check
    _
  $region23: #{_lambda_.1} parent=0 // pred_check_branch
    %4428 = sbr.rel (0) target = $region25
  $region24: #{_lambda_.1} parent=0 // pred_region
    _
  $region25: #{_lambda_.1} parent=0 // pred_fallthru
    _
  // Predicated region
  $region26: #{_lambda_.1} parent=0 // pred_check
    _
  $region27: #{_lambda_.1} parent=0 // pred_check_branch
    %4430 = sbr.rel (0) target = $region29
  $region28: #{_lambda_.1} parent=0 // pred_region
    _
  $region29: #{_lambda_.1} parent=0 // pred_fallthru
    _

</llo_original>
